<compile_context>
chip_gen: v6e
topology: v6e:2x2x1
jax: 0.10.0
libtpu: 0.0.40
codegen_flags: <defaults>
</compile_context>

<pallas_src>
import functools

import jax
import jax.numpy as jnp
import numpy as np
from jax.experimental import pallas as pl
from jax.experimental.pallas import tpu as pltpu

LANE = 128


def _resnet1d_kernel(x_ref, w1_ref, b1_ref, w2_ref, b2_ref, o_ref, hbuf,
                     *, T, PAD, dilations, use_concat):
    """All n_depth ResConv1DBlocks for one batch element, VMEM-resident.

    x_ref : (1, T, Cp)            input activations (f32, channel-padded)
    w1_ref: (n_depth, 3*Cp, Cp)   dilated-conv weights, K-major [tap0|tap1|tap2], bf16, (in,out)
    b1_ref: (n_depth, 1, Cp)      f32
    w2_ref: (n_depth, Cp, Cp)     1x1-conv weights (in, out), bf16
    b2_ref: (n_depth, 1, Cp)      f32
    o_ref : (1, T, Cp)
    hbuf  : (PAD + T + PAD, Cp)   bf16 halo buffer; interior rows [PAD, PAD+T);
                                  halo rows stay zero so every dilation reuses
                                  the same zero padding.
    """
    Cp = hbuf.shape[1]

    # Zero ONLY the two PAD-row halos (interior is fully overwritten every
    # depth). Re-zeroed every grid step on purpose: with a megacore-sharded
    # parallel grid there is no single "first" iteration per core.
    halo = jnp.zeros((PAD, Cp), hbuf.dtype)
    hbuf[0:PAD, :] = halo
    hbuf[PAD + T:PAD + T + PAD, :] = halo

    x = x_ref[0]                       # (T, Cp) f32 residual carry
    n_depth = len(dilations)

    # Dilations are compile-time constants -> static (unrolled) Python loop.
    # TODO(synk): for n_depth >= ~8 switch to lax.fori_loop + SMEM dilation
    # table with pl.ds slices to bound live ranges / code size.
    for depth, d in enumerate(dilations):
        # ReLU + bf16 cast once per depth; halo rows are already bf16 zeros.
        hbuf[PAD:PAD + T, :] = jnp.maximum(x, 0.0).astype(hbuf.dtype)

        h0 = hbuf[PAD - d:PAD - d + T, :]          # tap 0 -> x[t - d]
        h1 = hbuf[PAD:PAD + T, :]                  # tap 1 -> x[t]
        h2 = hbuf[PAD + d:PAD + d + T, :]          # tap 2 -> x[t + d]

        if use_concat:
            # Single MXU matmul with K = 3*Cp (best when Cp == 128).
            hcat = jnp.concatenate([h0, h1, h2], axis=-1)
            y = (jnp.dot(hcat, w1_ref[depth],
                         preferred_element_type=jnp.float32)
                 + b1_ref[depth])
        else:
            # Three K = Cp matmuls summed in f32: no (T, 3*Cp) im2col buffer.
            y = (jnp.dot(h0, w1_ref[depth, 0 * Cp:1 * Cp, :],
                         preferred_element_type=jnp.float32)
                 + jnp.dot(h1, w1_ref[depth, 1 * Cp:2 * Cp, :],
                           preferred_element_type=jnp.float32)
                 + jnp.dot(h2, w1_ref[depth, 2 * Cp:3 * Cp, :],
                           preferred_element_type=jnp.float32)
                 + b1_ref[depth])

        z = jnp.maximum(y, 0.0).astype(jnp.bfloat16)   # ReLU, bf16 MXU operand
        out = (jnp.dot(z, w2_ref[depth], preferred_element_type=jnp.float32)
               + b2_ref[depth]
               + x)

        if depth == n_depth - 1:
            o_ref[0] = out.astype(o_ref.dtype)         # write output directly
        else:
            x = out


def _weight_specs(n_depth, Cp, buffered_weights):
    # Constant index maps: the whole stack is resident across the batch grid.
    # Buffered(1) avoids pointless double-buffering of these constant blocks.
    pm = {"pipeline_mode": pl.Buffered(1)} if buffered_weights else {}
    return [
        pl.BlockSpec((n_depth, 3 * Cp, Cp), lambda b: (0, 0, 0), **pm),
        pl.BlockSpec((n_depth, 1, Cp), lambda b: (0, 0, 0), **pm),
        pl.BlockSpec((n_depth, Cp, Cp), lambda b: (0, 0, 0), **pm),
        pl.BlockSpec((n_depth, 1, Cp), lambda b: (0, 0, 0), **pm),
    ]


def _build_resnet1d_call(B, T, Cp, n_depth, dilations, out_dtype,
                         buffered_weights):
    d_max = max(dilations)
    PAD = ((d_max + 7) // 8) * 8      # sublane-aligned interior offset
    Tbuf = PAD + T + PAD
    use_concat = Cp <= 128            # K=3*Cp only pays off when Cp == 128

    kernel = functools.partial(
        _resnet1d_kernel, T=T, PAD=PAD,
        dilations=tuple(int(d) for d in dilations), use_concat=use_concat)

    # --- VMEM budget (bytes) -> vmem_limit_bytes with ~50% headroom -------
    bytes_io = 2 * 2 * T * Cp * 4                              # x + o, 2-deep
    bytes_hbuf = Tbuf * Cp * 2                                 # bf16 halo buf
    bytes_weights = (n_depth * (3 * Cp * Cp + Cp * Cp) * 2     # bf16 weights
                     + n_depth * 2 * Cp * 4)                   # f32 biases
    bytes_w_resident = bytes_weights * (1 if buffered_weights else 2)
    bytes_tmp = (T * 3 * Cp * 2 if use_concat else 0) + 2 * T * Cp * 4
    footprint = bytes_io + bytes_hbuf + bytes_w_resident + bytes_tmp
    vmem_limit = min(max(int(footprint * 1.5), 32 * 1024 * 1024),
                     64 * 1024 * 1024)   # valid on v7x (64 MiB) and v5e/v6e

    # --- advisory cost estimate for XLA's scheduler ------------------------
    flops = 8 * B * T * Cp * Cp * n_depth                      # 2*(3CpCp+CpCp)
    bytes_accessed = 2 * B * T * Cp * 4 + bytes_weights
    cost = pl.CostEstimate(flops=flops, transcendentals=0,
                           bytes_accessed=bytes_accessed)

    return pl.pallas_call(
        kernel,
        out_shape=jax.ShapeDtypeStruct((B, T, Cp), out_dtype),
        grid_spec=pltpu.PrefetchScalarGridSpec(
            num_scalar_prefetch=0,
            grid=(B,),
            in_specs=[pl.BlockSpec((1, T, Cp), lambda b: (b, 0, 0))]
                     + _weight_specs(n_depth, Cp, buffered_weights),
            out_specs=pl.BlockSpec((1, T, Cp), lambda b: (b, 0, 0)),
            scratch_shapes=[pltpu.VMEM((Tbuf, Cp), jnp.bfloat16)],
        ),
        compiler_params=pltpu.CompilerParams(
            dimension_semantics=("parallel",),     # batch across TCs (v7x)
            vmem_limit_bytes=vmem_limit),
        cost_estimate=cost,
    )


def resnet1d_forward(x_nct, packed_params):
    """x_nct: (B, C, T) PyTorch NCW layout. Returns the same layout."""
    dilations, w1, b1, w2, b2 = packed_params
    B, C, T = x_nct.shape
    n_depth, _, Cp = w2.shape

    # TODO(synk): in a full model, keep activations in (B, T, Cp) lane-padded
    # layout across layers to avoid these extra HBM passes per call.
    x = jnp.transpose(x_nct, (0, 2, 1))
    x = jnp.pad(x, ((0, 0), (0, 0), (0, Cp - C)))

    try:
        call = _build_resnet1d_call(B, T, Cp, n_depth, dilations,
                                    x_nct.dtype, buffered_weights=True)
        out = call(x, w1, b1, w2, b2)
    except Exception:
        # Fallback for JAX versions that reject single-buffered BlockSpecs.
        call = _build_resnet1d_call(B, T, Cp, n_depth, dilations,
                                    x_nct.dtype, buffered_weights=False)
        out = call(x, w1, b1, w2, b2)

    out = out[:, :, :C]
    return jnp.transpose(out, (0, 2, 1))


def init_resnet1d_params(key, n_in, n_depth, dilation_growth_rate):
    """Deterministic synthetic params in REAL PyTorch Conv1d layouts:
    conv1 weight (out_ch, in_ch, 3), bias (out_ch,)
    conv2 weight (out_ch, in_ch, 1), bias (out_ch,)
    """
    dilations = [dilation_growth_rate ** depth for depth in range(n_depth)]
    dilations = dilations[::-1]           # reverse_dilation=True
    params = []
    for d in dilations:
        key, k1, k2, k3, k4 = jax.random.split(key, 5)
        w1 = 0.1 * jax.random.normal(k1, (n_in, n_in, 3), jnp.float32)
        b1 = 0.1 * jax.random.normal(k2, (n_in,), jnp.float32)
        w2 = 0.1 * jax.random.normal(k3, (n_in, n_in, 1), jnp.float32)
        b2 = 0.1 * jax.random.normal(k4, (n_in,), jnp.float32)
        params.append((d, w1, b1, w2, b2))
    return params


def pack_resnet1d_params(params, n_in, lane=LANE):
    """PyTorch-layout params -> kernel layout.

    conv1 (out, in, 3) -> (3*Cp, Cp) K-major [tap0|tap1|tap2], each tap (in, out).
    conv2 (out, in, 1) -> (Cp, Cp) (in, out).
    Channels zero-padded once to a lane multiple; padded channels stay exactly
    zero through every block so the real channels are unchanged.
    """
    Cp = ((n_in + lane - 1) // lane) * lane
    dils, W1, B1, W2, B2 = [], [], [], [], []
    for (d, w1, b1, w2, b2) in params:
        dils.append(int(d))
        taps = [jnp.zeros((Cp, Cp), jnp.float32).at[:n_in, :n_in].set(w1[:, :, k].T)
                for k in range(3)]
        W1.append(jnp.concatenate(taps, axis=0))                    # (3*Cp, Cp)
        B1.append(jnp.zeros((1, Cp), jnp.float32).at[0, :n_in].set(b1))
        W2.append(jnp.zeros((Cp, Cp), jnp.float32).at[:n_in, :n_in].set(w2[:, :, 0].T))
        B2.append(jnp.zeros((1, Cp), jnp.float32).at[0, :n_in].set(b2))
    return (tuple(dils),
            jnp.stack(W1).astype(jnp.bfloat16),
            jnp.stack(B1),
            jnp.stack(W2).astype(jnp.bfloat16),
            jnp.stack(B2))


def resnet1d_reference(x_nct, params):
    """Pure-JAX f32 reference with PyTorch Conv1d semantics (for self-check)."""
    x = jnp.transpose(x_nct, (0, 2, 1)).astype(jnp.float32)   # (B, T, C)
    T = x.shape[1]
    for (d, w1, b1, w2, b2) in params:
        h = jax.nn.relu(x)
        hp = jnp.pad(h, ((0, 0), (d, d), (0, 0)))
        y = sum(jnp.einsum("bti,oi->bto", hp[:, k * d:k * d + T], w1[:, :, k])
                for k in range(3)) + b1
        z = jax.nn.relu(y)
        x = jnp.einsum("bti,oi->bto", z, w2[:, :, 0]) + b2 + x
    return jnp.transpose(x, (0, 2, 1))


if __name__ == "__main__":
    # Small shapes: batch=2, channels=32, seq length=16; n_depth=3, dgr=3
    B, C, T = 2, 32, 16
    n_depth = 3
    dilation_growth_rate = 3

    key = jax.random.PRNGKey(0)
    kx, kp = jax.random.split(key)
    x = jax.random.normal(kx, (B, C, T), jnp.float32)    # PyTorch NCW input

    params = init_resnet1d_params(kp, C, n_depth, dilation_growth_rate)
    packed = pack_resnet1d_params(params, C)

    out = jax.block_until_ready(resnet1d_forward(x, packed))
    assert out.shape == (B, C, T), out.shape

    # Correctness vs. pure-JAX f32 reference (bf16 MXU operands -> loose tol).
    ref = jax.block_until_ready(resnet1d_reference(x, params))
    np.testing.assert_allclose(np.asarray(out), np.asarray(ref),
                               rtol=5e-2, atol=5e-2)

    print("KERNEL_OK")
</pallas_src>

<mosaic_0001>
module attributes {stable_mosaic.version = 11 : i64} {
  func.func @_resnet1d_kernel(%arg0: i32, %arg1: memref<1x16x128xf32, #tpu.memory_space<vmem>>, %arg2: memref<3x384x128xbf16, #tpu.memory_space<vmem>>, %arg3: memref<3x1x128xf32, #tpu.memory_space<vmem>>, %arg4: memref<3x128x128xbf16, #tpu.memory_space<vmem>>, %arg5: memref<3x1x128xf32, #tpu.memory_space<vmem>>, %arg6: memref<1x16x128xf32, #tpu.memory_space<vmem>>, %arg7: memref<48x128xbf16, #tpu.memory_space<vmem>>) attributes {dimension_semantics = [#tpu.dimension_semantics<parallel>], iteration_bounds = array<i64: 2>, scalar_prefetch = 0 : i64, scratch_operands = 1 : i64, tpu.core_type = #tpu.core_type<tc>, window_params = [{transform_indices = @transform_0, window_bounds = array<i64: 1, 16, 128>}, {pipeline_mode = #tpu.pipeline_mode<synchronous>, transform_indices = @transform_1, window_bounds = array<i64: 3, 384, 128>}, {pipeline_mode = #tpu.pipeline_mode<synchronous>, transform_indices = @transform_2, window_bounds = array<i64: 3, 1, 128>}, {pipeline_mode = #tpu.pipeline_mode<synchronous>, transform_indices = @transform_3, window_bounds = array<i64: 3, 128, 128>}, {pipeline_mode = #tpu.pipeline_mode<synchronous>, transform_indices = @transform_4, window_bounds = array<i64: 3, 1, 128>}, {transform_indices = @transform_5, window_bounds = array<i64: 1, 16, 128>}]} {
    %cst = arith.constant 0.000000e+00 : bf16
    %0 = vector.broadcast %cst : bf16 to vector<16x128xbf16>
    %c0 = arith.constant 0 : index
    %c0_0 = arith.constant 0 : index
    %1 = vector.load %arg7[%c0, %c0_0] : memref<48x128xbf16, #tpu.memory_space<vmem>>, vector<16x128xbf16>
    tpu.vector_store %arg7[%c0, %c0_0], %0 {strides = array<i32>} : memref<48x128xbf16, #tpu.memory_space<vmem>>, vector<16x128xbf16>,
    %c32 = arith.constant 32 : index
    %c0_1 = arith.constant 0 : index
    %2 = vector.load %arg7[%c32, %c0_1] : memref<48x128xbf16, #tpu.memory_space<vmem>>, vector<16x128xbf16>
    tpu.vector_store %arg7[%c32, %c0_1], %0 {strides = array<i32>} : memref<48x128xbf16, #tpu.memory_space<vmem>>, vector<16x128xbf16>,
    %c0_2 = arith.constant 0 : index
    %c0_3 = arith.constant 0 : index
    %c0_4 = arith.constant 0 : index
    %3 = vector.load %arg1[%c0_2, %c0_3, %c0_4] : memref<1x16x128xf32, #tpu.memory_space<vmem>>, vector<1x16x128xf32>
    %4 = vector.shape_cast %3 : vector<1x16x128xf32> to vector<16x128xf32>
    %cst_5 = arith.constant 0.000000e+00 : f32
    %5 = vector.broadcast %cst_5 : f32 to vector<16x128xf32>
    %6 = arith.maximumf %4, %5 : vector<16x128xf32>
    %7 = arith.truncf %6 : vector<16x128xf32> to vector<16x128xbf16>
    %c16 = arith.constant 16 : index
    %c0_6 = arith.constant 0 : index
    %8 = vector.load %arg7[%c16, %c0_6] : memref<48x128xbf16, #tpu.memory_space<vmem>>, vector<16x128xbf16>
    tpu.vector_store %arg7[%c16, %c0_6], %7 {strides = array<i32>} : memref<48x128xbf16, #tpu.memory_space<vmem>>, vector<16x128xbf16>,
    %c7 = arith.constant 7 : index
    %c0_7 = arith.constant 0 : index
    %9 = vector.load %arg7[%c7, %c0_7] : memref<48x128xbf16, #tpu.memory_space<vmem>>, vector<16x128xbf16>
    %c16_8 = arith.constant 16 : index
    %c0_9 = arith.constant 0 : index
    %10 = vector.load %arg7[%c16_8, %c0_9] : memref<48x128xbf16, #tpu.memory_space<vmem>>, vector<16x128xbf16>
    %c25 = arith.constant 25 : index
    %c0_10 = arith.constant 0 : index
    %11 = vector.load %arg7[%c25, %c0_10] : memref<48x128xbf16, #tpu.memory_space<vmem>>, vector<16x128xbf16>
    %12 = tpu.concatenate %9, %10, %11 in 1 : vector<16x128xbf16>, vector<16x128xbf16>, vector<16x128xbf16> -> vector<16x384xbf16>
    %c0_11 = arith.constant 0 : index
    %c0_12 = arith.constant 0 : index
    %c0_13 = arith.constant 0 : index
    %13 = vector.load %arg2[%c0_11, %c0_12, %c0_13] : memref<3x384x128xbf16, #tpu.memory_space<vmem>>, vector<1x384x128xbf16>
    %14 = vector.shape_cast %13 : vector<1x384x128xbf16> to vector<384x128xbf16>
    %cst_14 = arith.constant dense<0.000000e+00> : vector<16x128xf32>
    %15 = tpu.matmul %12, %14, %cst_14 {dimension_numbers = #tpu.dot_dimension_numbers<[1], [0], [0], [1], [0, 0, 1, 1], [], []>} : vector<16x384xbf16>, vector<384x128xbf16>, vector<16x128xf32> -> vector<16x128xf32>
    %c0_15 = arith.constant 0 : index
    %c0_16 = arith.constant 0 : index
    %c0_17 = arith.constant 0 : index
    %16 = vector.load %arg3[%c0_15, %c0_16, %c0_17] : memref<3x1x128xf32, #tpu.memory_space<vmem>>, vector<1x1x128xf32>
    %17 = vector.shape_cast %16 : vector<1x1x128xf32> to vector<1x128xf32>
    %18 = vector.broadcast %17 : vector<1x128xf32> to vector<16x128xf32>
    %19 = arith.addf %15, %18 : vector<16x128xf32>
    %cst_18 = arith.constant 0.000000e+00 : f32
    %20 = vector.broadcast %cst_18 : f32 to vector<16x128xf32>
    %21 = arith.maximumf %19, %20 : vector<16x128xf32>
    %22 = arith.truncf %21 : vector<16x128xf32> to vector<16x128xbf16>
    %c0_19 = arith.constant 0 : index
    %c0_20 = arith.constant 0 : index
    %c0_21 = arith.constant 0 : index
    %23 = vector.load %arg4[%c0_19, %c0_20, %c0_21] : memref<3x128x128xbf16, #tpu.memory_space<vmem>>, vector<1x128x128xbf16>
    %24 = vector.shape_cast %23 : vector<1x128x128xbf16> to vector<128x128xbf16>
    %cst_22 = arith.constant dense<0.000000e+00> : vector<16x128xf32>
    %25 = tpu.matmul %22, %24, %cst_22 {dimension_numbers = #tpu.dot_dimension_numbers<[1], [0], [0], [1], [0, 0, 1, 1], [], []>} : vector<16x128xbf16>, vector<128x128xbf16>, vector<16x128xf32> -> vector<16x128xf32>
    %c0_23 = arith.constant 0 : index
    %c0_24 = arith.constant 0 : index
    %c0_25 = arith.constant 0 : index
    %26 = vector.load %arg5[%c0_23, %c0_24, %c0_25] : memref<3x1x128xf32, #tpu.memory_space<vmem>>, vector<1x1x128xf32>
    %27 = vector.shape_cast %26 : vector<1x1x128xf32> to vector<1x128xf32>
    %28 = vector.broadcast %27 : vector<1x128xf32> to vector<16x128xf32>
    %29 = arith.addf %25, %28 : vector<16x128xf32>
    %30 = arith.addf %29, %4 : vector<16x128xf32>
    %cst_26 = arith.constant 0.000000e+00 : f32
    %31 = vector.broadcast %cst_26 : f32 to vector<16x128xf32>
    %32 = arith.maximumf %30, %31 : vector<16x128xf32>
    %33 = arith.truncf %32 : vector<16x128xf32> to vector<16x128xbf16>
    %c16_27 = arith.constant 16 : index
    %c0_28 = arith.constant 0 : index
    %34 = vector.load %arg7[%c16_27, %c0_28] : memref<48x128xbf16, #tpu.memory_space<vmem>>, vector<16x128xbf16>
    tpu.vector_store %arg7[%c16_27, %c0_28], %33 {strides = array<i32>} : memref<48x128xbf16, #tpu.memory_space<vmem>>, vector<16x128xbf16>,
    %c13 = arith.constant 13 : index
    %c0_29 = arith.constant 0 : index
    %35 = vector.load %arg7[%c13, %c0_29] : memref<48x128xbf16, #tpu.memory_space<vmem>>, vector<16x128xbf16>
    %c16_30 = arith.constant 16 : index
    %c0_31 = arith.constant 0 : index
    %36 = vector.load %arg7[%c16_30, %c0_31] : memref<48x128xbf16, #tpu.memory_space<vmem>>, vector<16x128xbf16>
    %c19 = arith.constant 19 : index
    %c0_32 = arith.constant 0 : index
    %37 = vector.load %arg7[%c19, %c0_32] : memref<48x128xbf16, #tpu.memory_space<vmem>>, vector<16x128xbf16>
    %38 = tpu.concatenate %35, %36, %37 in 1 : vector<16x128xbf16>, vector<16x128xbf16>, vector<16x128xbf16> -> vector<16x384xbf16>
    %c1 = arith.constant 1 : index
    %c0_33 = arith.constant 0 : index
    %c0_34 = arith.constant 0 : index
    %39 = vector.load %arg2[%c1, %c0_33, %c0_34] : memref<3x384x128xbf16, #tpu.memory_space<vmem>>, vector<1x384x128xbf16>
    %40 = vector.shape_cast %39 : vector<1x384x128xbf16> to vector<384x128xbf16>
    %cst_35 = arith.constant dense<0.000000e+00> : vector<16x128xf32>
    %41 = tpu.matmul %38, %40, %cst_35 {dimension_numbers = #tpu.dot_dimension_numbers<[1], [0], [0], [1], [0, 0, 1, 1], [], []>} : vector<16x384xbf16>, vector<384x128xbf16>, vector<16x128xf32> -> vector<16x128xf32>
    %c1_36 = arith.constant 1 : index
    %c0_37 = arith.constant 0 : index
    %c0_38 = arith.constant 0 : index
    %42 = vector.load %arg3[%c1_36, %c0_37, %c0_38] : memref<3x1x128xf32, #tpu.memory_space<vmem>>, vector<1x1x128xf32>
    %43 = vector.shape_cast %42 : vector<1x1x128xf32> to vector<1x128xf32>
    %44 = vector.broadcast %43 : vector<1x128xf32> to vector<16x128xf32>
    %45 = arith.addf %41, %44 : vector<16x128xf32>
    %cst_39 = arith.constant 0.000000e+00 : f32
    %46 = vector.broadcast %cst_39 : f32 to vector<16x128xf32>
    %47 = arith.maximumf %45, %46 : vector<16x128xf32>
    %48 = arith.truncf %47 : vector<16x128xf32> to vector<16x128xbf16>
    %c1_40 = arith.constant 1 : index
    %c0_41 = arith.constant 0 : index
    %c0_42 = arith.constant 0 : index
    %49 = vector.load %arg4[%c1_40, %c0_41, %c0_42] : memref<3x128x128xbf16, #tpu.memory_space<vmem>>, vector<1x128x128xbf16>
    %50 = vector.shape_cast %49 : vector<1x128x128xbf16> to vector<128x128xbf16>
    %cst_43 = arith.constant dense<0.000000e+00> : vector<16x128xf32>
    %51 = tpu.matmul %48, %50, %cst_43 {dimension_numbers = #tpu.dot_dimension_numbers<[1], [0], [0], [1], [0, 0, 1, 1], [], []>} : vector<16x128xbf16>, vector<128x128xbf16>, vector<16x128xf32> -> vector<16x128xf32>
    %c1_44 = arith.constant 1 : index
    %c0_45 = arith.constant 0 : index
    %c0_46 = arith.constant 0 : index
    %52 = vector.load %arg5[%c1_44, %c0_45, %c0_46] : memref<3x1x128xf32, #tpu.memory_space<vmem>>, vector<1x1x128xf32>
    %53 = vector.shape_cast %52 : vector<1x1x128xf32> to vector<1x128xf32>
    %54 = vector.broadcast %53 : vector<1x128xf32> to vector<16x128xf32>
    %55 = arith.addf %51, %54 : vector<16x128xf32>
    %56 = arith.addf %55, %30 : vector<16x128xf32>
    %cst_47 = arith.constant 0.000000e+00 : f32
    %57 = vector.broadcast %cst_47 : f32 to vector<16x128xf32>
    %58 = arith.maximumf %56, %57 : vector<16x128xf32>
    %59 = arith.truncf %58 : vector<16x128xf32> to vector<16x128xbf16>
    %c16_48 = arith.constant 16 : index
    %c0_49 = arith.constant 0 : index
    %60 = vector.load %arg7[%c16_48, %c0_49] : memref<48x128xbf16, #tpu.memory_space<vmem>>, vector<16x128xbf16>
    tpu.vector_store %arg7[%c16_48, %c0_49], %59 {strides = array<i32>} : memref<48x128xbf16, #tpu.memory_space<vmem>>, vector<16x128xbf16>,
    %c15 = arith.constant 15 : index
    %c0_50 = arith.constant 0 : index
    %61 = vector.load %arg7[%c15, %c0_50] : memref<48x128xbf16, #tpu.memory_space<vmem>>, vector<16x128xbf16>
    %c16_51 = arith.constant 16 : index
    %c0_52 = arith.constant 0 : index
    %62 = vector.load %arg7[%c16_51, %c0_52] : memref<48x128xbf16, #tpu.memory_space<vmem>>, vector<16x128xbf16>
    %c17 = arith.constant 17 : index
    %c0_53 = arith.constant 0 : index
    %63 = vector.load %arg7[%c17, %c0_53] : memref<48x128xbf16, #tpu.memory_space<vmem>>, vector<16x128xbf16>
    %64 = tpu.concatenate %61, %62, %63 in 1 : vector<16x128xbf16>, vector<16x128xbf16>, vector<16x128xbf16> -> vector<16x384xbf16>
    %c2 = arith.constant 2 : index
    %c0_54 = arith.constant 0 : index
    %c0_55 = arith.constant 0 : index
    %65 = vector.load %arg2[%c2, %c0_54, %c0_55] : memref<3x384x128xbf16, #tpu.memory_space<vmem>>, vector<1x384x128xbf16>
    %66 = vector.shape_cast %65 : vector<1x384x128xbf16> to vector<384x128xbf16>
    %cst_56 = arith.constant dense<0.000000e+00> : vector<16x128xf32>
    %67 = tpu.matmul %64, %66, %cst_56 {dimension_numbers = #tpu.dot_dimension_numbers<[1], [0], [0], [1], [0, 0, 1, 1], [], []>} : vector<16x384xbf16>, vector<384x128xbf16>, vector<16x128xf32> -> vector<16x128xf32>
    %c2_57 = arith.constant 2 : index
    %c0_58 = arith.constant 0 : index
    %c0_59 = arith.constant 0 : index
    %68 = vector.load %arg3[%c2_57, %c0_58, %c0_59] : memref<3x1x128xf32, #tpu.memory_space<vmem>>, vector<1x1x128xf32>
    %69 = vector.shape_cast %68 : vector<1x1x128xf32> to vector<1x128xf32>
    %70 = vector.broadcast %69 : vector<1x128xf32> to vector<16x128xf32>
    %71 = arith.addf %67, %70 : vector<16x128xf32>
    %cst_60 = arith.constant 0.000000e+00 : f32
    %72 = vector.broadcast %cst_60 : f32 to vector<16x128xf32>
    %73 = arith.maximumf %71, %72 : vector<16x128xf32>
    %74 = arith.truncf %73 : vector<16x128xf32> to vector<16x128xbf16>
    %c2_61 = arith.constant 2 : index
    %c0_62 = arith.constant 0 : index
    %c0_63 = arith.constant 0 : index
    %75 = vector.load %arg4[%c2_61, %c0_62, %c0_63] : memref<3x128x128xbf16, #tpu.memory_space<vmem>>, vector<1x128x128xbf16>
    %76 = vector.shape_cast %75 : vector<1x128x128xbf16> to vector<128x128xbf16>
    %cst_64 = arith.constant dense<0.000000e+00> : vector<16x128xf32>
    %77 = tpu.matmul %74, %76, %cst_64 {dimension_numbers = #tpu.dot_dimension_numbers<[1], [0], [0], [1], [0, 0, 1, 1], [], []>} : vector<16x128xbf16>, vector<128x128xbf16>, vector<16x128xf32> -> vector<16x128xf32>
    %c2_65 = arith.constant 2 : index
    %c0_66 = arith.constant 0 : index
    %c0_67 = arith.constant 0 : index
    %78 = vector.load %arg5[%c2_65, %c0_66, %c0_67] : memref<3x1x128xf32, #tpu.memory_space<vmem>>, vector<1x1x128xf32>
    %79 = vector.shape_cast %78 : vector<1x1x128xf32> to vector<1x128xf32>
    %80 = vector.broadcast %79 : vector<1x128xf32> to vector<16x128xf32>
    %81 = arith.addf %77, %80 : vector<16x128xf32>
    %82 = arith.addf %81, %56 : vector<16x128xf32>
    %c0_68 = arith.constant 0 : index
    %c0_69 = arith.constant 0 : index
    %c0_70 = arith.constant 0 : index
    %83 = vector.load %arg6[%c0_68, %c0_69, %c0_70] : memref<1x16x128xf32, #tpu.memory_space<vmem>>, vector<1x16x128xf32>
    %84 = vector.shape_cast %83 : vector<1x16x128xf32> to vector<16x128xf32>
    %85 = vector.shape_cast %82 : vector<16x128xf32> to vector<1x16x128xf32>
    tpu.vector_store %arg6[%c0_68, %c0_69, %c0_70], %85 {strides = array<i32>} : memref<1x16x128xf32, #tpu.memory_space<vmem>>, vector<1x16x128xf32>,
    return
  }
  func.func @transform_0(%arg0: i32) -> (i32, i32, i32) {
    %c0_i32 = arith.constant 0 : i32
    %c0_i32_0 = arith.constant 0 : i32
    %c0_i32_1 = arith.constant 0 : i32
    return %arg0, %c0_i32, %c0_i32_0 : i32, i32, i32
  }
  func.func @transform_1(%arg0: i32) -> (i32, i32, i32) {
    %c0_i32 = arith.constant 0 : i32
    %c0_i32_0 = arith.constant 0 : i32
    %c0_i32_1 = arith.constant 0 : i32
    %c0_i32_2 = arith.constant 0 : i32
    return %c0_i32, %c0_i32_0, %c0_i32_1 : i32, i32, i32
  }
  func.func @transform_2(%arg0: i32) -> (i32, i32, i32) {
    %c0_i32 = arith.constant 0 : i32
    %c0_i32_0 = arith.constant 0 : i32
    %c0_i32_1 = arith.constant 0 : i32
    %c0_i32_2 = arith.constant 0 : i32
    return %c0_i32, %c0_i32_0, %c0_i32_1 : i32, i32, i32
  }
  func.func @transform_3(%arg0: i32) -> (i32, i32, i32) {
    %c0_i32 = arith.constant 0 : i32
    %c0_i32_0 = arith.constant 0 : i32
    %c0_i32_1 = arith.constant 0 : i32
    %c0_i32_2 = arith.constant 0 : i32
    return %c0_i32, %c0_i32_0, %c0_i32_1 : i32, i32, i32
  }
  func.func @transform_4(%arg0: i32) -> (i32, i32, i32) {
    %c0_i32 = arith.constant 0 : i32
    %c0_i32_0 = arith.constant 0 : i32
    %c0_i32_1 = arith.constant 0 : i32
    %c0_i32_2 = arith.constant 0 : i32
    return %c0_i32, %c0_i32_0, %c0_i32_1 : i32, i32, i32
  }
  func.func @transform_5(%arg0: i32) -> (i32, i32, i32) {
    %c0_i32 = arith.constant 0 : i32
    %c0_i32_0 = arith.constant 0 : i32
    %c0_i32_1 = arith.constant 0 : i32
    return %arg0, %c0_i32, %c0_i32_0 : i32, i32, i32
  }
}

module attributes {stable_mosaic.version = 11 : i64} {
  func.func @_resnet1d_kernel(%arg0: i32, %arg1: memref<1x16x128xf32, #tpu.memory_space<vmem>>, %arg2: memref<3x384x128xbf16, #tpu.memory_space<vmem>>, %arg3: memref<3x1x128xf32, #tpu.memory_space<vmem>>, %arg4: memref<3x128x128xbf16, #tpu.memory_space<vmem>>, %arg5: memref<3x1x128xf32, #tpu.memory_space<vmem>>, %arg6: memref<1x16x128xf32, #tpu.memory_space<vmem>>, %arg7: memref<48x128xbf16, #tpu.memory_space<vmem>>) attributes {dimension_semantics = [#tpu.dimension_semantics<parallel>], iteration_bounds = array<i64: 2>, scalar_prefetch = 0 : i64, scratch_operands = 1 : i64, tpu.core_type = #tpu.core_type<tc>, window_params = [{transform_indices = @transform_0, window_bounds = array<i64: 1, 16, 128>}, {pipeline_mode = #tpu.pipeline_mode<synchronous>, transform_indices = @transform_1, window_bounds = array<i64: 3, 384, 128>}, {pipeline_mode = #tpu.pipeline_mode<synchronous>, transform_indices = @transform_2, window_bounds = array<i64: 3, 1, 128>}, {pipeline_mode = #tpu.pipeline_mode<synchronous>, transform_indices = @transform_3, window_bounds = array<i64: 3, 128, 128>}, {pipeline_mode = #tpu.pipeline_mode<synchronous>, transform_indices = @transform_4, window_bounds = array<i64: 3, 1, 128>}, {transform_indices = @transform_5, window_bounds = array<i64: 1, 16, 128>}]} {
    %cst = arith.constant 0.000000e+00 : bf16
    %0 = vector.broadcast %cst : bf16 to vector<16x128xbf16>
    %c0 = arith.constant 0 : index
    %c0_0 = arith.constant 0 : index
    %1 = vector.load %arg7[%c0, %c0_0] : memref<48x128xbf16, #tpu.memory_space<vmem>>, vector<16x128xbf16>
    tpu.vector_store %arg7[%c0, %c0_0], %0 {strides = array<i32>} : memref<48x128xbf16, #tpu.memory_space<vmem>>, vector<16x128xbf16>,
    %c32 = arith.constant 32 : index
    %c0_1 = arith.constant 0 : index
    %2 = vector.load %arg7[%c32, %c0_1] : memref<48x128xbf16, #tpu.memory_space<vmem>>, vector<16x128xbf16>
    tpu.vector_store %arg7[%c32, %c0_1], %0 {strides = array<i32>} : memref<48x128xbf16, #tpu.memory_space<vmem>>, vector<16x128xbf16>,
    %c0_2 = arith.constant 0 : index
    %c0_3 = arith.constant 0 : index
    %c0_4 = arith.constant 0 : index
    %3 = vector.load %arg1[%c0_2, %c0_3, %c0_4] : memref<1x16x128xf32, #tpu.memory_space<vmem>>, vector<1x16x128xf32>
    %4 = vector.shape_cast %3 : vector<1x16x128xf32> to vector<16x128xf32>
    %cst_5 = arith.constant 0.000000e+00 : f32
    %5 = vector.broadcast %cst_5 : f32 to vector<16x128xf32>
    %6 = arith.maximumf %4, %5 : vector<16x128xf32>
    %7 = arith.truncf %6 : vector<16x128xf32> to vector<16x128xbf16>
    %c16 = arith.constant 16 : index
    %c0_6 = arith.constant 0 : index
    %8 = vector.load %arg7[%c16, %c0_6] : memref<48x128xbf16, #tpu.memory_space<vmem>>, vector<16x128xbf16>
    tpu.vector_store %arg7[%c16, %c0_6], %7 {strides = array<i32>} : memref<48x128xbf16, #tpu.memory_space<vmem>>, vector<16x128xbf16>,
    %c7 = arith.constant 7 : index
    %c0_7 = arith.constant 0 : index
    %9 = vector.load %arg7[%c7, %c0_7] : memref<48x128xbf16, #tpu.memory_space<vmem>>, vector<16x128xbf16>
    %c16_8 = arith.constant 16 : index
    %c0_9 = arith.constant 0 : index
    %10 = vector.load %arg7[%c16_8, %c0_9] : memref<48x128xbf16, #tpu.memory_space<vmem>>, vector<16x128xbf16>
    %c25 = arith.constant 25 : index
    %c0_10 = arith.constant 0 : index
    %11 = vector.load %arg7[%c25, %c0_10] : memref<48x128xbf16, #tpu.memory_space<vmem>>, vector<16x128xbf16>
    %12 = tpu.concatenate %9, %10, %11 in 1 : vector<16x128xbf16>, vector<16x128xbf16>, vector<16x128xbf16> -> vector<16x384xbf16>
    %c0_11 = arith.constant 0 : index
    %c0_12 = arith.constant 0 : index
    %c0_13 = arith.constant 0 : index
    %13 = vector.load %arg2[%c0_11, %c0_12, %c0_13] : memref<3x384x128xbf16, #tpu.memory_space<vmem>>, vector<1x384x128xbf16>
    %14 = vector.shape_cast %13 : vector<1x384x128xbf16> to vector<384x128xbf16>
    %cst_14 = arith.constant dense<0.000000e+00> : vector<16x128xf32>
    %15 = tpu.matmul %12, %14, %cst_14 {dimension_numbers = #tpu.dot_dimension_numbers<[1], [0], [0], [1], [0, 0, 1, 1], [], []>} : vector<16x384xbf16>, vector<384x128xbf16>, vector<16x128xf32> -> vector<16x128xf32>
    %c0_15 = arith.constant 0 : index
    %c0_16 = arith.constant 0 : index
    %c0_17 = arith.constant 0 : index
    %16 = vector.load %arg3[%c0_15, %c0_16, %c0_17] : memref<3x1x128xf32, #tpu.memory_space<vmem>>, vector<1x1x128xf32>
    %17 = vector.shape_cast %16 : vector<1x1x128xf32> to vector<1x128xf32>
    %18 = vector.broadcast %17 : vector<1x128xf32> to vector<16x128xf32>
    %19 = arith.addf %15, %18 : vector<16x128xf32>
    %cst_18 = arith.constant 0.000000e+00 : f32
    %20 = vector.broadcast %cst_18 : f32 to vector<16x128xf32>
    %21 = arith.maximumf %19, %20 : vector<16x128xf32>
    %22 = arith.truncf %21 : vector<16x128xf32> to vector<16x128xbf16>
    %c0_19 = arith.constant 0 : index
    %c0_20 = arith.constant 0 : index
    %c0_21 = arith.constant 0 : index
    %23 = vector.load %arg4[%c0_19, %c0_20, %c0_21] : memref<3x128x128xbf16, #tpu.memory_space<vmem>>, vector<1x128x128xbf16>
    %24 = vector.shape_cast %23 : vector<1x128x128xbf16> to vector<128x128xbf16>
    %cst_22 = arith.constant dense<0.000000e+00> : vector<16x128xf32>
    %25 = tpu.matmul %22, %24, %cst_22 {dimension_numbers = #tpu.dot_dimension_numbers<[1], [0], [0], [1], [0, 0, 1, 1], [], []>} : vector<16x128xbf16>, vector<128x128xbf16>, vector<16x128xf32> -> vector<16x128xf32>
    %c0_23 = arith.constant 0 : index
    %c0_24 = arith.constant 0 : index
    %c0_25 = arith.constant 0 : index
    %26 = vector.load %arg5[%c0_23, %c0_24, %c0_25] : memref<3x1x128xf32, #tpu.memory_space<vmem>>, vector<1x1x128xf32>
    %27 = vector.shape_cast %26 : vector<1x1x128xf32> to vector<1x128xf32>
    %28 = vector.broadcast %27 : vector<1x128xf32> to vector<16x128xf32>
    %29 = arith.addf %25, %28 : vector<16x128xf32>
    %30 = arith.addf %29, %4 : vector<16x128xf32>
    %cst_26 = arith.constant 0.000000e+00 : f32
    %31 = vector.broadcast %cst_26 : f32 to vector<16x128xf32>
    %32 = arith.maximumf %30, %31 : vector<16x128xf32>
    %33 = arith.truncf %32 : vector<16x128xf32> to vector<16x128xbf16>
    %c16_27 = arith.constant 16 : index
    %c0_28 = arith.constant 0 : index
    %34 = vector.load %arg7[%c16_27, %c0_28] : memref<48x128xbf16, #tpu.memory_space<vmem>>, vector<16x128xbf16>
    tpu.vector_store %arg7[%c16_27, %c0_28], %33 {strides = array<i32>} : memref<48x128xbf16, #tpu.memory_space<vmem>>, vector<16x128xbf16>,
    %c13 = arith.constant 13 : index
    %c0_29 = arith.constant 0 : index
    %35 = vector.load %arg7[%c13, %c0_29] : memref<48x128xbf16, #tpu.memory_space<vmem>>, vector<16x128xbf16>
    %c16_30 = arith.constant 16 : index
    %c0_31 = arith.constant 0 : index
    %36 = vector.load %arg7[%c16_30, %c0_31] : memref<48x128xbf16, #tpu.memory_space<vmem>>, vector<16x128xbf16>
    %c19 = arith.constant 19 : index
    %c0_32 = arith.constant 0 : index
    %37 = vector.load %arg7[%c19, %c0_32] : memref<48x128xbf16, #tpu.memory_space<vmem>>, vector<16x128xbf16>
    %38 = tpu.concatenate %35, %36, %37 in 1 : vector<16x128xbf16>, vector<16x128xbf16>, vector<16x128xbf16> -> vector<16x384xbf16>
    %c1 = arith.constant 1 : index
    %c0_33 = arith.constant 0 : index
    %c0_34 = arith.constant 0 : index
    %39 = vector.load %arg2[%c1, %c0_33, %c0_34] : memref<3x384x128xbf16, #tpu.memory_space<vmem>>, vector<1x384x128xbf16>
    %40 = vector.shape_cast %39 : vector<1x384x128xbf16> to vector<384x128xbf16>
    %cst_35 = arith.constant dense<0.000000e+00> : vector<16x128xf32>
    %41 = tpu.matmul %38, %40, %cst_35 {dimension_numbers = #tpu.dot_dimension_numbers<[1], [0], [0], [1], [0, 0, 1, 1], [], []>} : vector<16x384xbf16>, vector<384x128xbf16>, vector<16x128xf32> -> vector<16x128xf32>
    %c1_36 = arith.constant 1 : index
    %c0_37 = arith.constant 0 : index
    %c0_38 = arith.constant 0 : index
    %42 = vector.load %arg3[%c1_36, %c0_37, %c0_38] : memref<3x1x128xf32, #tpu.memory_space<vmem>>, vector<1x1x128xf32>
    %43 = vector.shape_cast %42 : vector<1x1x128xf32> to vector<1x128xf32>
    %44 = vector.broadcast %43 : vector<1x128xf32> to vector<16x128xf32>
    %45 = arith.addf %41, %44 : vector<16x128xf32>
    %cst_39 = arith.constant 0.000000e+00 : f32
    %46 = vector.broadcast %cst_39 : f32 to vector<16x128xf32>
    %47 = arith.maximumf %45, %46 : vector<16x128xf32>
    %48 = arith.truncf %47 : vector<16x128xf32> to vector<16x128xbf16>
    %c1_40 = arith.constant 1 : index
    %c0_41 = arith.constant 0 : index
    %c0_42 = arith.constant 0 : index
    %49 = vector.load %arg4[%c1_40, %c0_41, %c0_42] : memref<3x128x128xbf16, #tpu.memory_space<vmem>>, vector<1x128x128xbf16>
    %50 = vector.shape_cast %49 : vector<1x128x128xbf16> to vector<128x128xbf16>
    %cst_43 = arith.constant dense<0.000000e+00> : vector<16x128xf32>
    %51 = tpu.matmul %48, %50, %cst_43 {dimension_numbers = #tpu.dot_dimension_numbers<[1], [0], [0], [1], [0, 0, 1, 1], [], []>} : vector<16x128xbf16>, vector<128x128xbf16>, vector<16x128xf32> -> vector<16x128xf32>
    %c1_44 = arith.constant 1 : index
    %c0_45 = arith.constant 0 : index
    %c0_46 = arith.constant 0 : index
    %52 = vector.load %arg5[%c1_44, %c0_45, %c0_46] : memref<3x1x128xf32, #tpu.memory_space<vmem>>, vector<1x1x128xf32>
    %53 = vector.shape_cast %52 : vector<1x1x128xf32> to vector<1x128xf32>
    %54 = vector.broadcast %53 : vector<1x128xf32> to vector<16x128xf32>
    %55 = arith.addf %51, %54 : vector<16x128xf32>
    %56 = arith.addf %55, %30 : vector<16x128xf32>
    %cst_47 = arith.constant 0.000000e+00 : f32
    %57 = vector.broadcast %cst_47 : f32 to vector<16x128xf32>
    %58 = arith.maximumf %56, %57 : vector<16x128xf32>
    %59 = arith.truncf %58 : vector<16x128xf32> to vector<16x128xbf16>
    %c16_48 = arith.constant 16 : index
    %c0_49 = arith.constant 0 : index
    %60 = vector.load %arg7[%c16_48, %c0_49] : memref<48x128xbf16, #tpu.memory_space<vmem>>, vector<16x128xbf16>
    tpu.vector_store %arg7[%c16_48, %c0_49], %59 {strides = array<i32>} : memref<48x128xbf16, #tpu.memory_space<vmem>>, vector<16x128xbf16>,
    %c15 = arith.constant 15 : index
    %c0_50 = arith.constant 0 : index
    %61 = vector.load %arg7[%c15, %c0_50] : memref<48x128xbf16, #tpu.memory_space<vmem>>, vector<16x128xbf16>
    %c16_51 = arith.constant 16 : index
    %c0_52 = arith.constant 0 : index
    %62 = vector.load %arg7[%c16_51, %c0_52] : memref<48x128xbf16, #tpu.memory_space<vmem>>, vector<16x128xbf16>
    %c17 = arith.constant 17 : index
    %c0_53 = arith.constant 0 : index
    %63 = vector.load %arg7[%c17, %c0_53] : memref<48x128xbf16, #tpu.memory_space<vmem>>, vector<16x128xbf16>
    %64 = tpu.concatenate %61, %62, %63 in 1 : vector<16x128xbf16>, vector<16x128xbf16>, vector<16x128xbf16> -> vector<16x384xbf16>
    %c2 = arith.constant 2 : index
    %c0_54 = arith.constant 0 : index
    %c0_55 = arith.constant 0 : index
    %65 = vector.load %arg2[%c2, %c0_54, %c0_55] : memref<3x384x128xbf16, #tpu.memory_space<vmem>>, vector<1x384x128xbf16>
    %66 = vector.shape_cast %65 : vector<1x384x128xbf16> to vector<384x128xbf16>
    %cst_56 = arith.constant dense<0.000000e+00> : vector<16x128xf32>
    %67 = tpu.matmul %64, %66, %cst_56 {dimension_numbers = #tpu.dot_dimension_numbers<[1], [0], [0], [1], [0, 0, 1, 1], [], []>} : vector<16x384xbf16>, vector<384x128xbf16>, vector<16x128xf32> -> vector<16x128xf32>
    %c2_57 = arith.constant 2 : index
    %c0_58 = arith.constant 0 : index
    %c0_59 = arith.constant 0 : index
    %68 = vector.load %arg3[%c2_57, %c0_58, %c0_59] : memref<3x1x128xf32, #tpu.memory_space<vmem>>, vector<1x1x128xf32>
    %69 = vector.shape_cast %68 : vector<1x1x128xf32> to vector<1x128xf32>
    %70 = vector.broadcast %69 : vector<1x128xf32> to vector<16x128xf32>
    %71 = arith.addf %67, %70 : vector<16x128xf32>
    %cst_60 = arith.constant 0.000000e+00 : f32
    %72 = vector.broadcast %cst_60 : f32 to vector<16x128xf32>
    %73 = arith.maximumf %71, %72 : vector<16x128xf32>
    %74 = arith.truncf %73 : vector<16x128xf32> to vector<16x128xbf16>
    %c2_61 = arith.constant 2 : index
    %c0_62 = arith.constant 0 : index
    %c0_63 = arith.constant 0 : index
    %75 = vector.load %arg4[%c2_61, %c0_62, %c0_63] : memref<3x128x128xbf16, #tpu.memory_space<vmem>>, vector<1x128x128xbf16>
    %76 = vector.shape_cast %75 : vector<1x128x128xbf16> to vector<128x128xbf16>
    %cst_64 = arith.constant dense<0.000000e+00> : vector<16x128xf32>
    %77 = tpu.matmul %74, %76, %cst_64 {dimension_numbers = #tpu.dot_dimension_numbers<[1], [0], [0], [1], [0, 0, 1, 1], [], []>} : vector<16x128xbf16>, vector<128x128xbf16>, vector<16x128xf32> -> vector<16x128xf32>
    %c2_65 = arith.constant 2 : index
    %c0_66 = arith.constant 0 : index
    %c0_67 = arith.constant 0 : index
    %78 = vector.load %arg5[%c2_65, %c0_66, %c0_67] : memref<3x1x128xf32, #tpu.memory_space<vmem>>, vector<1x1x128xf32>
    %79 = vector.shape_cast %78 : vector<1x1x128xf32> to vector<1x128xf32>
    %80 = vector.broadcast %79 : vector<1x128xf32> to vector<16x128xf32>
    %81 = arith.addf %77, %80 : vector<16x128xf32>
    %82 = arith.addf %81, %56 : vector<16x128xf32>
    %c0_68 = arith.constant 0 : index
    %c0_69 = arith.constant 0 : index
    %c0_70 = arith.constant 0 : index
    %83 = vector.load %arg6[%c0_68, %c0_69, %c0_70] : memref<1x16x128xf32, #tpu.memory_space<vmem>>, vector<1x16x128xf32>
    %84 = vector.shape_cast %83 : vector<1x16x128xf32> to vector<16x128xf32>
    %85 = vector.shape_cast %82 : vector<16x128xf32> to vector<1x16x128xf32>
    tpu.vector_store %arg6[%c0_68, %c0_69, %c0_70], %85 {strides = array<i32>} : memref<1x16x128xf32, #tpu.memory_space<vmem>>, vector<1x16x128xf32>,
    return
  }
  func.func @transform_0(%arg0: i32) -> (i32, i32, i32) {
    %c0_i32 = arith.constant 0 : i32
    %c0_i32_0 = arith.constant 0 : i32
    %c0_i32_1 = arith.constant 0 : i32
    return %arg0, %c0_i32, %c0_i32_0 : i32, i32, i32
  }
  func.func @transform_1(%arg0: i32) -> (i32, i32, i32) {
    %c0_i32 = arith.constant 0 : i32
    %c0_i32_0 = arith.constant 0 : i32
    %c0_i32_1 = arith.constant 0 : i32
    %c0_i32_2 = arith.constant 0 : i32
    return %c0_i32, %c0_i32_0, %c0_i32_1 : i32, i32, i32
  }
  func.func @transform_2(%arg0: i32) -> (i32, i32, i32) {
    %c0_i32 = arith.constant 0 : i32
    %c0_i32_0 = arith.constant 0 : i32
    %c0_i32_1 = arith.constant 0 : i32
    %c0_i32_2 = arith.constant 0 : i32
    return %c0_i32, %c0_i32_0, %c0_i32_1 : i32, i32, i32
  }
  func.func @transform_3(%arg0: i32) -> (i32, i32, i32) {
    %c0_i32 = arith.constant 0 : i32
    %c0_i32_0 = arith.constant 0 : i32
    %c0_i32_1 = arith.constant 0 : i32
    %c0_i32_2 = arith.constant 0 : i32
    return %c0_i32, %c0_i32_0, %c0_i32_1 : i32, i32, i32
  }
  func.func @transform_4(%arg0: i32) -> (i32, i32, i32) {
    %c0_i32 = arith.constant 0 : i32
    %c0_i32_0 = arith.constant 0 : i32
    %c0_i32_1 = arith.constant 0 : i32
    %c0_i32_2 = arith.constant 0 : i32
    return %c0_i32, %c0_i32_0, %c0_i32_1 : i32, i32, i32
  }
  func.func @transform_5(%arg0: i32) -> (i32, i32, i32) {
    %c0_i32 = arith.constant 0 : i32
    %c0_i32_0 = arith.constant 0 : i32
    %c0_i32_1 = arith.constant 0 : i32
    return %arg0, %c0_i32, %c0_i32_0 : i32, i32, i32
  }
}

</mosaic_0001>

<llo_original>
// kernel: tpu_custom_call.1
$region0: #{tpu_custom_call.1}
  #allocation0 [shape = 'u32[]', space=smem, size = 0x4, offset = 0x4, fixed_abs, tag = 'smem constant byte address 0x4 - core index']
  #allocation1 [shape = 'u32[144,128]{1,0:T(1,128)}', space=vmem, size = 0x12000, scoped, tag = 'internal scratch']
  #allocation2 [shape = 'bf16[48,128]{1,0:T(8,128)(2,1)}', space=vmem, size = 0x3000, scoped, tag = 'scratch operand']
  %s0 = inlined_call_operand.hbm [shape: f32[2,16,128], index: 0, kind: input, shape index: {}]
  %s1 = inlined_call_operand.hbm [shape: bf16[3,384,128], index: 1, kind: input, shape index: {}]
  %s2 = inlined_call_operand.vmem [shape: f32[3,1,128], index: 2, kind: input, shape index: {}]
  %s3 = inlined_call_operand.hbm [shape: bf16[3,128,128], index: 3, kind: input, shape index: {}]
  %s4 = inlined_call_operand.vmem [shape: f32[3,1,128], index: 4, kind: input, shape index: {}]
  %s5 = inlined_call_operand.hbm [shape: f32[2,16,128], index: 5, kind: output, shape index: {}]
  %s6 = sld [smem:[#allocation0]]
  $region65: #{tpu_custom_call.1} parent=0
    _
  %s8 = ssub.s32 1, %s6
  %s9 = scalar_select 0, %s8, %s6
  $region1: #{tpu_custom_call.1} parent=0
    #allocation3 [shape = 'u8[16384]{0}', space=vmem, size = 0x4000, scoped, tag = 'input window, operand 0']
    #allocation4 [shape = 's32[2]{0}', space=sflag, size = 0x8, scoped, tag = 'scoped memory for tpu_custom_call.1']
    #allocation5 [shape = 's32[2]{0}', space=sflag, size = 0x8, scoped, tag = 'scoped memory for tpu_custom_call.1']
    #allocation6 [shape = 'u8[294912]{0}', space=vmem, size = 0x48000, scoped, tag = 'input window, operand 1, single buffered']
    #allocation7 [shape = 's32[1]{0}', space=sflag, size = 0x4, scoped, tag = 'scoped memory for tpu_custom_call.1']
    #allocation8 [shape = 'u8[98304]{0}', space=vmem, size = 0x18000, scoped, tag = 'input window, operand 3, single buffered']
    #allocation9 [shape = 'u8[16384]{0}', space=vmem, size = 0x4000, scoped, tag = 'output window, operand 0']
    %10 = vsyncpa [#allocation4], 0
    %s11 = scalar_lea.sflag [#allocation4], 1
    %12 = vsyncpa %s11, 0
    %13 = vsyncpa [#allocation7], 0
    %14 = vsyncpa [#allocation5], 0
    %s15 = scalar_lea.sflag [#allocation5], 1
    %16 = vsyncpa %s15, 0
    loop: start=0, step=1, limit=4
    $region2: #{tpu_custom_call.1} parent=1 // loop_pre_header
      _
    $region3: #{tpu_custom_call.1} parent=1 // loop_header
      %s18 = sphi 0, %s22
      %p19 = scmp.ge.s32.totalorder %s18, 4
      %s28 = sphi 0, %s30
      %s31 = sphi 0, %s28
      %s32 = sphi 0, %s31
      %s48 = sphi 0, %s32
      %s52 = sphi 0, %s52
      %s54 = sphi 0, %s52
      %s55 = sphi 0, %s54
      %s69 = sphi 0, %s55
      %s73 = sphi 0, %s73
      %s75 = sphi 0, %s73
      %s76 = sphi 0, %s75
      %s90 = sphi 0, %s76
      %s94 = sphi 0, %s94
      %s96 = sphi 0, %s94
      %s97 = sphi 0, %s96
      %s111 = sphi 0, %s97
      %s115 = sphi 0, %s115
      %s117 = sphi 0, %s115
      %s118 = sphi 0, %s117
      %s132 = sphi 0, %s118
      %s138 = sphi 0, %s140
      %s141 = sphi 0, %s138
      %s142 = sphi 0, %s141
      %s158 = sphi 0, %s142
    $region4: #{tpu_custom_call.1} parent=1 // loop_header_branch
      %21 = sbr.rel (%p19) target = $region8
    $region5: #{tpu_custom_call.1} parent=1 // loop_body
      %s23 = ssub.s32 %s18, 1
      %s24 = ssub.s32 %s18, 2
      %s25 = sadd.s32 %s18, 1
      %s26 = ssub.s32 %s18, %s25
      %p27 = scmp.eq.s32.totalorder %s26, 0
      %s29 = sadd.s32 %s28, 1
      %s30 = scalar_select %p27, %s28, %s29
      %p33 = pneg %p27
      %p34 = scmp.eq.s32.totalorder %s18, 1
      %p35 = por %p33, %p34
      %p36 = scmp.ne.s32.totalorder %s28, %s31
      %p37 = scmp.eq.s32.totalorder %s18, 0
      %p38 = por %p36, %p37
      %p39 = scmp.ne.s32.totalorder %s28, %s31
      %p40 = scmp.eq.s32.totalorder %s23, 1
      %p41 = por %p39, %p40
      %p42 = scmp.ne.s32.totalorder %s31, %s32
      %p43 = scmp.eq.s32.totalorder %s23, 0
      %p44 = por %p42, %p43
      %p45 = scmp.ne.s32.totalorder %s31, %s32
      %p46 = scmp.eq.s32.totalorder %s24, 1
      %p47 = por %p45, %p46
      %p49 = scmp.ne.s32.totalorder %s32, %s48
      %p50 = scmp.eq.s32.totalorder %s24, 0
      %p51 = por %p49, %p50
      %s53 = sadd.s32 %s52, 1
      %p56 = scmp.eq.s32.totalorder %s18, 1
      %p57 = scmp.ne.s32.totalorder %s52, %s54
      %p58 = scmp.eq.s32.totalorder %s18, 0
      %p59 = por %p57, %p58
      %p60 = scmp.ne.s32.totalorder %s52, %s54
      %p61 = scmp.eq.s32.totalorder %s23, 1
      %p62 = por %p60, %p61
      %p63 = scmp.ne.s32.totalorder %s54, %s55
      %p64 = scmp.eq.s32.totalorder %s23, 0
      %p65 = por %p63, %p64
      %p66 = scmp.ne.s32.totalorder %s54, %s55
      %p67 = scmp.eq.s32.totalorder %s24, 1
      %p68 = por %p66, %p67
      %p70 = scmp.ne.s32.totalorder %s55, %s69
      %p71 = scmp.eq.s32.totalorder %s24, 0
      %p72 = por %p70, %p71
      %s74 = sadd.s32 %s73, 1
      %p77 = scmp.eq.s32.totalorder %s18, 1
      %p78 = scmp.ne.s32.totalorder %s73, %s75
      %p79 = scmp.eq.s32.totalorder %s18, 0
      %p80 = por %p78, %p79
      %p81 = scmp.ne.s32.totalorder %s73, %s75
      %p82 = scmp.eq.s32.totalorder %s23, 1
      %p83 = por %p81, %p82
      %p84 = scmp.ne.s32.totalorder %s75, %s76
      %p85 = scmp.eq.s32.totalorder %s23, 0
      %p86 = por %p84, %p85
      %p87 = scmp.ne.s32.totalorder %s75, %s76
      %p88 = scmp.eq.s32.totalorder %s24, 1
      %p89 = por %p87, %p88
      %p91 = scmp.ne.s32.totalorder %s76, %s90
      %p92 = scmp.eq.s32.totalorder %s24, 0
      %p93 = por %p91, %p92
      %s95 = sadd.s32 %s94, 1
      %p98 = scmp.eq.s32.totalorder %s18, 1
      %p99 = scmp.ne.s32.totalorder %s94, %s96
      %p100 = scmp.eq.s32.totalorder %s18, 0
      %p101 = por %p99, %p100
      %p102 = scmp.ne.s32.totalorder %s94, %s96
      %p103 = scmp.eq.s32.totalorder %s23, 1
      %p104 = por %p102, %p103
      %p105 = scmp.ne.s32.totalorder %s96, %s97
      %p106 = scmp.eq.s32.totalorder %s23, 0
      %p107 = por %p105, %p106
      %p108 = scmp.ne.s32.totalorder %s96, %s97
      %p109 = scmp.eq.s32.totalorder %s24, 1
      %p110 = por %p108, %p109
      %p112 = scmp.ne.s32.totalorder %s97, %s111
      %p113 = scmp.eq.s32.totalorder %s24, 0
      %p114 = por %p112, %p113
      %s116 = sadd.s32 %s115, 1
      %p119 = scmp.eq.s32.totalorder %s18, 1
      %p120 = scmp.ne.s32.totalorder %s115, %s117
      %p121 = scmp.eq.s32.totalorder %s18, 0
      %p122 = por %p120, %p121
      %p123 = scmp.ne.s32.totalorder %s115, %s117
      %p124 = scmp.eq.s32.totalorder %s23, 1
      %p125 = por %p123, %p124
      %p126 = scmp.ne.s32.totalorder %s117, %s118
      %p127 = scmp.eq.s32.totalorder %s23, 0
      %p128 = por %p126, %p127
      %p129 = scmp.ne.s32.totalorder %s117, %s118
      %p130 = scmp.eq.s32.totalorder %s24, 1
      %p131 = por %p129, %p130
      %p133 = scmp.ne.s32.totalorder %s118, %s132
      %p134 = scmp.eq.s32.totalorder %s24, 0
      %p135 = por %p133, %p134
      %s136 = ssub.s32 %s18, %s25
      %p137 = scmp.eq.s32.totalorder %s136, 0
      %s139 = sadd.s32 %s138, 1
      %s140 = scalar_select %p137, %s138, %s139
      %p143 = pneg %p137
      %p144 = scmp.eq.s32.totalorder %s18, 1
      %p145 = por %p143, %p144
      %p146 = scmp.ne.s32.totalorder %s138, %s141
      %p147 = scmp.eq.s32.totalorder %s18, 0
      %p148 = por %p146, %p147
      %p149 = scmp.ne.s32.totalorder %s138, %s141
      %p150 = scmp.eq.s32.totalorder %s23, 1
      %p151 = por %p149, %p150
      %p152 = scmp.ne.s32.totalorder %s141, %s142
      %p153 = scmp.eq.s32.totalorder %s23, 0
      %p154 = por %p152, %p153
      %p155 = scmp.ne.s32.totalorder %s141, %s142
      %p156 = scmp.eq.s32.totalorder %s24, 1
      %p157 = por %p155, %p156
      %p159 = scmp.ne.s32.totalorder %s142, %s158
      %p160 = scmp.eq.s32.totalorder %s24, 0
      %p161 = por %p159, %p160
      %p162 = scmp.le.s32.totalorder 1, %s18
      %p163 = scmp.lt.s32.totalorder %s18, 3
      %p164 = pnand %p162, %p163
      %p165 = pneg %p164
      // Predicated region
      $region9: #{tpu_custom_call.1} parent=5 // pred_check
        _
      $region10: #{tpu_custom_call.1} parent=5 // pred_check_branch
        %167 = sbr.rel (%p164) target = $region12
      $region11: #{tpu_custom_call.1} parent=5 // pred_region
        %s168 = ssub.s32 %s18, 1
        // Predicated region
        $region13: #{tpu_custom_call.1} parent=11 // pred_check
          %p169 = pneg %p65
        $region14: #{tpu_custom_call.1} parent=11 // pred_check_branch
          %171 = sbr.rel (%p169) target = $region16
        $region15: #{tpu_custom_call.1} parent=11 // pred_region
          %s173 = ssub.s32 9216, 9216
          %174 = vsyncadd [#allocation7], %s173
          %s175 = sshll.u32 [#allocation6], 4
          %s176 = int_to_ptr.vmem [resolvable:$true] %s175
          %181 = dma.hbm_to_vmem [thread:$0]  %s1, 9216, %s176, [#allocation7], 64, 64, 4
        $region16: #{tpu_custom_call.1} parent=11 // pred_fallthru
          _
        // Predicated region
        $region17: #{tpu_custom_call.1} parent=11 // pred_check
          %p182 = pneg %p86
        $region18: #{tpu_custom_call.1} parent=11 // pred_check_branch
          %184 = sbr.rel (%p182) target = $region20
        $region19: #{tpu_custom_call.1} parent=11 // pred_region
          _
        $region20: #{tpu_custom_call.1} parent=11 // pred_fallthru
          _
        // Predicated region
        $region21: #{tpu_custom_call.1} parent=11 // pred_check
          %p185 = pneg %p107
        $region22: #{tpu_custom_call.1} parent=11 // pred_check_branch
          %187 = sbr.rel (%p185) target = $region24
        $region23: #{tpu_custom_call.1} parent=11 // pred_region
          %s189 = ssub.s32 3072, 3072
          %190 = vsyncadd [#allocation7], %s189
          %s191 = sshll.u32 [#allocation8], 4
          %s192 = int_to_ptr.vmem [resolvable:$true] %s191
          %197 = dma.hbm_to_vmem [thread:$0]  %s3, 3072, %s192, [#allocation7], 64, 64, 4
        $region24: #{tpu_custom_call.1} parent=11 // pred_fallthru
          _
        // Predicated region
        $region25: #{tpu_custom_call.1} parent=11 // pred_check
          %p198 = pneg %p128
        $region26: #{tpu_custom_call.1} parent=11 // pred_check_branch
          %200 = sbr.rel (%p198) target = $region28
        $region27: #{tpu_custom_call.1} parent=11 // pred_region
          _
        $region28: #{tpu_custom_call.1} parent=11 // pred_fallthru
          _
      $region12: #{tpu_custom_call.1} parent=5 // pred_fallthru
        _
      %p201 = scmp.lt.s32.totalorder %s18, 2
      // Predicated region
      $region29: #{tpu_custom_call.1} parent=5 // pred_check
        %p202 = pneg %p201
      $region30: #{tpu_custom_call.1} parent=5 // pred_check_branch
        %204 = sbr.rel (%p202) target = $region32
      $region31: #{tpu_custom_call.1} parent=5 // pred_region
        // Predicated region
        $region33: #{tpu_custom_call.1} parent=31 // pred_check
          %p205 = pneg %p38
        $region34: #{tpu_custom_call.1} parent=31 // pred_check_branch
          %207 = sbr.rel (%p205) target = $region36
        $region35: #{tpu_custom_call.1} parent=31 // pred_region
          %s208 = sand.u32 %s28, 1
          %s209 = scalar_lea.sflag [#allocation4], %s208
          %s210 = sand.u32 %s28, 1
          %s211 = smul.addr %s210, 16
          %s212 = scalar_lea.vmem [#allocation3], %s211
          %s214 = ssub.s32 256, 256
          %215 = vsyncadd %s209, %s214
          %s216 = smul.addr %s18, 2
          %s217 = smul.addr %s216, 128
          %s218 = scalar_lea.hbm %s0, %s217
          %s219 = sshll.u32 %s212, 4
          %s220 = int_to_ptr.vmem [resolvable:$true] %s219
          %225 = dma.hbm_to_vmem [thread:$0]  %s218, 256, %s220, %s209, 128, 128, 8
        $region36: #{tpu_custom_call.1} parent=31 // pred_fallthru
          _
      $region32: #{tpu_custom_call.1} parent=5 // pred_fallthru
        _
      %p226 = scmp.le.s32.totalorder 1, %s18
      %p227 = scmp.lt.s32.totalorder %s18, 3
      %p228 = pnand %p226, %p227
      %p229 = pneg %p228
      // Predicated region
      $region37: #{tpu_custom_call.1} parent=5 // pred_check
        _
      $region38: #{tpu_custom_call.1} parent=5 // pred_check_branch
        %231 = sbr.rel (%p228) target = $region40
      $region39: #{tpu_custom_call.1} parent=5 // pred_region
        %s232 = ssub.s32 %s18, 1
        %s233 = sand.u32 %s31, 1
        %s234 = scalar_lea.sflag [#allocation4], %s233
        %s235 = sand.u32 %s31, 1
        %s236 = smul.addr %s235, 16
        %s237 = scalar_lea.vmem [#allocation3], %s236
        // Predicated region
        $region41: #{tpu_custom_call.1} parent=39 // pred_check
          %p238 = pneg %p44
        $region42: #{tpu_custom_call.1} parent=39 // pred_check_branch
          %240 = sbr.rel (%p238) target = $region44
        $region43: #{tpu_custom_call.1} parent=39 // pred_region
          %241 = dma.done %s234, 256
        $region44: #{tpu_custom_call.1} parent=39 // pred_fallthru
          _
        // Predicated region
        $region45: #{tpu_custom_call.1} parent=39 // pred_check
          %p242 = pneg %p65
        $region46: #{tpu_custom_call.1} parent=39 // pred_check_branch
          %244 = sbr.rel (%p242) target = $region48
        $region47: #{tpu_custom_call.1} parent=39 // pred_region
          %245 = dma.done [#allocation7], 9216
        $region48: #{tpu_custom_call.1} parent=39 // pred_fallthru
          _
        // Predicated region
        $region49: #{tpu_custom_call.1} parent=39 // pred_check
          %p246 = pneg %p107
        $region50: #{tpu_custom_call.1} parent=39 // pred_check_branch
          %248 = sbr.rel (%p246) target = $region52
        $region51: #{tpu_custom_call.1} parent=39 // pred_region
          %249 = dma.done [#allocation7], 3072
        $region52: #{tpu_custom_call.1} parent=39 // pred_fallthru
          _
        %s250 = sand.u32 %s31, 1
        %s251 = scalar_lea.sflag [#allocation4], %s250
        %s252 = sand.u32 %s31, 1
        %s253 = smul.addr %s252, 16
        %s254 = scalar_lea.vmem [#allocation3], %s253
        %p255 = pneg %p44
        %p256 = pneg %p41
        %p257 = pneg %p65
        %p258 = pneg %p62
        %p259 = pneg %p86
        %p260 = pneg %p83
        %p261 = pneg %p107
        %p262 = pneg %p104
        %p263 = pneg %p128
        %p264 = pneg %p125
        %p265 = pneg %p154
        %p266 = pneg %p151
        %s267 = sand.u32 %s141, 1
        %s268 = scalar_lea.sflag [#allocation5], %s267
        %s269 = sand.u32 %s141, 1
        %s270 = smul.addr %s269, 16
        %s271 = scalar_lea.vmem [#allocation9], %s270
        %273 = vst [vmem:[#allocation2] sm:$0xf] 0
        %274 = vst [vmem:[#allocation2 + $0x4] sm:$0xf] 0
        %275 = vst [vmem:[#allocation2 + $0x10] sm:$0xf] 0
        %276 = vst [vmem:[#allocation2 + $0x14] sm:$0xf] 0
        %v277 = vld [vmem:[%s237] sm:$0xff]
        %v278 = vld [vmem:[%s237 + $0x8] sm:$0xff]
        %v279 = vmax.f32 %v277, 0.0
        %v280 = vmax.f32 %v278, 0.0
        %v281 = vpack.c.bf16 %v280, %v279
        %v283 = vunpack.c.l.b16 %v281
        %v284 = vunpack.c.h.b16 %v281
        %v285 = vpack.c.b16 %v283, %v283
        %v286 = vpack.c.b16 %v284, %v284
        %289 = vst [vmem:[#allocation2 + $0x8] sm:$0xf] %v285
        %290 = vst [vmem:[#allocation2 + $0xc] sm:$0xf] %v286
        %v291 = vld [vmem:[#allocation2] sm:$0x8]
        %v292 = vld [vmem:[#allocation2 + $0x4] sm:$0xf]
        %v293 = vld [vmem:[#allocation2 + $0x8] sm:$0xf]
        %v294 = vld [vmem:[#allocation2 + $0xc] sm:$0xf]
        %v295 = vld [vmem:[#allocation2 + $0xc] sm:$0xf]
        %v296 = vld [vmem:[#allocation2 + $0x10] sm:$0xf]
        %v297 = vld [vmem:[#allocation2 + $0x14] sm:$0x1]
        %v301 = vunpack.c.l.b16 %v291
        %v302 = vunpack.c.l.b16 %v292
        %v303 = vunpack.c.l.b16 %v293
        %v304 = vpack.c.b16 %v302, %v301
        %v305 = vpack.c.b16 %v303, %v303
        %v307 = vunpack.c.l.b16 %v294
        %v308 = vpack.c.b16 %v307, %v303
        %v310 = vshrl.u32 %v308, 16
        %v312 = vrot.slane %v310, 4
        %v313 = vshll.u32 %v308, 16
        %v315 = vrot.slane %v313, 5
        %v316 = vor.u32 %v312, %v315
        %v320 = vunpack.c.l.b16 %v295
        %v321 = vunpack.c.l.b16 %v296
        %v322 = vunpack.c.l.b16 %v297
        %v323 = vpack.c.b16 %v321, %v320
        %v324 = vpack.c.b16 %v322, %v322
        %vm325 = vcmask 1042432
        %v326 = vrot.slane %v323, 5
        %v327 = vrot.slane %v324, 5
        %v328 = vsel %vm325, %v326, %v327
        %v329 = vld [vmem:[#allocation6] sm:$0xf]
        %v330 = vld [vmem:[#allocation6 + $0x4] sm:$0xf]
        %v331 = vld [vmem:[#allocation6 + $0x8] sm:$0xf]
        %v332 = vld [vmem:[#allocation6 + $0xc] sm:$0xf]
        %v333 = vld [vmem:[#allocation6 + $0x10] sm:$0xf]
        %v334 = vld [vmem:[#allocation6 + $0x14] sm:$0xf]
        %v335 = vld [vmem:[#allocation6 + $0x18] sm:$0xf]
        %v336 = vld [vmem:[#allocation6 + $0x1c] sm:$0xf]
        %v337 = vld [vmem:[#allocation6 + $0x20] sm:$0xf]
        %v338 = vld [vmem:[#allocation6 + $0x24] sm:$0xf]
        %v339 = vld [vmem:[#allocation6 + $0x28] sm:$0xf]
        %v340 = vld [vmem:[#allocation6 + $0x2c] sm:$0xf]
        %v341 = vld [vmem:[#allocation6 + $0x30] sm:$0xf]
        %v342 = vld [vmem:[#allocation6 + $0x34] sm:$0xf]
        %v343 = vld [vmem:[#allocation6 + $0x38] sm:$0xf]
        %v344 = vld [vmem:[#allocation6 + $0x3c] sm:$0xf]
        %v345 = vld [vmem:[#allocation6 + $0x40] sm:$0xf]
        %v346 = vld [vmem:[#allocation6 + $0x44] sm:$0xf]
        %v347 = vld [vmem:[#allocation6 + $0x48] sm:$0xf]
        %v348 = vld [vmem:[#allocation6 + $0x4c] sm:$0xf]
        %v349 = vld [vmem:[#allocation6 + $0x50] sm:$0xf]
        %v350 = vld [vmem:[#allocation6 + $0x54] sm:$0xf]
        %v351 = vld [vmem:[#allocation6 + $0x58] sm:$0xf]
        %v352 = vld [vmem:[#allocation6 + $0x5c] sm:$0xf]
        %v353 = vld [vmem:[#allocation6 + $0x60] sm:$0xf]
        %v354 = vld [vmem:[#allocation6 + $0x64] sm:$0xf]
        %v355 = vld [vmem:[#allocation6 + $0x68] sm:$0xf]
        %v356 = vld [vmem:[#allocation6 + $0x6c] sm:$0xf]
        %v357 = vld [vmem:[#allocation6 + $0x70] sm:$0xf]
        %v358 = vld [vmem:[#allocation6 + $0x74] sm:$0xf]
        %v359 = vld [vmem:[#allocation6 + $0x78] sm:$0xf]
        %v360 = vld [vmem:[#allocation6 + $0x7c] sm:$0xf]
        %v361 = vld [vmem:[#allocation6 + $0x80] sm:$0xf]
        %v362 = vld [vmem:[#allocation6 + $0x84] sm:$0xf]
        %v363 = vld [vmem:[#allocation6 + $0x88] sm:$0xf]
        %v364 = vld [vmem:[#allocation6 + $0x8c] sm:$0xf]
        %v365 = vld [vmem:[#allocation6 + $0x90] sm:$0xf]
        %v366 = vld [vmem:[#allocation6 + $0x94] sm:$0xf]
        %v367 = vld [vmem:[#allocation6 + $0x98] sm:$0xf]
        %v368 = vld [vmem:[#allocation6 + $0x9c] sm:$0xf]
        %v369 = vld [vmem:[#allocation6 + $0xa0] sm:$0xf]
        %v370 = vld [vmem:[#allocation6 + $0xa4] sm:$0xf]
        %v371 = vld [vmem:[#allocation6 + $0xa8] sm:$0xf]
        %v372 = vld [vmem:[#allocation6 + $0xac] sm:$0xf]
        %v373 = vld [vmem:[#allocation6 + $0xb0] sm:$0xf]
        %v374 = vld [vmem:[#allocation6 + $0xb4] sm:$0xf]
        %v375 = vld [vmem:[#allocation6 + $0xb8] sm:$0xf]
        %v376 = vld [vmem:[#allocation6 + $0xbc] sm:$0xf]
        %v377 = vld [vmem:[%s2] sm:$0x1]
        %v379 = vlaneseq
        %v380 = vshrl.u32 %v379, 7
        %v381 = vsub.s32 0, %v380
        %v382 = vrot.slane %v377, %v381
        %vm384 = vsmask.f32 4352
        %v386 = vshrl.u32 %v304, 16
        %v388 = vrot.slane %v386, 3
        %v389 = vshll.u32 %v304, 16
        %v391 = vrot.slane %v389, 4
        %v392 = vor.u32 %v388, %v391
        %v394 = vshrl.u32 %v305, 16
        %v396 = vrot.slane %v394, 3
        %v397 = vshll.u32 %v305, 16
        %v399 = vrot.slane %v397, 4
        %v400 = vor.u32 %v396, %v399
        %v401 = vsel %vm384, %v392, %v400
        %v403 = vshrl.u32 %v316, 16
        %v405 = vrot.slane %v403, 3
        %v406 = vshll.u32 %v316, 16
        %v408 = vrot.slane %v406, 4
        %v409 = vor.u32 %v405, %v408
        %v410 = vsel %vm384, %v409, %v409
        %v412 = vshrl.u32 %v326, 16
        %v414 = vrot.slane %v412, 3
        %v415 = vshll.u32 %v326, 16
        %v417 = vrot.slane %v415, 4
        %v418 = vor.u32 %v414, %v417
        %v420 = vshrl.u32 %v328, 16
        %v422 = vrot.slane %v420, 3
        %v423 = vshll.u32 %v328, 16
        %v425 = vrot.slane %v423, 4
        %v426 = vor.u32 %v422, %v425
        %v427 = vsel %vm384, %v418, %v426
        %v479 = vunpack.c.l.b16 %v329
        %v480 = vunpack.c.l.b16 %v330
        %v481 = vunpack.c.l.b16 %v331
        %v482 = vunpack.c.l.b16 %v332
        %v483 = vunpack.c.l.b16 %v333
        %v484 = vunpack.c.l.b16 %v334
        %v485 = vunpack.c.l.b16 %v335
        %v486 = vunpack.c.l.b16 %v336
        %v487 = vunpack.c.l.b16 %v337
        %v488 = vunpack.c.l.b16 %v338
        %v489 = vunpack.c.l.b16 %v339
        %v490 = vunpack.c.l.b16 %v340
        %v491 = vunpack.c.l.b16 %v341
        %v492 = vunpack.c.l.b16 %v342
        %v493 = vunpack.c.l.b16 %v343
        %v494 = vunpack.c.l.b16 %v344
        %v495 = vunpack.c.l.b16 %v345
        %v496 = vunpack.c.l.b16 %v346
        %v497 = vunpack.c.l.b16 %v347
        %v498 = vunpack.c.l.b16 %v348
        %v499 = vunpack.c.l.b16 %v349
        %v500 = vunpack.c.l.b16 %v350
        %v501 = vunpack.c.l.b16 %v351
        %v502 = vunpack.c.l.b16 %v352
        %v503 = vunpack.c.l.b16 %v353
        %v504 = vunpack.c.l.b16 %v354
        %v505 = vunpack.c.l.b16 %v355
        %v506 = vunpack.c.l.b16 %v356
        %v507 = vunpack.c.l.b16 %v357
        %v508 = vunpack.c.l.b16 %v358
        %v509 = vunpack.c.l.b16 %v359
        %v510 = vunpack.c.l.b16 %v360
        %v511 = vunpack.c.l.b16 %v361
        %v512 = vunpack.c.l.b16 %v362
        %v513 = vunpack.c.l.b16 %v363
        %v514 = vunpack.c.l.b16 %v364
        %v515 = vunpack.c.l.b16 %v365
        %v516 = vunpack.c.l.b16 %v366
        %v517 = vunpack.c.l.b16 %v367
        %v518 = vunpack.c.l.b16 %v368
        %v519 = vunpack.c.l.b16 %v369
        %v520 = vunpack.c.l.b16 %v370
        %v521 = vunpack.c.l.b16 %v371
        %v522 = vunpack.c.l.b16 %v372
        %v523 = vunpack.c.l.b16 %v373
        %v524 = vunpack.c.l.b16 %v374
        %v525 = vunpack.c.l.b16 %v375
        %v526 = vunpack.c.l.b16 %v376
        %v527 = vpack.c.b16 %v480, %v479
        %v528 = vpack.c.b16 %v482, %v481
        %v529 = vpack.c.b16 %v484, %v483
        %v530 = vpack.c.b16 %v486, %v485
        %v531 = vpack.c.b16 %v488, %v487
        %v532 = vpack.c.b16 %v490, %v489
        %v533 = vpack.c.b16 %v492, %v491
        %v534 = vpack.c.b16 %v494, %v493
        %v535 = vpack.c.b16 %v496, %v495
        %v536 = vpack.c.b16 %v498, %v497
        %v537 = vpack.c.b16 %v500, %v499
        %v538 = vpack.c.b16 %v502, %v501
        %v539 = vpack.c.b16 %v504, %v503
        %v540 = vpack.c.b16 %v506, %v505
        %v541 = vpack.c.b16 %v508, %v507
        %v542 = vpack.c.b16 %v510, %v509
        %v543 = vpack.c.b16 %v512, %v511
        %v544 = vpack.c.b16 %v514, %v513
        %v545 = vpack.c.b16 %v516, %v515
        %v546 = vpack.c.b16 %v518, %v517
        %v547 = vpack.c.b16 %v520, %v519
        %v548 = vpack.c.b16 %v522, %v521
        %v549 = vpack.c.b16 %v524, %v523
        %v550 = vpack.c.b16 %v526, %v525
        %575 = vmatprep.subr.bf16.mxu0 0
        %576 = vmatpush1.bf16.msra.mxu0 %v534
        %577 = vmatprep.subr.bf16.mxu0 0
        %578 = vmatpush1.bf16.msra.mxu0 %v533
        %579 = vmatprep.subr.bf16.mxu0 0
        %580 = vmatpush1.bf16.msra.mxu0 %v532
        %581 = vmatprep.subr.bf16.mxu0 0
        %582 = vmatpush1.bf16.msra.mxu0 %v531
        %583 = vmatprep.subr.bf16.mxu0 0
        %584 = vmatpush1.bf16.msra.mxu0 %v530
        %585 = vmatprep.subr.bf16.mxu0 0
        %586 = vmatpush1.bf16.msra.mxu0 %v529
        %587 = vmatprep.subr.bf16.mxu0 0
        %588 = vmatpush1.bf16.msra.mxu0 %v528
        %589 = vmatprep.subr.bf16.mxu0 0
        %590 = vmatpush1.bf16.msra.mxu0 %v527
        %591 = vmatprep.subr.bf16.mxu0 0
        %592 = vmatpush2.bf16.msra.mxu0 %v542
        %593 = vmatprep.subr.bf16.mxu0 0
        %594 = vmatpush2.bf16.msra.mxu0 %v541
        %595 = vmatprep.subr.bf16.mxu0 0
        %596 = vmatpush2.bf16.msra.mxu0 %v540
        %597 = vmatprep.subr.bf16.mxu0 0
        %598 = vmatpush2.bf16.msra.mxu0 %v539
        %599 = vmatprep.subr.bf16.mxu0 0
        %600 = vmatpush2.bf16.msra.mxu0 %v538
        %601 = vmatprep.subr.bf16.mxu0 0
        %602 = vmatpush2.bf16.msra.mxu0 %v537
        %603 = vmatprep.subr.bf16.mxu0 0
        %604 = vmatpush2.bf16.msra.mxu0 %v536
        %605 = vmatprep.subr.bf16.mxu0 0
        %606 = vmatpush2.bf16.msra.mxu0 %v535
        %607 = vmatprep.mubr.bf16.mxu0 %v410
        %608 = vmatmul.mubr.bf16.gmra.mxu0 %v401
        %v609 = vpop.f32.mrf.mxu0
        %v610 = vadd.f32 %v382, %v609
        %v611 = vpop.f32.mrf.mxu0
        %v612 = vpop.f32.mrf.mxu0
        %v613 = vadd.f32 %v382, %v612
        %v614 = vpop.f32.mrf.mxu0
        %615 = vdwg.mxu0
        %616 = vmatprep.subr.bf16.mxu0 0
        %617 = vmatpush1.bf16.msra.mxu0 %v550
        %618 = vmatprep.subr.bf16.mxu0 0
        %619 = vmatpush1.bf16.msra.mxu0 %v549
        %620 = vmatprep.subr.bf16.mxu0 0
        %621 = vmatpush1.bf16.msra.mxu0 %v548
        %622 = vmatprep.subr.bf16.mxu0 0
        %623 = vmatpush1.bf16.msra.mxu0 %v547
        %624 = vmatprep.subr.bf16.mxu0 0
        %625 = vmatpush1.bf16.msra.mxu0 %v546
        %626 = vmatprep.subr.bf16.mxu0 0
        %627 = vmatpush1.bf16.msra.mxu0 %v545
        %628 = vmatprep.subr.bf16.mxu0 0
        %629 = vmatpush1.bf16.msra.mxu0 %v544
        %630 = vmatprep.subr.bf16.mxu0 0
        %631 = vmatpush1.bf16.msra.mxu0 %v543
        %632 = vmatprep.subr.bf16.mxu0 0
        %633 = vmatpush2.bf16.msra.mxu0 0
        %634 = vmatprep.subr.bf16.mxu0 0
        %635 = vmatpush2.bf16.msra.mxu0 0
        %636 = vmatprep.subr.bf16.mxu0 0
        %637 = vmatpush2.bf16.msra.mxu0 0
        %638 = vmatprep.subr.bf16.mxu0 0
        %639 = vmatpush2.bf16.msra.mxu0 0
        %640 = vmatprep.subr.bf16.mxu0 0
        %641 = vmatpush2.bf16.msra.mxu0 0
        %642 = vmatprep.subr.bf16.mxu0 0
        %643 = vmatpush2.bf16.msra.mxu0 0
        %644 = vmatprep.subr.bf16.mxu0 0
        %645 = vmatpush2.bf16.msra.mxu0 0
        %646 = vmatprep.subr.bf16.mxu0 0
        %647 = vmatpush2.bf16.msra.mxu0 0
        %648 = vmatprep.mubr.bf16.mxu0 0
        %649 = vmatmul.mubr.bf16.gmra.mxu0 %v427
        %v650 = vpop.f32.mrf.mxu0
        %v651 = vadd.f32 %v610, %v650
        %v652 = vpop.f32.mrf.mxu0
        %v653 = vpop.f32.mrf.mxu0
        %v654 = vadd.f32 %v613, %v653
        %v655 = vpop.f32.mrf.mxu0
        %656 = vdwg.mxu0
        %v657 = vmax.f32 %v651, 0.0
        %v658 = vmax.f32 %v654, 0.0
        %v659 = vpack.c.bf16 %v658, %v657
        %v660 = vld [vmem:[#allocation8] sm:$0xf]
        %v661 = vld [vmem:[#allocation8 + $0x4] sm:$0xf]
        %v662 = vld [vmem:[#allocation8 + $0x8] sm:$0xf]
        %v663 = vld [vmem:[#allocation8 + $0xc] sm:$0xf]
        %v664 = vld [vmem:[#allocation8 + $0x10] sm:$0xf]
        %v665 = vld [vmem:[#allocation8 + $0x14] sm:$0xf]
        %v666 = vld [vmem:[#allocation8 + $0x18] sm:$0xf]
        %v667 = vld [vmem:[#allocation8 + $0x1c] sm:$0xf]
        %v668 = vld [vmem:[#allocation8 + $0x20] sm:$0xf]
        %v669 = vld [vmem:[#allocation8 + $0x24] sm:$0xf]
        %v670 = vld [vmem:[#allocation8 + $0x28] sm:$0xf]
        %v671 = vld [vmem:[#allocation8 + $0x2c] sm:$0xf]
        %v672 = vld [vmem:[#allocation8 + $0x30] sm:$0xf]
        %v673 = vld [vmem:[#allocation8 + $0x34] sm:$0xf]
        %v674 = vld [vmem:[#allocation8 + $0x38] sm:$0xf]
        %v675 = vld [vmem:[#allocation8 + $0x3c] sm:$0xf]
        %v676 = vld [vmem:[%s4] sm:$0x1]
        %v678 = vlaneseq
        %v679 = vshrl.u32 %v678, 7
        %v680 = vsub.s32 0, %v679
        %v681 = vrot.slane %v676, %v680
        %v699 = vunpack.c.l.b16 %v660
        %v700 = vunpack.c.l.b16 %v661
        %v701 = vunpack.c.l.b16 %v662
        %v702 = vunpack.c.l.b16 %v663
        %v703 = vunpack.c.l.b16 %v664
        %v704 = vunpack.c.l.b16 %v665
        %v705 = vunpack.c.l.b16 %v666
        %v706 = vunpack.c.l.b16 %v667
        %v707 = vunpack.c.l.b16 %v668
        %v708 = vunpack.c.l.b16 %v669
        %v709 = vunpack.c.l.b16 %v670
        %v710 = vunpack.c.l.b16 %v671
        %v711 = vunpack.c.l.b16 %v672
        %v712 = vunpack.c.l.b16 %v673
        %v713 = vunpack.c.l.b16 %v674
        %v714 = vunpack.c.l.b16 %v675
        %v715 = vpack.c.b16 %v700, %v699
        %v716 = vpack.c.b16 %v702, %v701
        %v717 = vpack.c.b16 %v704, %v703
        %v718 = vpack.c.b16 %v706, %v705
        %v719 = vpack.c.b16 %v708, %v707
        %v720 = vpack.c.b16 %v710, %v709
        %v721 = vpack.c.b16 %v712, %v711
        %v722 = vpack.c.b16 %v714, %v713
        %731 = vmatprep.subr.bf16.mxu0 0
        %732 = vmatpush1.bf16.msra.mxu0 %v722
        %733 = vmatprep.subr.bf16.mxu0 0
        %734 = vmatpush1.bf16.msra.mxu0 %v721
        %735 = vmatprep.subr.bf16.mxu0 0
        %736 = vmatpush1.bf16.msra.mxu0 %v720
        %737 = vmatprep.subr.bf16.mxu0 0
        %738 = vmatpush1.bf16.msra.mxu0 %v719
        %739 = vmatprep.subr.bf16.mxu0 0
        %740 = vmatpush1.bf16.msra.mxu0 %v718
        %741 = vmatprep.subr.bf16.mxu0 0
        %742 = vmatpush1.bf16.msra.mxu0 %v717
        %743 = vmatprep.subr.bf16.mxu0 0
        %744 = vmatpush1.bf16.msra.mxu0 %v716
        %745 = vmatprep.subr.bf16.mxu0 0
        %746 = vmatpush1.bf16.msra.mxu0 %v715
        %747 = vmatprep.subr.bf16.mxu0 0
        %748 = vmatpush2.bf16.msra.mxu0 0
        %749 = vmatprep.subr.bf16.mxu0 0
        %750 = vmatpush2.bf16.msra.mxu0 0
        %751 = vmatprep.subr.bf16.mxu0 0
        %752 = vmatpush2.bf16.msra.mxu0 0
        %753 = vmatprep.subr.bf16.mxu0 0
        %754 = vmatpush2.bf16.msra.mxu0 0
        %755 = vmatprep.subr.bf16.mxu0 0
        %756 = vmatpush2.bf16.msra.mxu0 0
        %757 = vmatprep.subr.bf16.mxu0 0
        %758 = vmatpush2.bf16.msra.mxu0 0
        %759 = vmatprep.subr.bf16.mxu0 0
        %760 = vmatpush2.bf16.msra.mxu0 0
        %761 = vmatprep.subr.bf16.mxu0 0
        %762 = vmatpush2.bf16.msra.mxu0 0
        %763 = vmatprep.mubr.bf16.mxu0 0
        %764 = vmatmul.mubr.bf16.gmra.mxu0 %v659
        %v765 = vpop.f32.mrf.mxu0
        %v766 = vadd.f32 %v681, %v765
        %v767 = vpop.f32.mrf.mxu0
        %v768 = vpop.f32.mrf.mxu0
        %v769 = vadd.f32 %v681, %v768
        %v770 = vpop.f32.mrf.mxu0
        %771 = vdwg.mxu0
        %v772 = vadd.f32 %v766, %v277
        %v773 = vadd.f32 %v769, %v278
        %v774 = vmax.f32 %v772, 0.0
        %v775 = vmax.f32 %v773, 0.0
        %v776 = vpack.c.bf16 %v775, %v774
        %v778 = vunpack.c.l.b16 %v776
        %v779 = vunpack.c.h.b16 %v776
        %v780 = vpack.c.b16 %v778, %v778
        %v781 = vpack.c.b16 %v779, %v779
        %784 = vst [vmem:[#allocation2 + $0x8] sm:$0xf] %v780
        %785 = vst [vmem:[#allocation2 + $0xc] sm:$0xf] %v781
        %v786 = vld [vmem:[#allocation2 + $0x4] sm:$0xc]
        %v787 = vld [vmem:[#allocation2 + $0x8] sm:$0xf]
        %v788 = vld [vmem:[#allocation2 + $0xc] sm:$0x7]
        %v789 = vld [vmem:[#allocation2 + $0xc] sm:$0xf]
        %v790 = vld [vmem:[#allocation2 + $0x8] sm:$0xe]
        %v791 = vld [vmem:[#allocation2 + $0x10] sm:$0x3]
        %v795 = vunpack.c.l.b16 %v786
        %v796 = vunpack.c.l.b16 %v787
        %v797 = vunpack.c.l.b16 %v788
        %v798 = vpack.c.b16 %v796, %v795
        %v799 = vpack.c.b16 %v797, %v797
        %v801 = vunpack.c.l.b16 %v789
        %v802 = vpack.c.b16 %v801, %v796
        %v804 = vshrl.u32 %v802, 16
        %v806 = vrot.slane %v804, 5
        %v807 = vshll.u32 %v802, 16
        %v809 = vrot.slane %v807, 6
        %v810 = vor.u32 %v806, %v809
        %v813 = vunpack.c.l.b16 %v790
        %v814 = vunpack.c.l.b16 %v791
        %v815 = vpack.c.b16 %v801, %v813
        %v816 = vpack.c.b16 %v814, %v814
        %vm817 = vcmask 1040384
        %v818 = vrot.slane %v815, 7
        %v819 = vrot.slane %v816, 7
        %v820 = vsel %vm817, %v818, %v819
        %s821 = scalar_lea.vmem [#allocation6], 192
        %v822 = vld [vmem:[%s821] sm:$0xf]
        %v823 = vld [vmem:[%s821 + $0x4] sm:$0xf]
        %v824 = vld [vmem:[%s821 + $0x8] sm:$0xf]
        %v825 = vld [vmem:[%s821 + $0xc] sm:$0xf]
        %v826 = vld [vmem:[%s821 + $0x10] sm:$0xf]
        %v827 = vld [vmem:[%s821 + $0x14] sm:$0xf]
        %v828 = vld [vmem:[%s821 + $0x18] sm:$0xf]
        %v829 = vld [vmem:[%s821 + $0x1c] sm:$0xf]
        %v830 = vld [vmem:[%s821 + $0x20] sm:$0xf]
        %v831 = vld [vmem:[%s821 + $0x24] sm:$0xf]
        %v832 = vld [vmem:[%s821 + $0x28] sm:$0xf]
        %v833 = vld [vmem:[%s821 + $0x2c] sm:$0xf]
        %v834 = vld [vmem:[%s821 + $0x30] sm:$0xf]
        %v835 = vld [vmem:[%s821 + $0x34] sm:$0xf]
        %v836 = vld [vmem:[%s821 + $0x38] sm:$0xf]
        %v837 = vld [vmem:[%s821 + $0x3c] sm:$0xf]
        %v838 = vld [vmem:[%s821 + $0x40] sm:$0xf]
        %v839 = vld [vmem:[%s821 + $0x44] sm:$0xf]
        %v840 = vld [vmem:[%s821 + $0x48] sm:$0xf]
        %v841 = vld [vmem:[%s821 + $0x4c] sm:$0xf]
        %v842 = vld [vmem:[%s821 + $0x50] sm:$0xf]
        %v843 = vld [vmem:[%s821 + $0x54] sm:$0xf]
        %v844 = vld [vmem:[%s821 + $0x58] sm:$0xf]
        %v845 = vld [vmem:[%s821 + $0x5c] sm:$0xf]
        %v846 = vld [vmem:[%s821 + $0x60] sm:$0xf]
        %v847 = vld [vmem:[%s821 + $0x64] sm:$0xf]
        %v848 = vld [vmem:[%s821 + $0x68] sm:$0xf]
        %v849 = vld [vmem:[%s821 + $0x6c] sm:$0xf]
        %v850 = vld [vmem:[%s821 + $0x70] sm:$0xf]
        %v851 = vld [vmem:[%s821 + $0x74] sm:$0xf]
        %v852 = vld [vmem:[%s821 + $0x78] sm:$0xf]
        %v853 = vld [vmem:[%s821 + $0x7c] sm:$0xf]
        %v854 = vld [vmem:[%s821 + $0x80] sm:$0xf]
        %v855 = vld [vmem:[%s821 + $0x84] sm:$0xf]
        %v856 = vld [vmem:[%s821 + $0x88] sm:$0xf]
        %v857 = vld [vmem:[%s821 + $0x8c] sm:$0xf]
        %v858 = vld [vmem:[%s821 + $0x90] sm:$0xf]
        %v859 = vld [vmem:[%s821 + $0x94] sm:$0xf]
        %v860 = vld [vmem:[%s821 + $0x98] sm:$0xf]
        %v861 = vld [vmem:[%s821 + $0x9c] sm:$0xf]
        %v862 = vld [vmem:[%s821 + $0xa0] sm:$0xf]
        %v863 = vld [vmem:[%s821 + $0xa4] sm:$0xf]
        %v864 = vld [vmem:[%s821 + $0xa8] sm:$0xf]
        %v865 = vld [vmem:[%s821 + $0xac] sm:$0xf]
        %v866 = vld [vmem:[%s821 + $0xb0] sm:$0xf]
        %v867 = vld [vmem:[%s821 + $0xb4] sm:$0xf]
        %v868 = vld [vmem:[%s821 + $0xb8] sm:$0xf]
        %v869 = vld [vmem:[%s821 + $0xbc] sm:$0xf]
        %s870 = scalar_lea.vmem %s2, 1
        %v871 = vld [vmem:[%s870] sm:$0x1]
        %v873 = vlaneseq
        %v874 = vshrl.u32 %v873, 7
        %v875 = vsub.s32 0, %v874
        %v876 = vrot.slane %v871, %v875
        %vm878 = vsmask.f32 5376
        %v880 = vshrl.u32 %v798, 16
        %v882 = vrot.slane %v880, 2
        %v883 = vshll.u32 %v798, 16
        %v885 = vrot.slane %v883, 3
        %v886 = vor.u32 %v882, %v885
        %v888 = vshrl.u32 %v799, 16
        %v890 = vrot.slane %v888, 2
        %v891 = vshll.u32 %v799, 16
        %v893 = vrot.slane %v891, 3
        %v894 = vor.u32 %v890, %v893
        %v895 = vsel %vm878, %v886, %v894
        %v897 = vshrl.u32 %v810, 16
        %v899 = vrot.slane %v897, 2
        %v900 = vshll.u32 %v810, 16
        %v902 = vrot.slane %v900, 3
        %v903 = vor.u32 %v899, %v902
        %v904 = vsel %vm878, %v903, %v903
        %v906 = vshrl.u32 %v818, 16
        %v908 = vrot.slane %v906, 2
        %v909 = vshll.u32 %v818, 16
        %v911 = vrot.slane %v909, 3
        %v912 = vor.u32 %v908, %v911
        %v914 = vshrl.u32 %v820, 16
        %v916 = vrot.slane %v914, 2
        %v917 = vshll.u32 %v820, 16
        %v919 = vrot.slane %v917, 3
        %v920 = vor.u32 %v916, %v919
        %v921 = vsel %vm878, %v912, %v920
        %v973 = vunpack.c.l.b16 %v822
        %v974 = vunpack.c.l.b16 %v823
        %v975 = vunpack.c.l.b16 %v824
        %v976 = vunpack.c.l.b16 %v825
        %v977 = vunpack.c.l.b16 %v826
        %v978 = vunpack.c.l.b16 %v827
        %v979 = vunpack.c.l.b16 %v828
        %v980 = vunpack.c.l.b16 %v829
        %v981 = vunpack.c.l.b16 %v830
        %v982 = vunpack.c.l.b16 %v831
        %v983 = vunpack.c.l.b16 %v832
        %v984 = vunpack.c.l.b16 %v833
        %v985 = vunpack.c.l.b16 %v834
        %v986 = vunpack.c.l.b16 %v835
        %v987 = vunpack.c.l.b16 %v836
        %v988 = vunpack.c.l.b16 %v837
        %v989 = vunpack.c.l.b16 %v838
        %v990 = vunpack.c.l.b16 %v839
        %v991 = vunpack.c.l.b16 %v840
        %v992 = vunpack.c.l.b16 %v841
        %v993 = vunpack.c.l.b16 %v842
        %v994 = vunpack.c.l.b16 %v843
        %v995 = vunpack.c.l.b16 %v844
        %v996 = vunpack.c.l.b16 %v845
        %v997 = vunpack.c.l.b16 %v846
        %v998 = vunpack.c.l.b16 %v847
        %v999 = vunpack.c.l.b16 %v848
        %v1000 = vunpack.c.l.b16 %v849
        %v1001 = vunpack.c.l.b16 %v850
        %v1002 = vunpack.c.l.b16 %v851
        %v1003 = vunpack.c.l.b16 %v852
        %v1004 = vunpack.c.l.b16 %v853
        %v1005 = vunpack.c.l.b16 %v854
        %v1006 = vunpack.c.l.b16 %v855
        %v1007 = vunpack.c.l.b16 %v856
        %v1008 = vunpack.c.l.b16 %v857
        %v1009 = vunpack.c.l.b16 %v858
        %v1010 = vunpack.c.l.b16 %v859
        %v1011 = vunpack.c.l.b16 %v860
        %v1012 = vunpack.c.l.b16 %v861
        %v1013 = vunpack.c.l.b16 %v862
        %v1014 = vunpack.c.l.b16 %v863
        %v1015 = vunpack.c.l.b16 %v864
        %v1016 = vunpack.c.l.b16 %v865
        %v1017 = vunpack.c.l.b16 %v866
        %v1018 = vunpack.c.l.b16 %v867
        %v1019 = vunpack.c.l.b16 %v868
        %v1020 = vunpack.c.l.b16 %v869
        %v1021 = vpack.c.b16 %v974, %v973
        %v1022 = vpack.c.b16 %v976, %v975
        %v1023 = vpack.c.b16 %v978, %v977
        %v1024 = vpack.c.b16 %v980, %v979
        %v1025 = vpack.c.b16 %v982, %v981
        %v1026 = vpack.c.b16 %v984, %v983
        %v1027 = vpack.c.b16 %v986, %v985
        %v1028 = vpack.c.b16 %v988, %v987
        %v1029 = vpack.c.b16 %v990, %v989
        %v1030 = vpack.c.b16 %v992, %v991
        %v1031 = vpack.c.b16 %v994, %v993
        %v1032 = vpack.c.b16 %v996, %v995
        %v1033 = vpack.c.b16 %v998, %v997
        %v1034 = vpack.c.b16 %v1000, %v999
        %v1035 = vpack.c.b16 %v1002, %v1001
        %v1036 = vpack.c.b16 %v1004, %v1003
        %v1037 = vpack.c.b16 %v1006, %v1005
        %v1038 = vpack.c.b16 %v1008, %v1007
        %v1039 = vpack.c.b16 %v1010, %v1009
        %v1040 = vpack.c.b16 %v1012, %v1011
        %v1041 = vpack.c.b16 %v1014, %v1013
        %v1042 = vpack.c.b16 %v1016, %v1015
        %v1043 = vpack.c.b16 %v1018, %v1017
        %v1044 = vpack.c.b16 %v1020, %v1019
        %1069 = vmatprep.subr.bf16.mxu0 0
        %1070 = vmatpush1.bf16.msra.mxu0 %v1028
        %1071 = vmatprep.subr.bf16.mxu0 0
        %1072 = vmatpush1.bf16.msra.mxu0 %v1027
        %1073 = vmatprep.subr.bf16.mxu0 0
        %1074 = vmatpush1.bf16.msra.mxu0 %v1026
        %1075 = vmatprep.subr.bf16.mxu0 0
        %1076 = vmatpush1.bf16.msra.mxu0 %v1025
        %1077 = vmatprep.subr.bf16.mxu0 0
        %1078 = vmatpush1.bf16.msra.mxu0 %v1024
        %1079 = vmatprep.subr.bf16.mxu0 0
        %1080 = vmatpush1.bf16.msra.mxu0 %v1023
        %1081 = vmatprep.subr.bf16.mxu0 0
        %1082 = vmatpush1.bf16.msra.mxu0 %v1022
        %1083 = vmatprep.subr.bf16.mxu0 0
        %1084 = vmatpush1.bf16.msra.mxu0 %v1021
        %1085 = vmatprep.subr.bf16.mxu0 0
        %1086 = vmatpush2.bf16.msra.mxu0 %v1036
        %1087 = vmatprep.subr.bf16.mxu0 0
        %1088 = vmatpush2.bf16.msra.mxu0 %v1035
        %1089 = vmatprep.subr.bf16.mxu0 0
        %1090 = vmatpush2.bf16.msra.mxu0 %v1034
        %1091 = vmatprep.subr.bf16.mxu0 0
        %1092 = vmatpush2.bf16.msra.mxu0 %v1033
        %1093 = vmatprep.subr.bf16.mxu0 0
        %1094 = vmatpush2.bf16.msra.mxu0 %v1032
        %1095 = vmatprep.subr.bf16.mxu0 0
        %1096 = vmatpush2.bf16.msra.mxu0 %v1031
        %1097 = vmatprep.subr.bf16.mxu0 0
        %1098 = vmatpush2.bf16.msra.mxu0 %v1030
        %1099 = vmatprep.subr.bf16.mxu0 0
        %1100 = vmatpush2.bf16.msra.mxu0 %v1029
        %1101 = vmatprep.mubr.bf16.mxu0 %v904
        %1102 = vmatmul.mubr.bf16.gmra.mxu0 %v895
        %v1103 = vpop.f32.mrf.mxu0
        %v1104 = vadd.f32 %v876, %v1103
        %v1105 = vpop.f32.mrf.mxu0
        %v1106 = vpop.f32.mrf.mxu0
        %v1107 = vadd.f32 %v876, %v1106
        %v1108 = vpop.f32.mrf.mxu0
        %1109 = vdwg.mxu0
        %1110 = vmatprep.subr.bf16.mxu0 0
        %1111 = vmatpush1.bf16.msra.mxu0 %v1044
        %1112 = vmatprep.subr.bf16.mxu0 0
        %1113 = vmatpush1.bf16.msra.mxu0 %v1043
        %1114 = vmatprep.subr.bf16.mxu0 0
        %1115 = vmatpush1.bf16.msra.mxu0 %v1042
        %1116 = vmatprep.subr.bf16.mxu0 0
        %1117 = vmatpush1.bf16.msra.mxu0 %v1041
        %1118 = vmatprep.subr.bf16.mxu0 0
        %1119 = vmatpush1.bf16.msra.mxu0 %v1040
        %1120 = vmatprep.subr.bf16.mxu0 0
        %1121 = vmatpush1.bf16.msra.mxu0 %v1039
        %1122 = vmatprep.subr.bf16.mxu0 0
        %1123 = vmatpush1.bf16.msra.mxu0 %v1038
        %1124 = vmatprep.subr.bf16.mxu0 0
        %1125 = vmatpush1.bf16.msra.mxu0 %v1037
        %1126 = vmatprep.subr.bf16.mxu0 0
        %1127 = vmatpush2.bf16.msra.mxu0 0
        %1128 = vmatprep.subr.bf16.mxu0 0
        %1129 = vmatpush2.bf16.msra.mxu0 0
        %1130 = vmatprep.subr.bf16.mxu0 0
        %1131 = vmatpush2.bf16.msra.mxu0 0
        %1132 = vmatprep.subr.bf16.mxu0 0
        %1133 = vmatpush2.bf16.msra.mxu0 0
        %1134 = vmatprep.subr.bf16.mxu0 0
        %1135 = vmatpush2.bf16.msra.mxu0 0
        %1136 = vmatprep.subr.bf16.mxu0 0
        %1137 = vmatpush2.bf16.msra.mxu0 0
        %1138 = vmatprep.subr.bf16.mxu0 0
        %1139 = vmatpush2.bf16.msra.mxu0 0
        %1140 = vmatprep.subr.bf16.mxu0 0
        %1141 = vmatpush2.bf16.msra.mxu0 0
        %1142 = vmatprep.mubr.bf16.mxu0 0
        %1143 = vmatmul.mubr.bf16.gmra.mxu0 %v921
        %v1144 = vpop.f32.mrf.mxu0
        %v1145 = vadd.f32 %v1104, %v1144
        %v1146 = vpop.f32.mrf.mxu0
        %v1147 = vpop.f32.mrf.mxu0
        %v1148 = vadd.f32 %v1107, %v1147
        %v1149 = vpop.f32.mrf.mxu0
        %1150 = vdwg.mxu0
        %v1151 = vmax.f32 %v1145, 0.0
        %v1152 = vmax.f32 %v1148, 0.0
        %v1153 = vpack.c.bf16 %v1152, %v1151
        %s1154 = scalar_lea.vmem [#allocation8], 64
        %v1155 = vld [vmem:[%s1154] sm:$0xf]
        %v1156 = vld [vmem:[%s1154 + $0x4] sm:$0xf]
        %v1157 = vld [vmem:[%s1154 + $0x8] sm:$0xf]
        %v1158 = vld [vmem:[%s1154 + $0xc] sm:$0xf]
        %v1159 = vld [vmem:[%s1154 + $0x10] sm:$0xf]
        %v1160 = vld [vmem:[%s1154 + $0x14] sm:$0xf]
        %v1161 = vld [vmem:[%s1154 + $0x18] sm:$0xf]
        %v1162 = vld [vmem:[%s1154 + $0x1c] sm:$0xf]
        %v1163 = vld [vmem:[%s1154 + $0x20] sm:$0xf]
        %v1164 = vld [vmem:[%s1154 + $0x24] sm:$0xf]
        %v1165 = vld [vmem:[%s1154 + $0x28] sm:$0xf]
        %v1166 = vld [vmem:[%s1154 + $0x2c] sm:$0xf]
        %v1167 = vld [vmem:[%s1154 + $0x30] sm:$0xf]
        %v1168 = vld [vmem:[%s1154 + $0x34] sm:$0xf]
        %v1169 = vld [vmem:[%s1154 + $0x38] sm:$0xf]
        %v1170 = vld [vmem:[%s1154 + $0x3c] sm:$0xf]
        %s1171 = scalar_lea.vmem %s4, 1
        %v1172 = vld [vmem:[%s1171] sm:$0x1]
        %v1174 = vlaneseq
        %v1175 = vshrl.u32 %v1174, 7
        %v1176 = vsub.s32 0, %v1175
        %v1177 = vrot.slane %v1172, %v1176
        %v1195 = vunpack.c.l.b16 %v1155
        %v1196 = vunpack.c.l.b16 %v1156
        %v1197 = vunpack.c.l.b16 %v1157
        %v1198 = vunpack.c.l.b16 %v1158
        %v1199 = vunpack.c.l.b16 %v1159
        %v1200 = vunpack.c.l.b16 %v1160
        %v1201 = vunpack.c.l.b16 %v1161
        %v1202 = vunpack.c.l.b16 %v1162
        %v1203 = vunpack.c.l.b16 %v1163
        %v1204 = vunpack.c.l.b16 %v1164
        %v1205 = vunpack.c.l.b16 %v1165
        %v1206 = vunpack.c.l.b16 %v1166
        %v1207 = vunpack.c.l.b16 %v1167
        %v1208 = vunpack.c.l.b16 %v1168
        %v1209 = vunpack.c.l.b16 %v1169
        %v1210 = vunpack.c.l.b16 %v1170
        %v1211 = vpack.c.b16 %v1196, %v1195
        %v1212 = vpack.c.b16 %v1198, %v1197
        %v1213 = vpack.c.b16 %v1200, %v1199
        %v1214 = vpack.c.b16 %v1202, %v1201
        %v1215 = vpack.c.b16 %v1204, %v1203
        %v1216 = vpack.c.b16 %v1206, %v1205
        %v1217 = vpack.c.b16 %v1208, %v1207
        %v1218 = vpack.c.b16 %v1210, %v1209
        %1227 = vmatprep.subr.bf16.mxu0 0
        %1228 = vmatpush1.bf16.msra.mxu0 %v1218
        %1229 = vmatprep.subr.bf16.mxu0 0
        %1230 = vmatpush1.bf16.msra.mxu0 %v1217
        %1231 = vmatprep.subr.bf16.mxu0 0
        %1232 = vmatpush1.bf16.msra.mxu0 %v1216
        %1233 = vmatprep.subr.bf16.mxu0 0
        %1234 = vmatpush1.bf16.msra.mxu0 %v1215
        %1235 = vmatprep.subr.bf16.mxu0 0
        %1236 = vmatpush1.bf16.msra.mxu0 %v1214
        %1237 = vmatprep.subr.bf16.mxu0 0
        %1238 = vmatpush1.bf16.msra.mxu0 %v1213
        %1239 = vmatprep.subr.bf16.mxu0 0
        %1240 = vmatpush1.bf16.msra.mxu0 %v1212
        %1241 = vmatprep.subr.bf16.mxu0 0
        %1242 = vmatpush1.bf16.msra.mxu0 %v1211
        %1243 = vmatprep.subr.bf16.mxu0 0
        %1244 = vmatpush2.bf16.msra.mxu0 0
        %1245 = vmatprep.subr.bf16.mxu0 0
        %1246 = vmatpush2.bf16.msra.mxu0 0
        %1247 = vmatprep.subr.bf16.mxu0 0
        %1248 = vmatpush2.bf16.msra.mxu0 0
        %1249 = vmatprep.subr.bf16.mxu0 0
        %1250 = vmatpush2.bf16.msra.mxu0 0
        %1251 = vmatprep.subr.bf16.mxu0 0
        %1252 = vmatpush2.bf16.msra.mxu0 0
        %1253 = vmatprep.subr.bf16.mxu0 0
        %1254 = vmatpush2.bf16.msra.mxu0 0
        %1255 = vmatprep.subr.bf16.mxu0 0
        %1256 = vmatpush2.bf16.msra.mxu0 0
        %1257 = vmatprep.subr.bf16.mxu0 0
        %1258 = vmatpush2.bf16.msra.mxu0 0
        %1259 = vmatprep.mubr.bf16.mxu0 0
        %1260 = vmatmul.mubr.bf16.gmra.mxu0 %v1153
        %v1261 = vpop.f32.mrf.mxu0
        %v1262 = vadd.f32 %v1177, %v1261
        %v1263 = vpop.f32.mrf.mxu0
        %v1264 = vpop.f32.mrf.mxu0
        %v1265 = vadd.f32 %v1177, %v1264
        %v1266 = vpop.f32.mrf.mxu0
        %1267 = vdwg.mxu0
        %v1268 = vadd.f32 %v1262, %v772
        %v1269 = vadd.f32 %v1265, %v773
        %v1270 = vmax.f32 %v1268, 0.0
        %v1271 = vmax.f32 %v1269, 0.0
        %v1272 = vpack.c.bf16 %v1271, %v1270
        %v1274 = vunpack.c.l.b16 %v1272
        %v1275 = vunpack.c.h.b16 %v1272
        %v1276 = vpack.c.b16 %v1274, %v1274
        %v1277 = vpack.c.b16 %v1275, %v1275
        %1280 = vst [vmem:[#allocation2 + $0x8] sm:$0xf] %v1276
        %1281 = vst [vmem:[#allocation2 + $0xc] sm:$0xf] %v1277
        %v1282 = vld [vmem:[#allocation2 + $0x4] sm:$0x8]
        %v1283 = vld [vmem:[#allocation2 + $0x8] sm:$0xf]
        %v1284 = vld [vmem:[#allocation2 + $0xc] sm:$0xf]
        %v1285 = vld [vmem:[#allocation2 + $0x10] sm:$0x1]
        %v1289 = vunpack.c.l.b16 %v1282
        %v1290 = vunpack.c.l.b16 %v1283
        %v1291 = vunpack.c.l.b16 %v1284
        %v1292 = vpack.c.b16 %v1290, %v1289
        %v1293 = vpack.c.b16 %v1291, %v1291
        %v1294 = vpack.c.b16 %v1291, %v1290
        %v1296 = vshrl.u32 %v1294, 16
        %v1298 = vrot.slane %v1296, 4
        %v1299 = vshll.u32 %v1294, 16
        %v1301 = vrot.slane %v1299, 5
        %v1302 = vor.u32 %v1298, %v1301
        %v1304 = vunpack.c.l.b16 %v1285
        %v1305 = vpack.c.b16 %v1304, %v1304
        %v1306 = vrot.slane %v1294, 5
        %v1307 = vrot.slane %v1305, 5
        %v1308 = vsel %vm325, %v1306, %v1307
        %s1309 = scalar_lea.vmem [#allocation6], 384
        %v1310 = vld [vmem:[%s1309] sm:$0xf]
        %v1311 = vld [vmem:[%s1309 + $0x4] sm:$0xf]
        %v1312 = vld [vmem:[%s1309 + $0x8] sm:$0xf]
        %v1313 = vld [vmem:[%s1309 + $0xc] sm:$0xf]
        %v1314 = vld [vmem:[%s1309 + $0x10] sm:$0xf]
        %v1315 = vld [vmem:[%s1309 + $0x14] sm:$0xf]
        %v1316 = vld [vmem:[%s1309 + $0x18] sm:$0xf]
        %v1317 = vld [vmem:[%s1309 + $0x1c] sm:$0xf]
        %v1318 = vld [vmem:[%s1309 + $0x20] sm:$0xf]
        %v1319 = vld [vmem:[%s1309 + $0x24] sm:$0xf]
        %v1320 = vld [vmem:[%s1309 + $0x28] sm:$0xf]
        %v1321 = vld [vmem:[%s1309 + $0x2c] sm:$0xf]
        %v1322 = vld [vmem:[%s1309 + $0x30] sm:$0xf]
        %v1323 = vld [vmem:[%s1309 + $0x34] sm:$0xf]
        %v1324 = vld [vmem:[%s1309 + $0x38] sm:$0xf]
        %v1325 = vld [vmem:[%s1309 + $0x3c] sm:$0xf]
        %v1326 = vld [vmem:[%s1309 + $0x40] sm:$0xf]
        %v1327 = vld [vmem:[%s1309 + $0x44] sm:$0xf]
        %v1328 = vld [vmem:[%s1309 + $0x48] sm:$0xf]
        %v1329 = vld [vmem:[%s1309 + $0x4c] sm:$0xf]
        %v1330 = vld [vmem:[%s1309 + $0x50] sm:$0xf]
        %v1331 = vld [vmem:[%s1309 + $0x54] sm:$0xf]
        %v1332 = vld [vmem:[%s1309 + $0x58] sm:$0xf]
        %v1333 = vld [vmem:[%s1309 + $0x5c] sm:$0xf]
        %v1334 = vld [vmem:[%s1309 + $0x60] sm:$0xf]
        %v1335 = vld [vmem:[%s1309 + $0x64] sm:$0xf]
        %v1336 = vld [vmem:[%s1309 + $0x68] sm:$0xf]
        %v1337 = vld [vmem:[%s1309 + $0x6c] sm:$0xf]
        %v1338 = vld [vmem:[%s1309 + $0x70] sm:$0xf]
        %v1339 = vld [vmem:[%s1309 + $0x74] sm:$0xf]
        %v1340 = vld [vmem:[%s1309 + $0x78] sm:$0xf]
        %v1341 = vld [vmem:[%s1309 + $0x7c] sm:$0xf]
        %v1342 = vld [vmem:[%s1309 + $0x80] sm:$0xf]
        %v1343 = vld [vmem:[%s1309 + $0x84] sm:$0xf]
        %v1344 = vld [vmem:[%s1309 + $0x88] sm:$0xf]
        %v1345 = vld [vmem:[%s1309 + $0x8c] sm:$0xf]
        %v1346 = vld [vmem:[%s1309 + $0x90] sm:$0xf]
        %v1347 = vld [vmem:[%s1309 + $0x94] sm:$0xf]
        %v1348 = vld [vmem:[%s1309 + $0x98] sm:$0xf]
        %v1349 = vld [vmem:[%s1309 + $0x9c] sm:$0xf]
        %v1350 = vld [vmem:[%s1309 + $0xa0] sm:$0xf]
        %v1351 = vld [vmem:[%s1309 + $0xa4] sm:$0xf]
        %v1352 = vld [vmem:[%s1309 + $0xa8] sm:$0xf]
        %v1353 = vld [vmem:[%s1309 + $0xac] sm:$0xf]
        %v1354 = vld [vmem:[%s1309 + $0xb0] sm:$0xf]
        %v1355 = vld [vmem:[%s1309 + $0xb4] sm:$0xf]
        %v1356 = vld [vmem:[%s1309 + $0xb8] sm:$0xf]
        %v1357 = vld [vmem:[%s1309 + $0xbc] sm:$0xf]
        %s1358 = scalar_lea.vmem %s2, 2
        %v1359 = vld [vmem:[%s1358] sm:$0x1]
        %v1361 = vlaneseq
        %v1362 = vshrl.u32 %v1361, 7
        %v1363 = vsub.s32 0, %v1362
        %v1364 = vrot.slane %v1359, %v1363
        %v1367 = vshrl.u32 %v1292, 16
        %v1369 = vrot.slane %v1367, 3
        %v1370 = vshll.u32 %v1292, 16
        %v1372 = vrot.slane %v1370, 4
        %v1373 = vor.u32 %v1369, %v1372
        %v1375 = vshrl.u32 %v1293, 16
        %v1377 = vrot.slane %v1375, 3
        %v1378 = vshll.u32 %v1293, 16
        %v1380 = vrot.slane %v1378, 4
        %v1381 = vor.u32 %v1377, %v1380
        %v1382 = vsel %vm384, %v1373, %v1381
        %v1384 = vshrl.u32 %v1302, 16
        %v1386 = vrot.slane %v1384, 3
        %v1387 = vshll.u32 %v1302, 16
        %v1389 = vrot.slane %v1387, 4
        %v1390 = vor.u32 %v1386, %v1389
        %v1391 = vsel %vm384, %v1390, %v1390
        %v1393 = vshrl.u32 %v1306, 16
        %v1395 = vrot.slane %v1393, 3
        %v1396 = vshll.u32 %v1306, 16
        %v1398 = vrot.slane %v1396, 4
        %v1399 = vor.u32 %v1395, %v1398
        %v1401 = vshrl.u32 %v1308, 16
        %v1403 = vrot.slane %v1401, 3
        %v1404 = vshll.u32 %v1308, 16
        %v1406 = vrot.slane %v1404, 4
        %v1407 = vor.u32 %v1403, %v1406
        %v1408 = vsel %vm384, %v1399, %v1407
        %v1460 = vunpack.c.l.b16 %v1310
        %v1461 = vunpack.c.l.b16 %v1311
        %v1462 = vunpack.c.l.b16 %v1312
        %v1463 = vunpack.c.l.b16 %v1313
        %v1464 = vunpack.c.l.b16 %v1314
        %v1465 = vunpack.c.l.b16 %v1315
        %v1466 = vunpack.c.l.b16 %v1316
        %v1467 = vunpack.c.l.b16 %v1317
        %v1468 = vunpack.c.l.b16 %v1318
        %v1469 = vunpack.c.l.b16 %v1319
        %v1470 = vunpack.c.l.b16 %v1320
        %v1471 = vunpack.c.l.b16 %v1321
        %v1472 = vunpack.c.l.b16 %v1322
        %v1473 = vunpack.c.l.b16 %v1323
        %v1474 = vunpack.c.l.b16 %v1324
        %v1475 = vunpack.c.l.b16 %v1325
        %v1476 = vunpack.c.l.b16 %v1326
        %v1477 = vunpack.c.l.b16 %v1327
        %v1478 = vunpack.c.l.b16 %v1328
        %v1479 = vunpack.c.l.b16 %v1329
        %v1480 = vunpack.c.l.b16 %v1330
        %v1481 = vunpack.c.l.b16 %v1331
        %v1482 = vunpack.c.l.b16 %v1332
        %v1483 = vunpack.c.l.b16 %v1333
        %v1484 = vunpack.c.l.b16 %v1334
        %v1485 = vunpack.c.l.b16 %v1335
        %v1486 = vunpack.c.l.b16 %v1336
        %v1487 = vunpack.c.l.b16 %v1337
        %v1488 = vunpack.c.l.b16 %v1338
        %v1489 = vunpack.c.l.b16 %v1339
        %v1490 = vunpack.c.l.b16 %v1340
        %v1491 = vunpack.c.l.b16 %v1341
        %v1492 = vunpack.c.l.b16 %v1342
        %v1493 = vunpack.c.l.b16 %v1343
        %v1494 = vunpack.c.l.b16 %v1344
        %v1495 = vunpack.c.l.b16 %v1345
        %v1496 = vunpack.c.l.b16 %v1346
        %v1497 = vunpack.c.l.b16 %v1347
        %v1498 = vunpack.c.l.b16 %v1348
        %v1499 = vunpack.c.l.b16 %v1349
        %v1500 = vunpack.c.l.b16 %v1350
        %v1501 = vunpack.c.l.b16 %v1351
        %v1502 = vunpack.c.l.b16 %v1352
        %v1503 = vunpack.c.l.b16 %v1353
        %v1504 = vunpack.c.l.b16 %v1354
        %v1505 = vunpack.c.l.b16 %v1355
        %v1506 = vunpack.c.l.b16 %v1356
        %v1507 = vunpack.c.l.b16 %v1357
        %v1508 = vpack.c.b16 %v1461, %v1460
        %v1509 = vpack.c.b16 %v1463, %v1462
        %v1510 = vpack.c.b16 %v1465, %v1464
        %v1511 = vpack.c.b16 %v1467, %v1466
        %v1512 = vpack.c.b16 %v1469, %v1468
        %v1513 = vpack.c.b16 %v1471, %v1470
        %v1514 = vpack.c.b16 %v1473, %v1472
        %v1515 = vpack.c.b16 %v1475, %v1474
        %v1516 = vpack.c.b16 %v1477, %v1476
        %v1517 = vpack.c.b16 %v1479, %v1478
        %v1518 = vpack.c.b16 %v1481, %v1480
        %v1519 = vpack.c.b16 %v1483, %v1482
        %v1520 = vpack.c.b16 %v1485, %v1484
        %v1521 = vpack.c.b16 %v1487, %v1486
        %v1522 = vpack.c.b16 %v1489, %v1488
        %v1523 = vpack.c.b16 %v1491, %v1490
        %v1524 = vpack.c.b16 %v1493, %v1492
        %v1525 = vpack.c.b16 %v1495, %v1494
        %v1526 = vpack.c.b16 %v1497, %v1496
        %v1527 = vpack.c.b16 %v1499, %v1498
        %v1528 = vpack.c.b16 %v1501, %v1500
        %v1529 = vpack.c.b16 %v1503, %v1502
        %v1530 = vpack.c.b16 %v1505, %v1504
        %v1531 = vpack.c.b16 %v1507, %v1506
        %1556 = vmatprep.subr.bf16.mxu0 0
        %1557 = vmatpush1.bf16.msra.mxu0 %v1515
        %1558 = vmatprep.subr.bf16.mxu0 0
        %1559 = vmatpush1.bf16.msra.mxu0 %v1514
        %1560 = vmatprep.subr.bf16.mxu0 0
        %1561 = vmatpush1.bf16.msra.mxu0 %v1513
        %1562 = vmatprep.subr.bf16.mxu0 0
        %1563 = vmatpush1.bf16.msra.mxu0 %v1512
        %1564 = vmatprep.subr.bf16.mxu0 0
        %1565 = vmatpush1.bf16.msra.mxu0 %v1511
        %1566 = vmatprep.subr.bf16.mxu0 0
        %1567 = vmatpush1.bf16.msra.mxu0 %v1510
        %1568 = vmatprep.subr.bf16.mxu0 0
        %1569 = vmatpush1.bf16.msra.mxu0 %v1509
        %1570 = vmatprep.subr.bf16.mxu0 0
        %1571 = vmatpush1.bf16.msra.mxu0 %v1508
        %1572 = vmatprep.subr.bf16.mxu0 0
        %1573 = vmatpush2.bf16.msra.mxu0 %v1523
        %1574 = vmatprep.subr.bf16.mxu0 0
        %1575 = vmatpush2.bf16.msra.mxu0 %v1522
        %1576 = vmatprep.subr.bf16.mxu0 0
        %1577 = vmatpush2.bf16.msra.mxu0 %v1521
        %1578 = vmatprep.subr.bf16.mxu0 0
        %1579 = vmatpush2.bf16.msra.mxu0 %v1520
        %1580 = vmatprep.subr.bf16.mxu0 0
        %1581 = vmatpush2.bf16.msra.mxu0 %v1519
        %1582 = vmatprep.subr.bf16.mxu0 0
        %1583 = vmatpush2.bf16.msra.mxu0 %v1518
        %1584 = vmatprep.subr.bf16.mxu0 0
        %1585 = vmatpush2.bf16.msra.mxu0 %v1517
        %1586 = vmatprep.subr.bf16.mxu0 0
        %1587 = vmatpush2.bf16.msra.mxu0 %v1516
        %1588 = vmatprep.mubr.bf16.mxu0 %v1391
        %1589 = vmatmul.mubr.bf16.gmra.mxu0 %v1382
        %v1590 = vpop.f32.mrf.mxu0
        %v1591 = vadd.f32 %v1364, %v1590
        %v1592 = vpop.f32.mrf.mxu0
        %v1593 = vpop.f32.mrf.mxu0
        %v1594 = vadd.f32 %v1364, %v1593
        %v1595 = vpop.f32.mrf.mxu0
        %1596 = vdwg.mxu0
        %1597 = vmatprep.subr.bf16.mxu0 0
        %1598 = vmatpush1.bf16.msra.mxu0 %v1531
        %1599 = vmatprep.subr.bf16.mxu0 0
        %1600 = vmatpush1.bf16.msra.mxu0 %v1530
        %1601 = vmatprep.subr.bf16.mxu0 0
        %1602 = vmatpush1.bf16.msra.mxu0 %v1529
        %1603 = vmatprep.subr.bf16.mxu0 0
        %1604 = vmatpush1.bf16.msra.mxu0 %v1528
        %1605 = vmatprep.subr.bf16.mxu0 0
        %1606 = vmatpush1.bf16.msra.mxu0 %v1527
        %1607 = vmatprep.subr.bf16.mxu0 0
        %1608 = vmatpush1.bf16.msra.mxu0 %v1526
        %1609 = vmatprep.subr.bf16.mxu0 0
        %1610 = vmatpush1.bf16.msra.mxu0 %v1525
        %1611 = vmatprep.subr.bf16.mxu0 0
        %1612 = vmatpush1.bf16.msra.mxu0 %v1524
        %1613 = vmatprep.subr.bf16.mxu0 0
        %1614 = vmatpush2.bf16.msra.mxu0 0
        %1615 = vmatprep.subr.bf16.mxu0 0
        %1616 = vmatpush2.bf16.msra.mxu0 0
        %1617 = vmatprep.subr.bf16.mxu0 0
        %1618 = vmatpush2.bf16.msra.mxu0 0
        %1619 = vmatprep.subr.bf16.mxu0 0
        %1620 = vmatpush2.bf16.msra.mxu0 0
        %1621 = vmatprep.subr.bf16.mxu0 0
        %1622 = vmatpush2.bf16.msra.mxu0 0
        %1623 = vmatprep.subr.bf16.mxu0 0
        %1624 = vmatpush2.bf16.msra.mxu0 0
        %1625 = vmatprep.subr.bf16.mxu0 0
        %1626 = vmatpush2.bf16.msra.mxu0 0
        %1627 = vmatprep.subr.bf16.mxu0 0
        %1628 = vmatpush2.bf16.msra.mxu0 0
        %1629 = vmatprep.mubr.bf16.mxu0 0
        %1630 = vmatmul.mubr.bf16.gmra.mxu0 %v1408
        %v1631 = vpop.f32.mrf.mxu0
        %v1632 = vadd.f32 %v1591, %v1631
        %v1633 = vpop.f32.mrf.mxu0
        %v1634 = vpop.f32.mrf.mxu0
        %v1635 = vadd.f32 %v1594, %v1634
        %v1636 = vpop.f32.mrf.mxu0
        %1637 = vdwg.mxu0
        %v1638 = vmax.f32 %v1632, 0.0
        %v1639 = vmax.f32 %v1635, 0.0
        %v1640 = vpack.c.bf16 %v1639, %v1638
        %s1641 = scalar_lea.vmem [#allocation8], 128
        %v1642 = vld [vmem:[%s1641] sm:$0xf]
        %v1643 = vld [vmem:[%s1641 + $0x4] sm:$0xf]
        %v1644 = vld [vmem:[%s1641 + $0x8] sm:$0xf]
        %v1645 = vld [vmem:[%s1641 + $0xc] sm:$0xf]
        %v1646 = vld [vmem:[%s1641 + $0x10] sm:$0xf]
        %v1647 = vld [vmem:[%s1641 + $0x14] sm:$0xf]
        %v1648 = vld [vmem:[%s1641 + $0x18] sm:$0xf]
        %v1649 = vld [vmem:[%s1641 + $0x1c] sm:$0xf]
        %v1650 = vld [vmem:[%s1641 + $0x20] sm:$0xf]
        %v1651 = vld [vmem:[%s1641 + $0x24] sm:$0xf]
        %v1652 = vld [vmem:[%s1641 + $0x28] sm:$0xf]
        %v1653 = vld [vmem:[%s1641 + $0x2c] sm:$0xf]
        %v1654 = vld [vmem:[%s1641 + $0x30] sm:$0xf]
        %v1655 = vld [vmem:[%s1641 + $0x34] sm:$0xf]
        %v1656 = vld [vmem:[%s1641 + $0x38] sm:$0xf]
        %v1657 = vld [vmem:[%s1641 + $0x3c] sm:$0xf]
        %s1658 = scalar_lea.vmem %s4, 2
        %v1659 = vld [vmem:[%s1658] sm:$0x1]
        %v1661 = vlaneseq
        %v1662 = vshrl.u32 %v1661, 7
        %v1663 = vsub.s32 0, %v1662
        %v1664 = vrot.slane %v1659, %v1663
        %v1682 = vunpack.c.l.b16 %v1642
        %v1683 = vunpack.c.l.b16 %v1643
        %v1684 = vunpack.c.l.b16 %v1644
        %v1685 = vunpack.c.l.b16 %v1645
        %v1686 = vunpack.c.l.b16 %v1646
        %v1687 = vunpack.c.l.b16 %v1647
        %v1688 = vunpack.c.l.b16 %v1648
        %v1689 = vunpack.c.l.b16 %v1649
        %v1690 = vunpack.c.l.b16 %v1650
        %v1691 = vunpack.c.l.b16 %v1651
        %v1692 = vunpack.c.l.b16 %v1652
        %v1693 = vunpack.c.l.b16 %v1653
        %v1694 = vunpack.c.l.b16 %v1654
        %v1695 = vunpack.c.l.b16 %v1655
        %v1696 = vunpack.c.l.b16 %v1656
        %v1697 = vunpack.c.l.b16 %v1657
        %v1698 = vpack.c.b16 %v1683, %v1682
        %v1699 = vpack.c.b16 %v1685, %v1684
        %v1700 = vpack.c.b16 %v1687, %v1686
        %v1701 = vpack.c.b16 %v1689, %v1688
        %v1702 = vpack.c.b16 %v1691, %v1690
        %v1703 = vpack.c.b16 %v1693, %v1692
        %v1704 = vpack.c.b16 %v1695, %v1694
        %v1705 = vpack.c.b16 %v1697, %v1696
        %1714 = vmatprep.subr.bf16.mxu0 0
        %1715 = vmatpush1.bf16.msra.mxu0 %v1705
        %1716 = vmatprep.subr.bf16.mxu0 0
        %1717 = vmatpush1.bf16.msra.mxu0 %v1704
        %1718 = vmatprep.subr.bf16.mxu0 0
        %1719 = vmatpush1.bf16.msra.mxu0 %v1703
        %1720 = vmatprep.subr.bf16.mxu0 0
        %1721 = vmatpush1.bf16.msra.mxu0 %v1702
        %1722 = vmatprep.subr.bf16.mxu0 0
        %1723 = vmatpush1.bf16.msra.mxu0 %v1701
        %1724 = vmatprep.subr.bf16.mxu0 0
        %1725 = vmatpush1.bf16.msra.mxu0 %v1700
        %1726 = vmatprep.subr.bf16.mxu0 0
        %1727 = vmatpush1.bf16.msra.mxu0 %v1699
        %1728 = vmatprep.subr.bf16.mxu0 0
        %1729 = vmatpush1.bf16.msra.mxu0 %v1698
        %1730 = vmatprep.subr.bf16.mxu0 0
        %1731 = vmatpush2.bf16.msra.mxu0 0
        %1732 = vmatprep.subr.bf16.mxu0 0
        %1733 = vmatpush2.bf16.msra.mxu0 0
        %1734 = vmatprep.subr.bf16.mxu0 0
        %1735 = vmatpush2.bf16.msra.mxu0 0
        %1736 = vmatprep.subr.bf16.mxu0 0
        %1737 = vmatpush2.bf16.msra.mxu0 0
        %1738 = vmatprep.subr.bf16.mxu0 0
        %1739 = vmatpush2.bf16.msra.mxu0 0
        %1740 = vmatprep.subr.bf16.mxu0 0
        %1741 = vmatpush2.bf16.msra.mxu0 0
        %1742 = vmatprep.subr.bf16.mxu0 0
        %1743 = vmatpush2.bf16.msra.mxu0 0
        %1744 = vmatprep.subr.bf16.mxu0 0
        %1745 = vmatpush2.bf16.msra.mxu0 0
        %1746 = vmatprep.mubr.bf16.mxu0 0
        %1747 = vmatmul.mubr.bf16.gmra.mxu0 %v1640
        %v1748 = vpop.f32.mrf.mxu0
        %v1749 = vadd.f32 %v1664, %v1748
        %v1750 = vpop.f32.mrf.mxu0
        %v1751 = vpop.f32.mrf.mxu0
        %v1752 = vadd.f32 %v1664, %v1751
        %v1753 = vpop.f32.mrf.mxu0
        %1754 = vdwg.mxu0
        %v1755 = vadd.f32 %v1749, %v1268
        %v1756 = vadd.f32 %v1752, %v1269
        %1757 = vst [vmem:[%s271] sm:$0xff] %v1755
        %1758 = vst [vmem:[%s271 + $0x8] sm:$0xff] %v1756
        %s1759 = sand.u32 %s141, 1
        %s1760 = scalar_lea.sflag [#allocation5], %s1759
        %s1761 = sand.u32 %s141, 1
        %s1762 = smul.addr %s1761, 16
        %s1763 = scalar_lea.vmem [#allocation9], %s1762
        // Predicated region
        $region53: #{tpu_custom_call.1} parent=39 // pred_check
          %p1764 = pneg %p151
        $region54: #{tpu_custom_call.1} parent=39 // pred_check_branch
          %1766 = sbr.rel (%p1764) target = $region56
        $region55: #{tpu_custom_call.1} parent=39 // pred_region
          %s1768 = ssub.s32 256, 256
          %1769 = vsyncadd %s1760, %s1768
          %s1770 = smul.addr %s23, 2
          %s1771 = smul.addr %s1770, 128
          %s1772 = scalar_lea.hbm %s5, %s1771
          %s1773 = sshll.u32 %s1763, 4
          %s1774 = int_to_ptr.vmem [resolvable:$true] %s1773
          %1779 = dma.vmem_to_hbm [thread:$0]  %s1774, 256, %s1772, %s1760, 128, 128, 8
        $region56: #{tpu_custom_call.1} parent=39 // pred_fallthru
          _
      $region40: #{tpu_custom_call.1} parent=5 // pred_fallthru
        _
      %p1780 = scmp.le.s32.totalorder 2, %s18
      // Predicated region
      $region57: #{tpu_custom_call.1} parent=5 // pred_check
        %p1781 = pneg %p1780
      $region58: #{tpu_custom_call.1} parent=5 // pred_check_branch
        %1783 = sbr.rel (%p1781) target = $region60
      $region59: #{tpu_custom_call.1} parent=5 // pred_region
        %s1784 = ssub.s32 %s18, 2
        // Predicated region
        $region61: #{tpu_custom_call.1} parent=59 // pred_check
          %p1785 = pneg %p157
        $region62: #{tpu_custom_call.1} parent=59 // pred_check_branch
          %1787 = sbr.rel (%p1785) target = $region64
        $region63: #{tpu_custom_call.1} parent=59 // pred_region
          %s1788 = sand.u32 %s142, 1
          %s1789 = scalar_lea.sflag [#allocation5], %s1788
          %s1790 = sand.u32 %s142, 1
          %s1791 = smul.addr %s1790, 16
          %s1792 = scalar_lea.vmem [#allocation9], %s1791
          %1793 = dma.done %s1789, 256
        $region64: #{tpu_custom_call.1} parent=59 // pred_fallthru
          _
      $region60: #{tpu_custom_call.1} parent=5 // pred_fallthru
        _
    $region6: #{tpu_custom_call.1} parent=1 // loop_footer
      %s22 = sadd.s32 1, %s18
    $region7: #{tpu_custom_call.1} parent=1 // loop_footer_branch
      %17 = sbr.rel target = $region3
    $region8: #{tpu_custom_call.1} parent=1 // loop_exit
      _
    %1794 = vsyncpa [#allocation4], 1
    %s1795 = scalar_lea.sflag [#allocation4], 1
    %1796 = vsyncpa %s1795, 1
    %1797 = vsyncpa [#allocation7], 1
    %1798 = vsyncpa [#allocation5], 1
    %s1799 = scalar_lea.sflag [#allocation5], 1
    %1800 = vsyncpa %s1799, 1

// kernel: tpu_custom_call.1
$region0: #{tpu_custom_call.1}
  #allocation0 [shape = 'u32[]', space=smem, size = 0x4, offset = 0x4, fixed_abs, tag = 'smem constant byte address 0x4 - core index']
  #allocation1 [shape = 'u32[144,128]{1,0:T(1,128)}', space=vmem, size = 0x12000, scoped, tag = 'internal scratch']
  #allocation2 [shape = 'bf16[48,128]{1,0:T(8,128)(2,1)}', space=vmem, size = 0x3000, scoped, tag = 'scratch operand']
  %s0 = inlined_call_operand.hbm [shape: f32[2,16,128], index: 0, kind: input, shape index: {}]
  %s1 = inlined_call_operand.hbm [shape: bf16[3,384,128], index: 1, kind: input, shape index: {}]
  %s2 = inlined_call_operand.vmem [shape: f32[3,1,128], index: 2, kind: input, shape index: {}]
  %s3 = inlined_call_operand.hbm [shape: bf16[3,128,128], index: 3, kind: input, shape index: {}]
  %s4 = inlined_call_operand.vmem [shape: f32[3,1,128], index: 4, kind: input, shape index: {}]
  %s5 = inlined_call_operand.hbm [shape: f32[2,16,128], index: 5, kind: output, shape index: {}]
  %s6 = sld [smem:[#allocation0]]
  $region65: #{tpu_custom_call.1} parent=0
    _
  %s8 = ssub.s32 1, %s6
  %s9 = scalar_select 0, %s8, %s6
  $region1: #{tpu_custom_call.1} parent=0
    #allocation3 [shape = 'u8[16384]{0}', space=vmem, size = 0x4000, scoped, tag = 'input window, operand 0']
    #allocation4 [shape = 's32[2]{0}', space=sflag, size = 0x8, scoped, tag = 'scoped memory for tpu_custom_call.1']
    #allocation5 [shape = 's32[2]{0}', space=sflag, size = 0x8, scoped, tag = 'scoped memory for tpu_custom_call.1']
    #allocation6 [shape = 'u8[294912]{0}', space=vmem, size = 0x48000, scoped, tag = 'input window, operand 1, single buffered']
    #allocation7 [shape = 's32[1]{0}', space=sflag, size = 0x4, scoped, tag = 'scoped memory for tpu_custom_call.1']
    #allocation8 [shape = 'u8[98304]{0}', space=vmem, size = 0x18000, scoped, tag = 'input window, operand 3, single buffered']
    #allocation9 [shape = 'u8[16384]{0}', space=vmem, size = 0x4000, scoped, tag = 'output window, operand 0']
    %10 = vsyncpa [#allocation4], 0
    %s11 = scalar_lea.sflag [#allocation4], 1
    %12 = vsyncpa %s11, 0
    %13 = vsyncpa [#allocation7], 0
    %14 = vsyncpa [#allocation5], 0
    %s15 = scalar_lea.sflag [#allocation5], 1
    %16 = vsyncpa %s15, 0
    loop: start=0, step=1, limit=4
    $region2: #{tpu_custom_call.1} parent=1 // loop_pre_header
      _
    $region3: #{tpu_custom_call.1} parent=1 // loop_header
      %s18 = sphi 0, %s22
      %p19 = scmp.ge.s32.totalorder %s18, 4
      %s28 = sphi 0, %s30
      %s31 = sphi 0, %s28
      %s32 = sphi 0, %s31
      %s48 = sphi 0, %s32
      %s52 = sphi 0, %s52
      %s54 = sphi 0, %s52
      %s55 = sphi 0, %s54
      %s69 = sphi 0, %s55
      %s73 = sphi 0, %s73
      %s75 = sphi 0, %s73
      %s76 = sphi 0, %s75
      %s90 = sphi 0, %s76
      %s94 = sphi 0, %s94
      %s96 = sphi 0, %s94
      %s97 = sphi 0, %s96
      %s111 = sphi 0, %s97
      %s115 = sphi 0, %s115
      %s117 = sphi 0, %s115
      %s118 = sphi 0, %s117
      %s132 = sphi 0, %s118
      %s138 = sphi 0, %s140
      %s141 = sphi 0, %s138
      %s142 = sphi 0, %s141
      %s158 = sphi 0, %s142
    $region4: #{tpu_custom_call.1} parent=1 // loop_header_branch
      %21 = sbr.rel (%p19) target = $region8
    $region5: #{tpu_custom_call.1} parent=1 // loop_body
      %s23 = ssub.s32 %s18, 1
      %s24 = ssub.s32 %s18, 2
      %s25 = sadd.s32 %s18, 1
      %s26 = ssub.s32 %s18, %s25
      %p27 = scmp.eq.s32.totalorder %s26, 0
      %s29 = sadd.s32 %s28, 1
      %s30 = scalar_select %p27, %s28, %s29
      %p33 = pneg %p27
      %p34 = scmp.eq.s32.totalorder %s18, 1
      %p35 = por %p33, %p34
      %p36 = scmp.ne.s32.totalorder %s28, %s31
      %p37 = scmp.eq.s32.totalorder %s18, 0
      %p38 = por %p36, %p37
      %p39 = scmp.ne.s32.totalorder %s28, %s31
      %p40 = scmp.eq.s32.totalorder %s23, 1
      %p41 = por %p39, %p40
      %p42 = scmp.ne.s32.totalorder %s31, %s32
      %p43 = scmp.eq.s32.totalorder %s23, 0
      %p44 = por %p42, %p43
      %p45 = scmp.ne.s32.totalorder %s31, %s32
      %p46 = scmp.eq.s32.totalorder %s24, 1
      %p47 = por %p45, %p46
      %p49 = scmp.ne.s32.totalorder %s32, %s48
      %p50 = scmp.eq.s32.totalorder %s24, 0
      %p51 = por %p49, %p50
      %s53 = sadd.s32 %s52, 1
      %p56 = scmp.eq.s32.totalorder %s18, 1
      %p57 = scmp.ne.s32.totalorder %s52, %s54
      %p58 = scmp.eq.s32.totalorder %s18, 0
      %p59 = por %p57, %p58
      %p60 = scmp.ne.s32.totalorder %s52, %s54
      %p61 = scmp.eq.s32.totalorder %s23, 1
      %p62 = por %p60, %p61
      %p63 = scmp.ne.s32.totalorder %s54, %s55
      %p64 = scmp.eq.s32.totalorder %s23, 0
      %p65 = por %p63, %p64
      %p66 = scmp.ne.s32.totalorder %s54, %s55
      %p67 = scmp.eq.s32.totalorder %s24, 1
      %p68 = por %p66, %p67
      %p70 = scmp.ne.s32.totalorder %s55, %s69
      %p71 = scmp.eq.s32.totalorder %s24, 0
      %p72 = por %p70, %p71
      %s74 = sadd.s32 %s73, 1
      %p77 = scmp.eq.s32.totalorder %s18, 1
      %p78 = scmp.ne.s32.totalorder %s73, %s75
      %p79 = scmp.eq.s32.totalorder %s18, 0
      %p80 = por %p78, %p79
      %p81 = scmp.ne.s32.totalorder %s73, %s75
      %p82 = scmp.eq.s32.totalorder %s23, 1
      %p83 = por %p81, %p82
      %p84 = scmp.ne.s32.totalorder %s75, %s76
      %p85 = scmp.eq.s32.totalorder %s23, 0
      %p86 = por %p84, %p85
      %p87 = scmp.ne.s32.totalorder %s75, %s76
      %p88 = scmp.eq.s32.totalorder %s24, 1
      %p89 = por %p87, %p88
      %p91 = scmp.ne.s32.totalorder %s76, %s90
      %p92 = scmp.eq.s32.totalorder %s24, 0
      %p93 = por %p91, %p92
      %s95 = sadd.s32 %s94, 1
      %p98 = scmp.eq.s32.totalorder %s18, 1
      %p99 = scmp.ne.s32.totalorder %s94, %s96
      %p100 = scmp.eq.s32.totalorder %s18, 0
      %p101 = por %p99, %p100
      %p102 = scmp.ne.s32.totalorder %s94, %s96
      %p103 = scmp.eq.s32.totalorder %s23, 1
      %p104 = por %p102, %p103
      %p105 = scmp.ne.s32.totalorder %s96, %s97
      %p106 = scmp.eq.s32.totalorder %s23, 0
      %p107 = por %p105, %p106
      %p108 = scmp.ne.s32.totalorder %s96, %s97
      %p109 = scmp.eq.s32.totalorder %s24, 1
      %p110 = por %p108, %p109
      %p112 = scmp.ne.s32.totalorder %s97, %s111
      %p113 = scmp.eq.s32.totalorder %s24, 0
      %p114 = por %p112, %p113
      %s116 = sadd.s32 %s115, 1
      %p119 = scmp.eq.s32.totalorder %s18, 1
      %p120 = scmp.ne.s32.totalorder %s115, %s117
      %p121 = scmp.eq.s32.totalorder %s18, 0
      %p122 = por %p120, %p121
      %p123 = scmp.ne.s32.totalorder %s115, %s117
      %p124 = scmp.eq.s32.totalorder %s23, 1
      %p125 = por %p123, %p124
      %p126 = scmp.ne.s32.totalorder %s117, %s118
      %p127 = scmp.eq.s32.totalorder %s23, 0
      %p128 = por %p126, %p127
      %p129 = scmp.ne.s32.totalorder %s117, %s118
      %p130 = scmp.eq.s32.totalorder %s24, 1
      %p131 = por %p129, %p130
      %p133 = scmp.ne.s32.totalorder %s118, %s132
      %p134 = scmp.eq.s32.totalorder %s24, 0
      %p135 = por %p133, %p134
      %s136 = ssub.s32 %s18, %s25
      %p137 = scmp.eq.s32.totalorder %s136, 0
      %s139 = sadd.s32 %s138, 1
      %s140 = scalar_select %p137, %s138, %s139
      %p143 = pneg %p137
      %p144 = scmp.eq.s32.totalorder %s18, 1
      %p145 = por %p143, %p144
      %p146 = scmp.ne.s32.totalorder %s138, %s141
      %p147 = scmp.eq.s32.totalorder %s18, 0
      %p148 = por %p146, %p147
      %p149 = scmp.ne.s32.totalorder %s138, %s141
      %p150 = scmp.eq.s32.totalorder %s23, 1
      %p151 = por %p149, %p150
      %p152 = scmp.ne.s32.totalorder %s141, %s142
      %p153 = scmp.eq.s32.totalorder %s23, 0
      %p154 = por %p152, %p153
      %p155 = scmp.ne.s32.totalorder %s141, %s142
      %p156 = scmp.eq.s32.totalorder %s24, 1
      %p157 = por %p155, %p156
      %p159 = scmp.ne.s32.totalorder %s142, %s158
      %p160 = scmp.eq.s32.totalorder %s24, 0
      %p161 = por %p159, %p160
      %p162 = scmp.le.s32.totalorder 1, %s18
      %p163 = scmp.lt.s32.totalorder %s18, 3
      %p164 = pnand %p162, %p163
      %p165 = pneg %p164
      // Predicated region
      $region9: #{tpu_custom_call.1} parent=5 // pred_check
        _
      $region10: #{tpu_custom_call.1} parent=5 // pred_check_branch
        %167 = sbr.rel (%p164) target = $region12
      $region11: #{tpu_custom_call.1} parent=5 // pred_region
        %s168 = ssub.s32 %s18, 1
        // Predicated region
        $region13: #{tpu_custom_call.1} parent=11 // pred_check
          %p169 = pneg %p65
        $region14: #{tpu_custom_call.1} parent=11 // pred_check_branch
          %171 = sbr.rel (%p169) target = $region16
        $region15: #{tpu_custom_call.1} parent=11 // pred_region
          %s173 = ssub.s32 9216, 9216
          %174 = vsyncadd [#allocation7], %s173
          %s175 = sshll.u32 [#allocation6], 4
          %s176 = int_to_ptr.vmem [resolvable:$true] %s175
          %181 = dma.hbm_to_vmem [thread:$0]  %s1, 9216, %s176, [#allocation7], 64, 64, 4
        $region16: #{tpu_custom_call.1} parent=11 // pred_fallthru
          _
        // Predicated region
        $region17: #{tpu_custom_call.1} parent=11 // pred_check
          %p182 = pneg %p86
        $region18: #{tpu_custom_call.1} parent=11 // pred_check_branch
          %184 = sbr.rel (%p182) target = $region20
        $region19: #{tpu_custom_call.1} parent=11 // pred_region
          _
        $region20: #{tpu_custom_call.1} parent=11 // pred_fallthru
          _
        // Predicated region
        $region21: #{tpu_custom_call.1} parent=11 // pred_check
          %p185 = pneg %p107
        $region22: #{tpu_custom_call.1} parent=11 // pred_check_branch
          %187 = sbr.rel (%p185) target = $region24
        $region23: #{tpu_custom_call.1} parent=11 // pred_region
          %s189 = ssub.s32 3072, 3072
          %190 = vsyncadd [#allocation7], %s189
          %s191 = sshll.u32 [#allocation8], 4
          %s192 = int_to_ptr.vmem [resolvable:$true] %s191
          %197 = dma.hbm_to_vmem [thread:$0]  %s3, 3072, %s192, [#allocation7], 64, 64, 4
        $region24: #{tpu_custom_call.1} parent=11 // pred_fallthru
          _
        // Predicated region
        $region25: #{tpu_custom_call.1} parent=11 // pred_check
          %p198 = pneg %p128
        $region26: #{tpu_custom_call.1} parent=11 // pred_check_branch
          %200 = sbr.rel (%p198) target = $region28
        $region27: #{tpu_custom_call.1} parent=11 // pred_region
          _
        $region28: #{tpu_custom_call.1} parent=11 // pred_fallthru
          _
      $region12: #{tpu_custom_call.1} parent=5 // pred_fallthru
        _
      %p201 = scmp.lt.s32.totalorder %s18, 2
      // Predicated region
      $region29: #{tpu_custom_call.1} parent=5 // pred_check
        %p202 = pneg %p201
      $region30: #{tpu_custom_call.1} parent=5 // pred_check_branch
        %204 = sbr.rel (%p202) target = $region32
      $region31: #{tpu_custom_call.1} parent=5 // pred_region
        // Predicated region
        $region33: #{tpu_custom_call.1} parent=31 // pred_check
          %p205 = pneg %p38
        $region34: #{tpu_custom_call.1} parent=31 // pred_check_branch
          %207 = sbr.rel (%p205) target = $region36
        $region35: #{tpu_custom_call.1} parent=31 // pred_region
          %s208 = sand.u32 %s28, 1
          %s209 = scalar_lea.sflag [#allocation4], %s208
          %s210 = sand.u32 %s28, 1
          %s211 = smul.addr %s210, 16
          %s212 = scalar_lea.vmem [#allocation3], %s211
          %s214 = ssub.s32 256, 256
          %215 = vsyncadd %s209, %s214
          %s216 = smul.addr %s18, 2
          %s217 = smul.addr %s216, 128
          %s218 = scalar_lea.hbm %s0, %s217
          %s219 = sshll.u32 %s212, 4
          %s220 = int_to_ptr.vmem [resolvable:$true] %s219
          %225 = dma.hbm_to_vmem [thread:$0]  %s218, 256, %s220, %s209, 128, 128, 8
        $region36: #{tpu_custom_call.1} parent=31 // pred_fallthru
          _
      $region32: #{tpu_custom_call.1} parent=5 // pred_fallthru
        _
      %p226 = scmp.le.s32.totalorder 1, %s18
      %p227 = scmp.lt.s32.totalorder %s18, 3
      %p228 = pnand %p226, %p227
      %p229 = pneg %p228
      // Predicated region
      $region37: #{tpu_custom_call.1} parent=5 // pred_check
        _
      $region38: #{tpu_custom_call.1} parent=5 // pred_check_branch
        %231 = sbr.rel (%p228) target = $region40
      $region39: #{tpu_custom_call.1} parent=5 // pred_region
        %s232 = ssub.s32 %s18, 1
        %s233 = sand.u32 %s31, 1
        %s234 = scalar_lea.sflag [#allocation4], %s233
        %s235 = sand.u32 %s31, 1
        %s236 = smul.addr %s235, 16
        %s237 = scalar_lea.vmem [#allocation3], %s236
        // Predicated region
        $region41: #{tpu_custom_call.1} parent=39 // pred_check
          %p238 = pneg %p44
        $region42: #{tpu_custom_call.1} parent=39 // pred_check_branch
          %240 = sbr.rel (%p238) target = $region44
        $region43: #{tpu_custom_call.1} parent=39 // pred_region
          %241 = dma.done %s234, 256
        $region44: #{tpu_custom_call.1} parent=39 // pred_fallthru
          _
        // Predicated region
        $region45: #{tpu_custom_call.1} parent=39 // pred_check
          %p242 = pneg %p65
        $region46: #{tpu_custom_call.1} parent=39 // pred_check_branch
          %244 = sbr.rel (%p242) target = $region48
        $region47: #{tpu_custom_call.1} parent=39 // pred_region
          %245 = dma.done [#allocation7], 9216
        $region48: #{tpu_custom_call.1} parent=39 // pred_fallthru
          _
        // Predicated region
        $region49: #{tpu_custom_call.1} parent=39 // pred_check
          %p246 = pneg %p107
        $region50: #{tpu_custom_call.1} parent=39 // pred_check_branch
          %248 = sbr.rel (%p246) target = $region52
        $region51: #{tpu_custom_call.1} parent=39 // pred_region
          %249 = dma.done [#allocation7], 3072
        $region52: #{tpu_custom_call.1} parent=39 // pred_fallthru
          _
        %s250 = sand.u32 %s31, 1
        %s251 = scalar_lea.sflag [#allocation4], %s250
        %s252 = sand.u32 %s31, 1
        %s253 = smul.addr %s252, 16
        %s254 = scalar_lea.vmem [#allocation3], %s253
        %p255 = pneg %p44
        %p256 = pneg %p41
        %p257 = pneg %p65
        %p258 = pneg %p62
        %p259 = pneg %p86
        %p260 = pneg %p83
        %p261 = pneg %p107
        %p262 = pneg %p104
        %p263 = pneg %p128
        %p264 = pneg %p125
        %p265 = pneg %p154
        %p266 = pneg %p151
        %s267 = sand.u32 %s141, 1
        %s268 = scalar_lea.sflag [#allocation5], %s267
        %s269 = sand.u32 %s141, 1
        %s270 = smul.addr %s269, 16
        %s271 = scalar_lea.vmem [#allocation9], %s270
        %273 = vst [vmem:[#allocation2] sm:$0xf] 0
        %274 = vst [vmem:[#allocation2 + $0x4] sm:$0xf] 0
        %275 = vst [vmem:[#allocation2 + $0x10] sm:$0xf] 0
        %276 = vst [vmem:[#allocation2 + $0x14] sm:$0xf] 0
        %v277 = vld [vmem:[%s237] sm:$0xff]
        %v278 = vld [vmem:[%s237 + $0x8] sm:$0xff]
        %v279 = vmax.f32 %v277, 0.0
        %v280 = vmax.f32 %v278, 0.0
        %v281 = vpack.c.bf16 %v280, %v279
        %v283 = vunpack.c.l.b16 %v281
        %v284 = vunpack.c.h.b16 %v281
        %v285 = vpack.c.b16 %v283, %v283
        %v286 = vpack.c.b16 %v284, %v284
        %289 = vst [vmem:[#allocation2 + $0x8] sm:$0xf] %v285
        %290 = vst [vmem:[#allocation2 + $0xc] sm:$0xf] %v286
        %v291 = vld [vmem:[#allocation2] sm:$0x8]
        %v292 = vld [vmem:[#allocation2 + $0x4] sm:$0xf]
        %v293 = vld [vmem:[#allocation2 + $0x8] sm:$0xf]
        %v294 = vld [vmem:[#allocation2 + $0xc] sm:$0xf]
        %v295 = vld [vmem:[#allocation2 + $0xc] sm:$0xf]
        %v296 = vld [vmem:[#allocation2 + $0x10] sm:$0xf]
        %v297 = vld [vmem:[#allocation2 + $0x14] sm:$0x1]
        %v301 = vunpack.c.l.b16 %v291
        %v302 = vunpack.c.l.b16 %v292
        %v303 = vunpack.c.l.b16 %v293
        %v304 = vpack.c.b16 %v302, %v301
        %v305 = vpack.c.b16 %v303, %v303
        %v307 = vunpack.c.l.b16 %v294
        %v308 = vpack.c.b16 %v307, %v303
        %v310 = vshrl.u32 %v308, 16
        %v312 = vrot.slane %v310, 4
        %v313 = vshll.u32 %v308, 16
        %v315 = vrot.slane %v313, 5
        %v316 = vor.u32 %v312, %v315
        %v320 = vunpack.c.l.b16 %v295
        %v321 = vunpack.c.l.b16 %v296
        %v322 = vunpack.c.l.b16 %v297
        %v323 = vpack.c.b16 %v321, %v320
        %v324 = vpack.c.b16 %v322, %v322
        %vm325 = vcmask 1042432
        %v326 = vrot.slane %v323, 5
        %v327 = vrot.slane %v324, 5
        %v328 = vsel %vm325, %v326, %v327
        %v329 = vld [vmem:[#allocation6] sm:$0xf]
        %v330 = vld [vmem:[#allocation6 + $0x4] sm:$0xf]
        %v331 = vld [vmem:[#allocation6 + $0x8] sm:$0xf]
        %v332 = vld [vmem:[#allocation6 + $0xc] sm:$0xf]
        %v333 = vld [vmem:[#allocation6 + $0x10] sm:$0xf]
        %v334 = vld [vmem:[#allocation6 + $0x14] sm:$0xf]
        %v335 = vld [vmem:[#allocation6 + $0x18] sm:$0xf]
        %v336 = vld [vmem:[#allocation6 + $0x1c] sm:$0xf]
        %v337 = vld [vmem:[#allocation6 + $0x20] sm:$0xf]
        %v338 = vld [vmem:[#allocation6 + $0x24] sm:$0xf]
        %v339 = vld [vmem:[#allocation6 + $0x28] sm:$0xf]
        %v340 = vld [vmem:[#allocation6 + $0x2c] sm:$0xf]
        %v341 = vld [vmem:[#allocation6 + $0x30] sm:$0xf]
        %v342 = vld [vmem:[#allocation6 + $0x34] sm:$0xf]
        %v343 = vld [vmem:[#allocation6 + $0x38] sm:$0xf]
        %v344 = vld [vmem:[#allocation6 + $0x3c] sm:$0xf]
        %v345 = vld [vmem:[#allocation6 + $0x40] sm:$0xf]
        %v346 = vld [vmem:[#allocation6 + $0x44] sm:$0xf]
        %v347 = vld [vmem:[#allocation6 + $0x48] sm:$0xf]
        %v348 = vld [vmem:[#allocation6 + $0x4c] sm:$0xf]
        %v349 = vld [vmem:[#allocation6 + $0x50] sm:$0xf]
        %v350 = vld [vmem:[#allocation6 + $0x54] sm:$0xf]
        %v351 = vld [vmem:[#allocation6 + $0x58] sm:$0xf]
        %v352 = vld [vmem:[#allocation6 + $0x5c] sm:$0xf]
        %v353 = vld [vmem:[#allocation6 + $0x60] sm:$0xf]
        %v354 = vld [vmem:[#allocation6 + $0x64] sm:$0xf]
        %v355 = vld [vmem:[#allocation6 + $0x68] sm:$0xf]
        %v356 = vld [vmem:[#allocation6 + $0x6c] sm:$0xf]
        %v357 = vld [vmem:[#allocation6 + $0x70] sm:$0xf]
        %v358 = vld [vmem:[#allocation6 + $0x74] sm:$0xf]
        %v359 = vld [vmem:[#allocation6 + $0x78] sm:$0xf]
        %v360 = vld [vmem:[#allocation6 + $0x7c] sm:$0xf]
        %v361 = vld [vmem:[#allocation6 + $0x80] sm:$0xf]
        %v362 = vld [vmem:[#allocation6 + $0x84] sm:$0xf]
        %v363 = vld [vmem:[#allocation6 + $0x88] sm:$0xf]
        %v364 = vld [vmem:[#allocation6 + $0x8c] sm:$0xf]
        %v365 = vld [vmem:[#allocation6 + $0x90] sm:$0xf]
        %v366 = vld [vmem:[#allocation6 + $0x94] sm:$0xf]
        %v367 = vld [vmem:[#allocation6 + $0x98] sm:$0xf]
        %v368 = vld [vmem:[#allocation6 + $0x9c] sm:$0xf]
        %v369 = vld [vmem:[#allocation6 + $0xa0] sm:$0xf]
        %v370 = vld [vmem:[#allocation6 + $0xa4] sm:$0xf]
        %v371 = vld [vmem:[#allocation6 + $0xa8] sm:$0xf]
        %v372 = vld [vmem:[#allocation6 + $0xac] sm:$0xf]
        %v373 = vld [vmem:[#allocation6 + $0xb0] sm:$0xf]
        %v374 = vld [vmem:[#allocation6 + $0xb4] sm:$0xf]
        %v375 = vld [vmem:[#allocation6 + $0xb8] sm:$0xf]
        %v376 = vld [vmem:[#allocation6 + $0xbc] sm:$0xf]
        %v377 = vld [vmem:[%s2] sm:$0x1]
        %v379 = vlaneseq
        %v380 = vshrl.u32 %v379, 7
        %v381 = vsub.s32 0, %v380
        %v382 = vrot.slane %v377, %v381
        %vm384 = vsmask.f32 4352
        %v386 = vshrl.u32 %v304, 16
        %v388 = vrot.slane %v386, 3
        %v389 = vshll.u32 %v304, 16
        %v391 = vrot.slane %v389, 4
        %v392 = vor.u32 %v388, %v391
        %v394 = vshrl.u32 %v305, 16
        %v396 = vrot.slane %v394, 3
        %v397 = vshll.u32 %v305, 16
        %v399 = vrot.slane %v397, 4
        %v400 = vor.u32 %v396, %v399
        %v401 = vsel %vm384, %v392, %v400
        %v403 = vshrl.u32 %v316, 16
        %v405 = vrot.slane %v403, 3
        %v406 = vshll.u32 %v316, 16
        %v408 = vrot.slane %v406, 4
        %v409 = vor.u32 %v405, %v408
        %v410 = vsel %vm384, %v409, %v409
        %v412 = vshrl.u32 %v326, 16
        %v414 = vrot.slane %v412, 3
        %v415 = vshll.u32 %v326, 16
        %v417 = vrot.slane %v415, 4
        %v418 = vor.u32 %v414, %v417
        %v420 = vshrl.u32 %v328, 16
        %v422 = vrot.slane %v420, 3
        %v423 = vshll.u32 %v328, 16
        %v425 = vrot.slane %v423, 4
        %v426 = vor.u32 %v422, %v425
        %v427 = vsel %vm384, %v418, %v426
        %v479 = vunpack.c.l.b16 %v329
        %v480 = vunpack.c.l.b16 %v330
        %v481 = vunpack.c.l.b16 %v331
        %v482 = vunpack.c.l.b16 %v332
        %v483 = vunpack.c.l.b16 %v333
        %v484 = vunpack.c.l.b16 %v334
        %v485 = vunpack.c.l.b16 %v335
        %v486 = vunpack.c.l.b16 %v336
        %v487 = vunpack.c.l.b16 %v337
        %v488 = vunpack.c.l.b16 %v338
        %v489 = vunpack.c.l.b16 %v339
        %v490 = vunpack.c.l.b16 %v340
        %v491 = vunpack.c.l.b16 %v341
        %v492 = vunpack.c.l.b16 %v342
        %v493 = vunpack.c.l.b16 %v343
        %v494 = vunpack.c.l.b16 %v344
        %v495 = vunpack.c.l.b16 %v345
        %v496 = vunpack.c.l.b16 %v346
        %v497 = vunpack.c.l.b16 %v347
        %v498 = vunpack.c.l.b16 %v348
        %v499 = vunpack.c.l.b16 %v349
        %v500 = vunpack.c.l.b16 %v350
        %v501 = vunpack.c.l.b16 %v351
        %v502 = vunpack.c.l.b16 %v352
        %v503 = vunpack.c.l.b16 %v353
        %v504 = vunpack.c.l.b16 %v354
        %v505 = vunpack.c.l.b16 %v355
        %v506 = vunpack.c.l.b16 %v356
        %v507 = vunpack.c.l.b16 %v357
        %v508 = vunpack.c.l.b16 %v358
        %v509 = vunpack.c.l.b16 %v359
        %v510 = vunpack.c.l.b16 %v360
        %v511 = vunpack.c.l.b16 %v361
        %v512 = vunpack.c.l.b16 %v362
        %v513 = vunpack.c.l.b16 %v363
        %v514 = vunpack.c.l.b16 %v364
        %v515 = vunpack.c.l.b16 %v365
        %v516 = vunpack.c.l.b16 %v366
        %v517 = vunpack.c.l.b16 %v367
        %v518 = vunpack.c.l.b16 %v368
        %v519 = vunpack.c.l.b16 %v369
        %v520 = vunpack.c.l.b16 %v370
        %v521 = vunpack.c.l.b16 %v371
        %v522 = vunpack.c.l.b16 %v372
        %v523 = vunpack.c.l.b16 %v373
        %v524 = vunpack.c.l.b16 %v374
        %v525 = vunpack.c.l.b16 %v375
        %v526 = vunpack.c.l.b16 %v376
        %v527 = vpack.c.b16 %v480, %v479
        %v528 = vpack.c.b16 %v482, %v481
        %v529 = vpack.c.b16 %v484, %v483
        %v530 = vpack.c.b16 %v486, %v485
        %v531 = vpack.c.b16 %v488, %v487
        %v532 = vpack.c.b16 %v490, %v489
        %v533 = vpack.c.b16 %v492, %v491
        %v534 = vpack.c.b16 %v494, %v493
        %v535 = vpack.c.b16 %v496, %v495
        %v536 = vpack.c.b16 %v498, %v497
        %v537 = vpack.c.b16 %v500, %v499
        %v538 = vpack.c.b16 %v502, %v501
        %v539 = vpack.c.b16 %v504, %v503
        %v540 = vpack.c.b16 %v506, %v505
        %v541 = vpack.c.b16 %v508, %v507
        %v542 = vpack.c.b16 %v510, %v509
        %v543 = vpack.c.b16 %v512, %v511
        %v544 = vpack.c.b16 %v514, %v513
        %v545 = vpack.c.b16 %v516, %v515
        %v546 = vpack.c.b16 %v518, %v517
        %v547 = vpack.c.b16 %v520, %v519
        %v548 = vpack.c.b16 %v522, %v521
        %v549 = vpack.c.b16 %v524, %v523
        %v550 = vpack.c.b16 %v526, %v525
        %575 = vmatprep.subr.bf16.mxu0 0
        %576 = vmatpush1.bf16.msra.mxu0 %v534
        %577 = vmatprep.subr.bf16.mxu0 0
        %578 = vmatpush1.bf16.msra.mxu0 %v533
        %579 = vmatprep.subr.bf16.mxu0 0
        %580 = vmatpush1.bf16.msra.mxu0 %v532
        %581 = vmatprep.subr.bf16.mxu0 0
        %582 = vmatpush1.bf16.msra.mxu0 %v531
        %583 = vmatprep.subr.bf16.mxu0 0
        %584 = vmatpush1.bf16.msra.mxu0 %v530
        %585 = vmatprep.subr.bf16.mxu0 0
        %586 = vmatpush1.bf16.msra.mxu0 %v529
        %587 = vmatprep.subr.bf16.mxu0 0
        %588 = vmatpush1.bf16.msra.mxu0 %v528
        %589 = vmatprep.subr.bf16.mxu0 0
        %590 = vmatpush1.bf16.msra.mxu0 %v527
        %591 = vmatprep.subr.bf16.mxu0 0
        %592 = vmatpush2.bf16.msra.mxu0 %v542
        %593 = vmatprep.subr.bf16.mxu0 0
        %594 = vmatpush2.bf16.msra.mxu0 %v541
        %595 = vmatprep.subr.bf16.mxu0 0
        %596 = vmatpush2.bf16.msra.mxu0 %v540
        %597 = vmatprep.subr.bf16.mxu0 0
        %598 = vmatpush2.bf16.msra.mxu0 %v539
        %599 = vmatprep.subr.bf16.mxu0 0
        %600 = vmatpush2.bf16.msra.mxu0 %v538
        %601 = vmatprep.subr.bf16.mxu0 0
        %602 = vmatpush2.bf16.msra.mxu0 %v537
        %603 = vmatprep.subr.bf16.mxu0 0
        %604 = vmatpush2.bf16.msra.mxu0 %v536
        %605 = vmatprep.subr.bf16.mxu0 0
        %606 = vmatpush2.bf16.msra.mxu0 %v535
        %607 = vmatprep.mubr.bf16.mxu0 %v410
        %608 = vmatmul.mubr.bf16.gmra.mxu0 %v401
        %v609 = vpop.f32.mrf.mxu0
        %v610 = vadd.f32 %v382, %v609
        %v611 = vpop.f32.mrf.mxu0
        %v612 = vpop.f32.mrf.mxu0
        %v613 = vadd.f32 %v382, %v612
        %v614 = vpop.f32.mrf.mxu0
        %615 = vdwg.mxu0
        %616 = vmatprep.subr.bf16.mxu0 0
        %617 = vmatpush1.bf16.msra.mxu0 %v550
        %618 = vmatprep.subr.bf16.mxu0 0
        %619 = vmatpush1.bf16.msra.mxu0 %v549
        %620 = vmatprep.subr.bf16.mxu0 0
        %621 = vmatpush1.bf16.msra.mxu0 %v548
        %622 = vmatprep.subr.bf16.mxu0 0
        %623 = vmatpush1.bf16.msra.mxu0 %v547
        %624 = vmatprep.subr.bf16.mxu0 0
        %625 = vmatpush1.bf16.msra.mxu0 %v546
        %626 = vmatprep.subr.bf16.mxu0 0
        %627 = vmatpush1.bf16.msra.mxu0 %v545
        %628 = vmatprep.subr.bf16.mxu0 0
        %629 = vmatpush1.bf16.msra.mxu0 %v544
        %630 = vmatprep.subr.bf16.mxu0 0
        %631 = vmatpush1.bf16.msra.mxu0 %v543
        %632 = vmatprep.subr.bf16.mxu0 0
        %633 = vmatpush2.bf16.msra.mxu0 0
        %634 = vmatprep.subr.bf16.mxu0 0
        %635 = vmatpush2.bf16.msra.mxu0 0
        %636 = vmatprep.subr.bf16.mxu0 0
        %637 = vmatpush2.bf16.msra.mxu0 0
        %638 = vmatprep.subr.bf16.mxu0 0
        %639 = vmatpush2.bf16.msra.mxu0 0
        %640 = vmatprep.subr.bf16.mxu0 0
        %641 = vmatpush2.bf16.msra.mxu0 0
        %642 = vmatprep.subr.bf16.mxu0 0
        %643 = vmatpush2.bf16.msra.mxu0 0
        %644 = vmatprep.subr.bf16.mxu0 0
        %645 = vmatpush2.bf16.msra.mxu0 0
        %646 = vmatprep.subr.bf16.mxu0 0
        %647 = vmatpush2.bf16.msra.mxu0 0
        %648 = vmatprep.mubr.bf16.mxu0 0
        %649 = vmatmul.mubr.bf16.gmra.mxu0 %v427
        %v650 = vpop.f32.mrf.mxu0
        %v651 = vadd.f32 %v610, %v650
        %v652 = vpop.f32.mrf.mxu0
        %v653 = vpop.f32.mrf.mxu0
        %v654 = vadd.f32 %v613, %v653
        %v655 = vpop.f32.mrf.mxu0
        %656 = vdwg.mxu0
        %v657 = vmax.f32 %v651, 0.0
        %v658 = vmax.f32 %v654, 0.0
        %v659 = vpack.c.bf16 %v658, %v657
        %v660 = vld [vmem:[#allocation8] sm:$0xf]
        %v661 = vld [vmem:[#allocation8 + $0x4] sm:$0xf]
        %v662 = vld [vmem:[#allocation8 + $0x8] sm:$0xf]
        %v663 = vld [vmem:[#allocation8 + $0xc] sm:$0xf]
        %v664 = vld [vmem:[#allocation8 + $0x10] sm:$0xf]
        %v665 = vld [vmem:[#allocation8 + $0x14] sm:$0xf]
        %v666 = vld [vmem:[#allocation8 + $0x18] sm:$0xf]
        %v667 = vld [vmem:[#allocation8 + $0x1c] sm:$0xf]
        %v668 = vld [vmem:[#allocation8 + $0x20] sm:$0xf]
        %v669 = vld [vmem:[#allocation8 + $0x24] sm:$0xf]
        %v670 = vld [vmem:[#allocation8 + $0x28] sm:$0xf]
        %v671 = vld [vmem:[#allocation8 + $0x2c] sm:$0xf]
        %v672 = vld [vmem:[#allocation8 + $0x30] sm:$0xf]
        %v673 = vld [vmem:[#allocation8 + $0x34] sm:$0xf]
        %v674 = vld [vmem:[#allocation8 + $0x38] sm:$0xf]
        %v675 = vld [vmem:[#allocation8 + $0x3c] sm:$0xf]
        %v676 = vld [vmem:[%s4] sm:$0x1]
        %v678 = vlaneseq
        %v679 = vshrl.u32 %v678, 7
        %v680 = vsub.s32 0, %v679
        %v681 = vrot.slane %v676, %v680
        %v699 = vunpack.c.l.b16 %v660
        %v700 = vunpack.c.l.b16 %v661
        %v701 = vunpack.c.l.b16 %v662
        %v702 = vunpack.c.l.b16 %v663
        %v703 = vunpack.c.l.b16 %v664
        %v704 = vunpack.c.l.b16 %v665
        %v705 = vunpack.c.l.b16 %v666
        %v706 = vunpack.c.l.b16 %v667
        %v707 = vunpack.c.l.b16 %v668
        %v708 = vunpack.c.l.b16 %v669
        %v709 = vunpack.c.l.b16 %v670
        %v710 = vunpack.c.l.b16 %v671
        %v711 = vunpack.c.l.b16 %v672
        %v712 = vunpack.c.l.b16 %v673
        %v713 = vunpack.c.l.b16 %v674
        %v714 = vunpack.c.l.b16 %v675
        %v715 = vpack.c.b16 %v700, %v699
        %v716 = vpack.c.b16 %v702, %v701
        %v717 = vpack.c.b16 %v704, %v703
        %v718 = vpack.c.b16 %v706, %v705
        %v719 = vpack.c.b16 %v708, %v707
        %v720 = vpack.c.b16 %v710, %v709
        %v721 = vpack.c.b16 %v712, %v711
        %v722 = vpack.c.b16 %v714, %v713
        %731 = vmatprep.subr.bf16.mxu0 0
        %732 = vmatpush1.bf16.msra.mxu0 %v722
        %733 = vmatprep.subr.bf16.mxu0 0
        %734 = vmatpush1.bf16.msra.mxu0 %v721
        %735 = vmatprep.subr.bf16.mxu0 0
        %736 = vmatpush1.bf16.msra.mxu0 %v720
        %737 = vmatprep.subr.bf16.mxu0 0
        %738 = vmatpush1.bf16.msra.mxu0 %v719
        %739 = vmatprep.subr.bf16.mxu0 0
        %740 = vmatpush1.bf16.msra.mxu0 %v718
        %741 = vmatprep.subr.bf16.mxu0 0
        %742 = vmatpush1.bf16.msra.mxu0 %v717
        %743 = vmatprep.subr.bf16.mxu0 0
        %744 = vmatpush1.bf16.msra.mxu0 %v716
        %745 = vmatprep.subr.bf16.mxu0 0
        %746 = vmatpush1.bf16.msra.mxu0 %v715
        %747 = vmatprep.subr.bf16.mxu0 0
        %748 = vmatpush2.bf16.msra.mxu0 0
        %749 = vmatprep.subr.bf16.mxu0 0
        %750 = vmatpush2.bf16.msra.mxu0 0
        %751 = vmatprep.subr.bf16.mxu0 0
        %752 = vmatpush2.bf16.msra.mxu0 0
        %753 = vmatprep.subr.bf16.mxu0 0
        %754 = vmatpush2.bf16.msra.mxu0 0
        %755 = vmatprep.subr.bf16.mxu0 0
        %756 = vmatpush2.bf16.msra.mxu0 0
        %757 = vmatprep.subr.bf16.mxu0 0
        %758 = vmatpush2.bf16.msra.mxu0 0
        %759 = vmatprep.subr.bf16.mxu0 0
        %760 = vmatpush2.bf16.msra.mxu0 0
        %761 = vmatprep.subr.bf16.mxu0 0
        %762 = vmatpush2.bf16.msra.mxu0 0
        %763 = vmatprep.mubr.bf16.mxu0 0
        %764 = vmatmul.mubr.bf16.gmra.mxu0 %v659
        %v765 = vpop.f32.mrf.mxu0
        %v766 = vadd.f32 %v681, %v765
        %v767 = vpop.f32.mrf.mxu0
        %v768 = vpop.f32.mrf.mxu0
        %v769 = vadd.f32 %v681, %v768
        %v770 = vpop.f32.mrf.mxu0
        %771 = vdwg.mxu0
        %v772 = vadd.f32 %v766, %v277
        %v773 = vadd.f32 %v769, %v278
        %v774 = vmax.f32 %v772, 0.0
        %v775 = vmax.f32 %v773, 0.0
        %v776 = vpack.c.bf16 %v775, %v774
        %v778 = vunpack.c.l.b16 %v776
        %v779 = vunpack.c.h.b16 %v776
        %v780 = vpack.c.b16 %v778, %v778
        %v781 = vpack.c.b16 %v779, %v779
        %784 = vst [vmem:[#allocation2 + $0x8] sm:$0xf] %v780
        %785 = vst [vmem:[#allocation2 + $0xc] sm:$0xf] %v781
        %v786 = vld [vmem:[#allocation2 + $0x4] sm:$0xc]
        %v787 = vld [vmem:[#allocation2 + $0x8] sm:$0xf]
        %v788 = vld [vmem:[#allocation2 + $0xc] sm:$0x7]
        %v789 = vld [vmem:[#allocation2 + $0xc] sm:$0xf]
        %v790 = vld [vmem:[#allocation2 + $0x8] sm:$0xe]
        %v791 = vld [vmem:[#allocation2 + $0x10] sm:$0x3]
        %v795 = vunpack.c.l.b16 %v786
        %v796 = vunpack.c.l.b16 %v787
        %v797 = vunpack.c.l.b16 %v788
        %v798 = vpack.c.b16 %v796, %v795
        %v799 = vpack.c.b16 %v797, %v797
        %v801 = vunpack.c.l.b16 %v789
        %v802 = vpack.c.b16 %v801, %v796
        %v804 = vshrl.u32 %v802, 16
        %v806 = vrot.slane %v804, 5
        %v807 = vshll.u32 %v802, 16
        %v809 = vrot.slane %v807, 6
        %v810 = vor.u32 %v806, %v809
        %v813 = vunpack.c.l.b16 %v790
        %v814 = vunpack.c.l.b16 %v791
        %v815 = vpack.c.b16 %v801, %v813
        %v816 = vpack.c.b16 %v814, %v814
        %vm817 = vcmask 1040384
        %v818 = vrot.slane %v815, 7
        %v819 = vrot.slane %v816, 7
        %v820 = vsel %vm817, %v818, %v819
        %s821 = scalar_lea.vmem [#allocation6], 192
        %v822 = vld [vmem:[%s821] sm:$0xf]
        %v823 = vld [vmem:[%s821 + $0x4] sm:$0xf]
        %v824 = vld [vmem:[%s821 + $0x8] sm:$0xf]
        %v825 = vld [vmem:[%s821 + $0xc] sm:$0xf]
        %v826 = vld [vmem:[%s821 + $0x10] sm:$0xf]
        %v827 = vld [vmem:[%s821 + $0x14] sm:$0xf]
        %v828 = vld [vmem:[%s821 + $0x18] sm:$0xf]
        %v829 = vld [vmem:[%s821 + $0x1c] sm:$0xf]
        %v830 = vld [vmem:[%s821 + $0x20] sm:$0xf]
        %v831 = vld [vmem:[%s821 + $0x24] sm:$0xf]
        %v832 = vld [vmem:[%s821 + $0x28] sm:$0xf]
        %v833 = vld [vmem:[%s821 + $0x2c] sm:$0xf]
        %v834 = vld [vmem:[%s821 + $0x30] sm:$0xf]
        %v835 = vld [vmem:[%s821 + $0x34] sm:$0xf]
        %v836 = vld [vmem:[%s821 + $0x38] sm:$0xf]
        %v837 = vld [vmem:[%s821 + $0x3c] sm:$0xf]
        %v838 = vld [vmem:[%s821 + $0x40] sm:$0xf]
        %v839 = vld [vmem:[%s821 + $0x44] sm:$0xf]
        %v840 = vld [vmem:[%s821 + $0x48] sm:$0xf]
        %v841 = vld [vmem:[%s821 + $0x4c] sm:$0xf]
        %v842 = vld [vmem:[%s821 + $0x50] sm:$0xf]
        %v843 = vld [vmem:[%s821 + $0x54] sm:$0xf]
        %v844 = vld [vmem:[%s821 + $0x58] sm:$0xf]
        %v845 = vld [vmem:[%s821 + $0x5c] sm:$0xf]
        %v846 = vld [vmem:[%s821 + $0x60] sm:$0xf]
        %v847 = vld [vmem:[%s821 + $0x64] sm:$0xf]
        %v848 = vld [vmem:[%s821 + $0x68] sm:$0xf]
        %v849 = vld [vmem:[%s821 + $0x6c] sm:$0xf]
        %v850 = vld [vmem:[%s821 + $0x70] sm:$0xf]
        %v851 = vld [vmem:[%s821 + $0x74] sm:$0xf]
        %v852 = vld [vmem:[%s821 + $0x78] sm:$0xf]
        %v853 = vld [vmem:[%s821 + $0x7c] sm:$0xf]
        %v854 = vld [vmem:[%s821 + $0x80] sm:$0xf]
        %v855 = vld [vmem:[%s821 + $0x84] sm:$0xf]
        %v856 = vld [vmem:[%s821 + $0x88] sm:$0xf]
        %v857 = vld [vmem:[%s821 + $0x8c] sm:$0xf]
        %v858 = vld [vmem:[%s821 + $0x90] sm:$0xf]
        %v859 = vld [vmem:[%s821 + $0x94] sm:$0xf]
        %v860 = vld [vmem:[%s821 + $0x98] sm:$0xf]
        %v861 = vld [vmem:[%s821 + $0x9c] sm:$0xf]
        %v862 = vld [vmem:[%s821 + $0xa0] sm:$0xf]
        %v863 = vld [vmem:[%s821 + $0xa4] sm:$0xf]
        %v864 = vld [vmem:[%s821 + $0xa8] sm:$0xf]
        %v865 = vld [vmem:[%s821 + $0xac] sm:$0xf]
        %v866 = vld [vmem:[%s821 + $0xb0] sm:$0xf]
        %v867 = vld [vmem:[%s821 + $0xb4] sm:$0xf]
        %v868 = vld [vmem:[%s821 + $0xb8] sm:$0xf]
        %v869 = vld [vmem:[%s821 + $0xbc] sm:$0xf]
        %s870 = scalar_lea.vmem %s2, 1
        %v871 = vld [vmem:[%s870] sm:$0x1]
        %v873 = vlaneseq
        %v874 = vshrl.u32 %v873, 7
        %v875 = vsub.s32 0, %v874
        %v876 = vrot.slane %v871, %v875
        %vm878 = vsmask.f32 5376
        %v880 = vshrl.u32 %v798, 16
        %v882 = vrot.slane %v880, 2
        %v883 = vshll.u32 %v798, 16
        %v885 = vrot.slane %v883, 3
        %v886 = vor.u32 %v882, %v885
        %v888 = vshrl.u32 %v799, 16
        %v890 = vrot.slane %v888, 2
        %v891 = vshll.u32 %v799, 16
        %v893 = vrot.slane %v891, 3
        %v894 = vor.u32 %v890, %v893
        %v895 = vsel %vm878, %v886, %v894
        %v897 = vshrl.u32 %v810, 16
        %v899 = vrot.slane %v897, 2
        %v900 = vshll.u32 %v810, 16
        %v902 = vrot.slane %v900, 3
        %v903 = vor.u32 %v899, %v902
        %v904 = vsel %vm878, %v903, %v903
        %v906 = vshrl.u32 %v818, 16
        %v908 = vrot.slane %v906, 2
        %v909 = vshll.u32 %v818, 16
        %v911 = vrot.slane %v909, 3
        %v912 = vor.u32 %v908, %v911
        %v914 = vshrl.u32 %v820, 16
        %v916 = vrot.slane %v914, 2
        %v917 = vshll.u32 %v820, 16
        %v919 = vrot.slane %v917, 3
        %v920 = vor.u32 %v916, %v919
        %v921 = vsel %vm878, %v912, %v920
        %v973 = vunpack.c.l.b16 %v822
        %v974 = vunpack.c.l.b16 %v823
        %v975 = vunpack.c.l.b16 %v824
        %v976 = vunpack.c.l.b16 %v825
        %v977 = vunpack.c.l.b16 %v826
        %v978 = vunpack.c.l.b16 %v827
        %v979 = vunpack.c.l.b16 %v828
        %v980 = vunpack.c.l.b16 %v829
        %v981 = vunpack.c.l.b16 %v830
        %v982 = vunpack.c.l.b16 %v831
        %v983 = vunpack.c.l.b16 %v832
        %v984 = vunpack.c.l.b16 %v833
        %v985 = vunpack.c.l.b16 %v834
        %v986 = vunpack.c.l.b16 %v835
        %v987 = vunpack.c.l.b16 %v836
        %v988 = vunpack.c.l.b16 %v837
        %v989 = vunpack.c.l.b16 %v838
        %v990 = vunpack.c.l.b16 %v839
        %v991 = vunpack.c.l.b16 %v840
        %v992 = vunpack.c.l.b16 %v841
        %v993 = vunpack.c.l.b16 %v842
        %v994 = vunpack.c.l.b16 %v843
        %v995 = vunpack.c.l.b16 %v844
        %v996 = vunpack.c.l.b16 %v845
        %v997 = vunpack.c.l.b16 %v846
        %v998 = vunpack.c.l.b16 %v847
        %v999 = vunpack.c.l.b16 %v848
        %v1000 = vunpack.c.l.b16 %v849
        %v1001 = vunpack.c.l.b16 %v850
        %v1002 = vunpack.c.l.b16 %v851
        %v1003 = vunpack.c.l.b16 %v852
        %v1004 = vunpack.c.l.b16 %v853
        %v1005 = vunpack.c.l.b16 %v854
        %v1006 = vunpack.c.l.b16 %v855
        %v1007 = vunpack.c.l.b16 %v856
        %v1008 = vunpack.c.l.b16 %v857
        %v1009 = vunpack.c.l.b16 %v858
        %v1010 = vunpack.c.l.b16 %v859
        %v1011 = vunpack.c.l.b16 %v860
        %v1012 = vunpack.c.l.b16 %v861
        %v1013 = vunpack.c.l.b16 %v862
        %v1014 = vunpack.c.l.b16 %v863
        %v1015 = vunpack.c.l.b16 %v864
        %v1016 = vunpack.c.l.b16 %v865
        %v1017 = vunpack.c.l.b16 %v866
        %v1018 = vunpack.c.l.b16 %v867
        %v1019 = vunpack.c.l.b16 %v868
        %v1020 = vunpack.c.l.b16 %v869
        %v1021 = vpack.c.b16 %v974, %v973
        %v1022 = vpack.c.b16 %v976, %v975
        %v1023 = vpack.c.b16 %v978, %v977
        %v1024 = vpack.c.b16 %v980, %v979
        %v1025 = vpack.c.b16 %v982, %v981
        %v1026 = vpack.c.b16 %v984, %v983
        %v1027 = vpack.c.b16 %v986, %v985
        %v1028 = vpack.c.b16 %v988, %v987
        %v1029 = vpack.c.b16 %v990, %v989
        %v1030 = vpack.c.b16 %v992, %v991
        %v1031 = vpack.c.b16 %v994, %v993
        %v1032 = vpack.c.b16 %v996, %v995
        %v1033 = vpack.c.b16 %v998, %v997
        %v1034 = vpack.c.b16 %v1000, %v999
        %v1035 = vpack.c.b16 %v1002, %v1001
        %v1036 = vpack.c.b16 %v1004, %v1003
        %v1037 = vpack.c.b16 %v1006, %v1005
        %v1038 = vpack.c.b16 %v1008, %v1007
        %v1039 = vpack.c.b16 %v1010, %v1009
        %v1040 = vpack.c.b16 %v1012, %v1011
        %v1041 = vpack.c.b16 %v1014, %v1013
        %v1042 = vpack.c.b16 %v1016, %v1015
        %v1043 = vpack.c.b16 %v1018, %v1017
        %v1044 = vpack.c.b16 %v1020, %v1019
        %1069 = vmatprep.subr.bf16.mxu0 0
        %1070 = vmatpush1.bf16.msra.mxu0 %v1028
        %1071 = vmatprep.subr.bf16.mxu0 0
        %1072 = vmatpush1.bf16.msra.mxu0 %v1027
        %1073 = vmatprep.subr.bf16.mxu0 0
        %1074 = vmatpush1.bf16.msra.mxu0 %v1026
        %1075 = vmatprep.subr.bf16.mxu0 0
        %1076 = vmatpush1.bf16.msra.mxu0 %v1025
        %1077 = vmatprep.subr.bf16.mxu0 0
        %1078 = vmatpush1.bf16.msra.mxu0 %v1024
        %1079 = vmatprep.subr.bf16.mxu0 0
        %1080 = vmatpush1.bf16.msra.mxu0 %v1023
        %1081 = vmatprep.subr.bf16.mxu0 0
        %1082 = vmatpush1.bf16.msra.mxu0 %v1022
        %1083 = vmatprep.subr.bf16.mxu0 0
        %1084 = vmatpush1.bf16.msra.mxu0 %v1021
        %1085 = vmatprep.subr.bf16.mxu0 0
        %1086 = vmatpush2.bf16.msra.mxu0 %v1036
        %1087 = vmatprep.subr.bf16.mxu0 0
        %1088 = vmatpush2.bf16.msra.mxu0 %v1035
        %1089 = vmatprep.subr.bf16.mxu0 0
        %1090 = vmatpush2.bf16.msra.mxu0 %v1034
        %1091 = vmatprep.subr.bf16.mxu0 0
        %1092 = vmatpush2.bf16.msra.mxu0 %v1033
        %1093 = vmatprep.subr.bf16.mxu0 0
        %1094 = vmatpush2.bf16.msra.mxu0 %v1032
        %1095 = vmatprep.subr.bf16.mxu0 0
        %1096 = vmatpush2.bf16.msra.mxu0 %v1031
        %1097 = vmatprep.subr.bf16.mxu0 0
        %1098 = vmatpush2.bf16.msra.mxu0 %v1030
        %1099 = vmatprep.subr.bf16.mxu0 0
        %1100 = vmatpush2.bf16.msra.mxu0 %v1029
        %1101 = vmatprep.mubr.bf16.mxu0 %v904
        %1102 = vmatmul.mubr.bf16.gmra.mxu0 %v895
        %v1103 = vpop.f32.mrf.mxu0
        %v1104 = vadd.f32 %v876, %v1103
        %v1105 = vpop.f32.mrf.mxu0
        %v1106 = vpop.f32.mrf.mxu0
        %v1107 = vadd.f32 %v876, %v1106
        %v1108 = vpop.f32.mrf.mxu0
        %1109 = vdwg.mxu0
        %1110 = vmatprep.subr.bf16.mxu0 0
        %1111 = vmatpush1.bf16.msra.mxu0 %v1044
        %1112 = vmatprep.subr.bf16.mxu0 0
        %1113 = vmatpush1.bf16.msra.mxu0 %v1043
        %1114 = vmatprep.subr.bf16.mxu0 0
        %1115 = vmatpush1.bf16.msra.mxu0 %v1042
        %1116 = vmatprep.subr.bf16.mxu0 0
        %1117 = vmatpush1.bf16.msra.mxu0 %v1041
        %1118 = vmatprep.subr.bf16.mxu0 0
        %1119 = vmatpush1.bf16.msra.mxu0 %v1040
        %1120 = vmatprep.subr.bf16.mxu0 0
        %1121 = vmatpush1.bf16.msra.mxu0 %v1039
        %1122 = vmatprep.subr.bf16.mxu0 0
        %1123 = vmatpush1.bf16.msra.mxu0 %v1038
        %1124 = vmatprep.subr.bf16.mxu0 0
        %1125 = vmatpush1.bf16.msra.mxu0 %v1037
        %1126 = vmatprep.subr.bf16.mxu0 0
        %1127 = vmatpush2.bf16.msra.mxu0 0
        %1128 = vmatprep.subr.bf16.mxu0 0
        %1129 = vmatpush2.bf16.msra.mxu0 0
        %1130 = vmatprep.subr.bf16.mxu0 0
        %1131 = vmatpush2.bf16.msra.mxu0 0
        %1132 = vmatprep.subr.bf16.mxu0 0
        %1133 = vmatpush2.bf16.msra.mxu0 0
        %1134 = vmatprep.subr.bf16.mxu0 0
        %1135 = vmatpush2.bf16.msra.mxu0 0
        %1136 = vmatprep.subr.bf16.mxu0 0
        %1137 = vmatpush2.bf16.msra.mxu0 0
        %1138 = vmatprep.subr.bf16.mxu0 0
        %1139 = vmatpush2.bf16.msra.mxu0 0
        %1140 = vmatprep.subr.bf16.mxu0 0
        %1141 = vmatpush2.bf16.msra.mxu0 0
        %1142 = vmatprep.mubr.bf16.mxu0 0
        %1143 = vmatmul.mubr.bf16.gmra.mxu0 %v921
        %v1144 = vpop.f32.mrf.mxu0
        %v1145 = vadd.f32 %v1104, %v1144
        %v1146 = vpop.f32.mrf.mxu0
        %v1147 = vpop.f32.mrf.mxu0
        %v1148 = vadd.f32 %v1107, %v1147
        %v1149 = vpop.f32.mrf.mxu0
        %1150 = vdwg.mxu0
        %v1151 = vmax.f32 %v1145, 0.0
        %v1152 = vmax.f32 %v1148, 0.0
        %v1153 = vpack.c.bf16 %v1152, %v1151
        %s1154 = scalar_lea.vmem [#allocation8], 64
        %v1155 = vld [vmem:[%s1154] sm:$0xf]
        %v1156 = vld [vmem:[%s1154 + $0x4] sm:$0xf]
        %v1157 = vld [vmem:[%s1154 + $0x8] sm:$0xf]
        %v1158 = vld [vmem:[%s1154 + $0xc] sm:$0xf]
        %v1159 = vld [vmem:[%s1154 + $0x10] sm:$0xf]
        %v1160 = vld [vmem:[%s1154 + $0x14] sm:$0xf]
        %v1161 = vld [vmem:[%s1154 + $0x18] sm:$0xf]
        %v1162 = vld [vmem:[%s1154 + $0x1c] sm:$0xf]
        %v1163 = vld [vmem:[%s1154 + $0x20] sm:$0xf]
        %v1164 = vld [vmem:[%s1154 + $0x24] sm:$0xf]
        %v1165 = vld [vmem:[%s1154 + $0x28] sm:$0xf]
        %v1166 = vld [vmem:[%s1154 + $0x2c] sm:$0xf]
        %v1167 = vld [vmem:[%s1154 + $0x30] sm:$0xf]
        %v1168 = vld [vmem:[%s1154 + $0x34] sm:$0xf]
        %v1169 = vld [vmem:[%s1154 + $0x38] sm:$0xf]
        %v1170 = vld [vmem:[%s1154 + $0x3c] sm:$0xf]
        %s1171 = scalar_lea.vmem %s4, 1
        %v1172 = vld [vmem:[%s1171] sm:$0x1]
        %v1174 = vlaneseq
        %v1175 = vshrl.u32 %v1174, 7
        %v1176 = vsub.s32 0, %v1175
        %v1177 = vrot.slane %v1172, %v1176
        %v1195 = vunpack.c.l.b16 %v1155
        %v1196 = vunpack.c.l.b16 %v1156
        %v1197 = vunpack.c.l.b16 %v1157
        %v1198 = vunpack.c.l.b16 %v1158
        %v1199 = vunpack.c.l.b16 %v1159
        %v1200 = vunpack.c.l.b16 %v1160
        %v1201 = vunpack.c.l.b16 %v1161
        %v1202 = vunpack.c.l.b16 %v1162
        %v1203 = vunpack.c.l.b16 %v1163
        %v1204 = vunpack.c.l.b16 %v1164
        %v1205 = vunpack.c.l.b16 %v1165
        %v1206 = vunpack.c.l.b16 %v1166
        %v1207 = vunpack.c.l.b16 %v1167
        %v1208 = vunpack.c.l.b16 %v1168
        %v1209 = vunpack.c.l.b16 %v1169
        %v1210 = vunpack.c.l.b16 %v1170
        %v1211 = vpack.c.b16 %v1196, %v1195
        %v1212 = vpack.c.b16 %v1198, %v1197
        %v1213 = vpack.c.b16 %v1200, %v1199
        %v1214 = vpack.c.b16 %v1202, %v1201
        %v1215 = vpack.c.b16 %v1204, %v1203
        %v1216 = vpack.c.b16 %v1206, %v1205
        %v1217 = vpack.c.b16 %v1208, %v1207
        %v1218 = vpack.c.b16 %v1210, %v1209
        %1227 = vmatprep.subr.bf16.mxu0 0
        %1228 = vmatpush1.bf16.msra.mxu0 %v1218
        %1229 = vmatprep.subr.bf16.mxu0 0
        %1230 = vmatpush1.bf16.msra.mxu0 %v1217
        %1231 = vmatprep.subr.bf16.mxu0 0
        %1232 = vmatpush1.bf16.msra.mxu0 %v1216
        %1233 = vmatprep.subr.bf16.mxu0 0
        %1234 = vmatpush1.bf16.msra.mxu0 %v1215
        %1235 = vmatprep.subr.bf16.mxu0 0
        %1236 = vmatpush1.bf16.msra.mxu0 %v1214
        %1237 = vmatprep.subr.bf16.mxu0 0
        %1238 = vmatpush1.bf16.msra.mxu0 %v1213
        %1239 = vmatprep.subr.bf16.mxu0 0
        %1240 = vmatpush1.bf16.msra.mxu0 %v1212
        %1241 = vmatprep.subr.bf16.mxu0 0
        %1242 = vmatpush1.bf16.msra.mxu0 %v1211
        %1243 = vmatprep.subr.bf16.mxu0 0
        %1244 = vmatpush2.bf16.msra.mxu0 0
        %1245 = vmatprep.subr.bf16.mxu0 0
        %1246 = vmatpush2.bf16.msra.mxu0 0
        %1247 = vmatprep.subr.bf16.mxu0 0
        %1248 = vmatpush2.bf16.msra.mxu0 0
        %1249 = vmatprep.subr.bf16.mxu0 0
        %1250 = vmatpush2.bf16.msra.mxu0 0
        %1251 = vmatprep.subr.bf16.mxu0 0
        %1252 = vmatpush2.bf16.msra.mxu0 0
        %1253 = vmatprep.subr.bf16.mxu0 0
        %1254 = vmatpush2.bf16.msra.mxu0 0
        %1255 = vmatprep.subr.bf16.mxu0 0
        %1256 = vmatpush2.bf16.msra.mxu0 0
        %1257 = vmatprep.subr.bf16.mxu0 0
        %1258 = vmatpush2.bf16.msra.mxu0 0
        %1259 = vmatprep.mubr.bf16.mxu0 0
        %1260 = vmatmul.mubr.bf16.gmra.mxu0 %v1153
        %v1261 = vpop.f32.mrf.mxu0
        %v1262 = vadd.f32 %v1177, %v1261
        %v1263 = vpop.f32.mrf.mxu0
        %v1264 = vpop.f32.mrf.mxu0
        %v1265 = vadd.f32 %v1177, %v1264
        %v1266 = vpop.f32.mrf.mxu0
        %1267 = vdwg.mxu0
        %v1268 = vadd.f32 %v1262, %v772
        %v1269 = vadd.f32 %v1265, %v773
        %v1270 = vmax.f32 %v1268, 0.0
        %v1271 = vmax.f32 %v1269, 0.0
        %v1272 = vpack.c.bf16 %v1271, %v1270
        %v1274 = vunpack.c.l.b16 %v1272
        %v1275 = vunpack.c.h.b16 %v1272
        %v1276 = vpack.c.b16 %v1274, %v1274
        %v1277 = vpack.c.b16 %v1275, %v1275
        %1280 = vst [vmem:[#allocation2 + $0x8] sm:$0xf] %v1276
        %1281 = vst [vmem:[#allocation2 + $0xc] sm:$0xf] %v1277
        %v1282 = vld [vmem:[#allocation2 + $0x4] sm:$0x8]
        %v1283 = vld [vmem:[#allocation2 + $0x8] sm:$0xf]
        %v1284 = vld [vmem:[#allocation2 + $0xc] sm:$0xf]
        %v1285 = vld [vmem:[#allocation2 + $0x10] sm:$0x1]
        %v1289 = vunpack.c.l.b16 %v1282
        %v1290 = vunpack.c.l.b16 %v1283
        %v1291 = vunpack.c.l.b16 %v1284
        %v1292 = vpack.c.b16 %v1290, %v1289
        %v1293 = vpack.c.b16 %v1291, %v1291
        %v1294 = vpack.c.b16 %v1291, %v1290
        %v1296 = vshrl.u32 %v1294, 16
        %v1298 = vrot.slane %v1296, 4
        %v1299 = vshll.u32 %v1294, 16
        %v1301 = vrot.slane %v1299, 5
        %v1302 = vor.u32 %v1298, %v1301
        %v1304 = vunpack.c.l.b16 %v1285
        %v1305 = vpack.c.b16 %v1304, %v1304
        %v1306 = vrot.slane %v1294, 5
        %v1307 = vrot.slane %v1305, 5
        %v1308 = vsel %vm325, %v1306, %v1307
        %s1309 = scalar_lea.vmem [#allocation6], 384
        %v1310 = vld [vmem:[%s1309] sm:$0xf]
        %v1311 = vld [vmem:[%s1309 + $0x4] sm:$0xf]
        %v1312 = vld [vmem:[%s1309 + $0x8] sm:$0xf]
        %v1313 = vld [vmem:[%s1309 + $0xc] sm:$0xf]
        %v1314 = vld [vmem:[%s1309 + $0x10] sm:$0xf]
        %v1315 = vld [vmem:[%s1309 + $0x14] sm:$0xf]
        %v1316 = vld [vmem:[%s1309 + $0x18] sm:$0xf]
        %v1317 = vld [vmem:[%s1309 + $0x1c] sm:$0xf]
        %v1318 = vld [vmem:[%s1309 + $0x20] sm:$0xf]
        %v1319 = vld [vmem:[%s1309 + $0x24] sm:$0xf]
        %v1320 = vld [vmem:[%s1309 + $0x28] sm:$0xf]
        %v1321 = vld [vmem:[%s1309 + $0x2c] sm:$0xf]
        %v1322 = vld [vmem:[%s1309 + $0x30] sm:$0xf]
        %v1323 = vld [vmem:[%s1309 + $0x34] sm:$0xf]
        %v1324 = vld [vmem:[%s1309 + $0x38] sm:$0xf]
        %v1325 = vld [vmem:[%s1309 + $0x3c] sm:$0xf]
        %v1326 = vld [vmem:[%s1309 + $0x40] sm:$0xf]
        %v1327 = vld [vmem:[%s1309 + $0x44] sm:$0xf]
        %v1328 = vld [vmem:[%s1309 + $0x48] sm:$0xf]
        %v1329 = vld [vmem:[%s1309 + $0x4c] sm:$0xf]
        %v1330 = vld [vmem:[%s1309 + $0x50] sm:$0xf]
        %v1331 = vld [vmem:[%s1309 + $0x54] sm:$0xf]
        %v1332 = vld [vmem:[%s1309 + $0x58] sm:$0xf]
        %v1333 = vld [vmem:[%s1309 + $0x5c] sm:$0xf]
        %v1334 = vld [vmem:[%s1309 + $0x60] sm:$0xf]
        %v1335 = vld [vmem:[%s1309 + $0x64] sm:$0xf]
        %v1336 = vld [vmem:[%s1309 + $0x68] sm:$0xf]
        %v1337 = vld [vmem:[%s1309 + $0x6c] sm:$0xf]
        %v1338 = vld [vmem:[%s1309 + $0x70] sm:$0xf]
        %v1339 = vld [vmem:[%s1309 + $0x74] sm:$0xf]
        %v1340 = vld [vmem:[%s1309 + $0x78] sm:$0xf]
        %v1341 = vld [vmem:[%s1309 + $0x7c] sm:$0xf]
        %v1342 = vld [vmem:[%s1309 + $0x80] sm:$0xf]
        %v1343 = vld [vmem:[%s1309 + $0x84] sm:$0xf]
        %v1344 = vld [vmem:[%s1309 + $0x88] sm:$0xf]
        %v1345 = vld [vmem:[%s1309 + $0x8c] sm:$0xf]
        %v1346 = vld [vmem:[%s1309 + $0x90] sm:$0xf]
        %v1347 = vld [vmem:[%s1309 + $0x94] sm:$0xf]
        %v1348 = vld [vmem:[%s1309 + $0x98] sm:$0xf]
        %v1349 = vld [vmem:[%s1309 + $0x9c] sm:$0xf]
        %v1350 = vld [vmem:[%s1309 + $0xa0] sm:$0xf]
        %v1351 = vld [vmem:[%s1309 + $0xa4] sm:$0xf]
        %v1352 = vld [vmem:[%s1309 + $0xa8] sm:$0xf]
        %v1353 = vld [vmem:[%s1309 + $0xac] sm:$0xf]
        %v1354 = vld [vmem:[%s1309 + $0xb0] sm:$0xf]
        %v1355 = vld [vmem:[%s1309 + $0xb4] sm:$0xf]
        %v1356 = vld [vmem:[%s1309 + $0xb8] sm:$0xf]
        %v1357 = vld [vmem:[%s1309 + $0xbc] sm:$0xf]
        %s1358 = scalar_lea.vmem %s2, 2
        %v1359 = vld [vmem:[%s1358] sm:$0x1]
        %v1361 = vlaneseq
        %v1362 = vshrl.u32 %v1361, 7
        %v1363 = vsub.s32 0, %v1362
        %v1364 = vrot.slane %v1359, %v1363
        %v1367 = vshrl.u32 %v1292, 16
        %v1369 = vrot.slane %v1367, 3
        %v1370 = vshll.u32 %v1292, 16
        %v1372 = vrot.slane %v1370, 4
        %v1373 = vor.u32 %v1369, %v1372
        %v1375 = vshrl.u32 %v1293, 16
        %v1377 = vrot.slane %v1375, 3
        %v1378 = vshll.u32 %v1293, 16
        %v1380 = vrot.slane %v1378, 4
        %v1381 = vor.u32 %v1377, %v1380
        %v1382 = vsel %vm384, %v1373, %v1381
        %v1384 = vshrl.u32 %v1302, 16
        %v1386 = vrot.slane %v1384, 3
        %v1387 = vshll.u32 %v1302, 16
        %v1389 = vrot.slane %v1387, 4
        %v1390 = vor.u32 %v1386, %v1389
        %v1391 = vsel %vm384, %v1390, %v1390
        %v1393 = vshrl.u32 %v1306, 16
        %v1395 = vrot.slane %v1393, 3
        %v1396 = vshll.u32 %v1306, 16
        %v1398 = vrot.slane %v1396, 4
        %v1399 = vor.u32 %v1395, %v1398
        %v1401 = vshrl.u32 %v1308, 16
        %v1403 = vrot.slane %v1401, 3
        %v1404 = vshll.u32 %v1308, 16
        %v1406 = vrot.slane %v1404, 4
        %v1407 = vor.u32 %v1403, %v1406
        %v1408 = vsel %vm384, %v1399, %v1407
        %v1460 = vunpack.c.l.b16 %v1310
        %v1461 = vunpack.c.l.b16 %v1311
        %v1462 = vunpack.c.l.b16 %v1312
        %v1463 = vunpack.c.l.b16 %v1313
        %v1464 = vunpack.c.l.b16 %v1314
        %v1465 = vunpack.c.l.b16 %v1315
        %v1466 = vunpack.c.l.b16 %v1316
        %v1467 = vunpack.c.l.b16 %v1317
        %v1468 = vunpack.c.l.b16 %v1318
        %v1469 = vunpack.c.l.b16 %v1319
        %v1470 = vunpack.c.l.b16 %v1320
        %v1471 = vunpack.c.l.b16 %v1321
        %v1472 = vunpack.c.l.b16 %v1322
        %v1473 = vunpack.c.l.b16 %v1323
        %v1474 = vunpack.c.l.b16 %v1324
        %v1475 = vunpack.c.l.b16 %v1325
        %v1476 = vunpack.c.l.b16 %v1326
        %v1477 = vunpack.c.l.b16 %v1327
        %v1478 = vunpack.c.l.b16 %v1328
        %v1479 = vunpack.c.l.b16 %v1329
        %v1480 = vunpack.c.l.b16 %v1330
        %v1481 = vunpack.c.l.b16 %v1331
        %v1482 = vunpack.c.l.b16 %v1332
        %v1483 = vunpack.c.l.b16 %v1333
        %v1484 = vunpack.c.l.b16 %v1334
        %v1485 = vunpack.c.l.b16 %v1335
        %v1486 = vunpack.c.l.b16 %v1336
        %v1487 = vunpack.c.l.b16 %v1337
        %v1488 = vunpack.c.l.b16 %v1338
        %v1489 = vunpack.c.l.b16 %v1339
        %v1490 = vunpack.c.l.b16 %v1340
        %v1491 = vunpack.c.l.b16 %v1341
        %v1492 = vunpack.c.l.b16 %v1342
        %v1493 = vunpack.c.l.b16 %v1343
        %v1494 = vunpack.c.l.b16 %v1344
        %v1495 = vunpack.c.l.b16 %v1345
        %v1496 = vunpack.c.l.b16 %v1346
        %v1497 = vunpack.c.l.b16 %v1347
        %v1498 = vunpack.c.l.b16 %v1348
        %v1499 = vunpack.c.l.b16 %v1349
        %v1500 = vunpack.c.l.b16 %v1350
        %v1501 = vunpack.c.l.b16 %v1351
        %v1502 = vunpack.c.l.b16 %v1352
        %v1503 = vunpack.c.l.b16 %v1353
        %v1504 = vunpack.c.l.b16 %v1354
        %v1505 = vunpack.c.l.b16 %v1355
        %v1506 = vunpack.c.l.b16 %v1356
        %v1507 = vunpack.c.l.b16 %v1357
        %v1508 = vpack.c.b16 %v1461, %v1460
        %v1509 = vpack.c.b16 %v1463, %v1462
        %v1510 = vpack.c.b16 %v1465, %v1464
        %v1511 = vpack.c.b16 %v1467, %v1466
        %v1512 = vpack.c.b16 %v1469, %v1468
        %v1513 = vpack.c.b16 %v1471, %v1470
        %v1514 = vpack.c.b16 %v1473, %v1472
        %v1515 = vpack.c.b16 %v1475, %v1474
        %v1516 = vpack.c.b16 %v1477, %v1476
        %v1517 = vpack.c.b16 %v1479, %v1478
        %v1518 = vpack.c.b16 %v1481, %v1480
        %v1519 = vpack.c.b16 %v1483, %v1482
        %v1520 = vpack.c.b16 %v1485, %v1484
        %v1521 = vpack.c.b16 %v1487, %v1486
        %v1522 = vpack.c.b16 %v1489, %v1488
        %v1523 = vpack.c.b16 %v1491, %v1490
        %v1524 = vpack.c.b16 %v1493, %v1492
        %v1525 = vpack.c.b16 %v1495, %v1494
        %v1526 = vpack.c.b16 %v1497, %v1496
        %v1527 = vpack.c.b16 %v1499, %v1498
        %v1528 = vpack.c.b16 %v1501, %v1500
        %v1529 = vpack.c.b16 %v1503, %v1502
        %v1530 = vpack.c.b16 %v1505, %v1504
        %v1531 = vpack.c.b16 %v1507, %v1506
        %1556 = vmatprep.subr.bf16.mxu0 0
        %1557 = vmatpush1.bf16.msra.mxu0 %v1515
        %1558 = vmatprep.subr.bf16.mxu0 0
        %1559 = vmatpush1.bf16.msra.mxu0 %v1514
        %1560 = vmatprep.subr.bf16.mxu0 0
        %1561 = vmatpush1.bf16.msra.mxu0 %v1513
        %1562 = vmatprep.subr.bf16.mxu0 0
        %1563 = vmatpush1.bf16.msra.mxu0 %v1512
        %1564 = vmatprep.subr.bf16.mxu0 0
        %1565 = vmatpush1.bf16.msra.mxu0 %v1511
        %1566 = vmatprep.subr.bf16.mxu0 0
        %1567 = vmatpush1.bf16.msra.mxu0 %v1510
        %1568 = vmatprep.subr.bf16.mxu0 0
        %1569 = vmatpush1.bf16.msra.mxu0 %v1509
        %1570 = vmatprep.subr.bf16.mxu0 0
        %1571 = vmatpush1.bf16.msra.mxu0 %v1508
        %1572 = vmatprep.subr.bf16.mxu0 0
        %1573 = vmatpush2.bf16.msra.mxu0 %v1523
        %1574 = vmatprep.subr.bf16.mxu0 0
        %1575 = vmatpush2.bf16.msra.mxu0 %v1522
        %1576 = vmatprep.subr.bf16.mxu0 0
        %1577 = vmatpush2.bf16.msra.mxu0 %v1521
        %1578 = vmatprep.subr.bf16.mxu0 0
        %1579 = vmatpush2.bf16.msra.mxu0 %v1520
        %1580 = vmatprep.subr.bf16.mxu0 0
        %1581 = vmatpush2.bf16.msra.mxu0 %v1519
        %1582 = vmatprep.subr.bf16.mxu0 0
        %1583 = vmatpush2.bf16.msra.mxu0 %v1518
        %1584 = vmatprep.subr.bf16.mxu0 0
        %1585 = vmatpush2.bf16.msra.mxu0 %v1517
        %1586 = vmatprep.subr.bf16.mxu0 0
        %1587 = vmatpush2.bf16.msra.mxu0 %v1516
        %1588 = vmatprep.mubr.bf16.mxu0 %v1391
        %1589 = vmatmul.mubr.bf16.gmra.mxu0 %v1382
        %v1590 = vpop.f32.mrf.mxu0
        %v1591 = vadd.f32 %v1364, %v1590
        %v1592 = vpop.f32.mrf.mxu0
        %v1593 = vpop.f32.mrf.mxu0
        %v1594 = vadd.f32 %v1364, %v1593
        %v1595 = vpop.f32.mrf.mxu0
        %1596 = vdwg.mxu0
        %1597 = vmatprep.subr.bf16.mxu0 0
        %1598 = vmatpush1.bf16.msra.mxu0 %v1531
        %1599 = vmatprep.subr.bf16.mxu0 0
        %1600 = vmatpush1.bf16.msra.mxu0 %v1530
        %1601 = vmatprep.subr.bf16.mxu0 0
        %1602 = vmatpush1.bf16.msra.mxu0 %v1529
        %1603 = vmatprep.subr.bf16.mxu0 0
        %1604 = vmatpush1.bf16.msra.mxu0 %v1528
        %1605 = vmatprep.subr.bf16.mxu0 0
        %1606 = vmatpush1.bf16.msra.mxu0 %v1527
        %1607 = vmatprep.subr.bf16.mxu0 0
        %1608 = vmatpush1.bf16.msra.mxu0 %v1526
        %1609 = vmatprep.subr.bf16.mxu0 0
        %1610 = vmatpush1.bf16.msra.mxu0 %v1525
        %1611 = vmatprep.subr.bf16.mxu0 0
        %1612 = vmatpush1.bf16.msra.mxu0 %v1524
        %1613 = vmatprep.subr.bf16.mxu0 0
        %1614 = vmatpush2.bf16.msra.mxu0 0
        %1615 = vmatprep.subr.bf16.mxu0 0
        %1616 = vmatpush2.bf16.msra.mxu0 0
        %1617 = vmatprep.subr.bf16.mxu0 0
        %1618 = vmatpush2.bf16.msra.mxu0 0
        %1619 = vmatprep.subr.bf16.mxu0 0
        %1620 = vmatpush2.bf16.msra.mxu0 0
        %1621 = vmatprep.subr.bf16.mxu0 0
        %1622 = vmatpush2.bf16.msra.mxu0 0
        %1623 = vmatprep.subr.bf16.mxu0 0
        %1624 = vmatpush2.bf16.msra.mxu0 0
        %1625 = vmatprep.subr.bf16.mxu0 0
        %1626 = vmatpush2.bf16.msra.mxu0 0
        %1627 = vmatprep.subr.bf16.mxu0 0
        %1628 = vmatpush2.bf16.msra.mxu0 0
        %1629 = vmatprep.mubr.bf16.mxu0 0
        %1630 = vmatmul.mubr.bf16.gmra.mxu0 %v1408
        %v1631 = vpop.f32.mrf.mxu0
        %v1632 = vadd.f32 %v1591, %v1631
        %v1633 = vpop.f32.mrf.mxu0
        %v1634 = vpop.f32.mrf.mxu0
        %v1635 = vadd.f32 %v1594, %v1634
        %v1636 = vpop.f32.mrf.mxu0
        %1637 = vdwg.mxu0
        %v1638 = vmax.f32 %v1632, 0.0
        %v1639 = vmax.f32 %v1635, 0.0
        %v1640 = vpack.c.bf16 %v1639, %v1638
        %s1641 = scalar_lea.vmem [#allocation8], 128
        %v1642 = vld [vmem:[%s1641] sm:$0xf]
        %v1643 = vld [vmem:[%s1641 + $0x4] sm:$0xf]
        %v1644 = vld [vmem:[%s1641 + $0x8] sm:$0xf]
        %v1645 = vld [vmem:[%s1641 + $0xc] sm:$0xf]
        %v1646 = vld [vmem:[%s1641 + $0x10] sm:$0xf]
        %v1647 = vld [vmem:[%s1641 + $0x14] sm:$0xf]
        %v1648 = vld [vmem:[%s1641 + $0x18] sm:$0xf]
        %v1649 = vld [vmem:[%s1641 + $0x1c] sm:$0xf]
        %v1650 = vld [vmem:[%s1641 + $0x20] sm:$0xf]
        %v1651 = vld [vmem:[%s1641 + $0x24] sm:$0xf]
        %v1652 = vld [vmem:[%s1641 + $0x28] sm:$0xf]
        %v1653 = vld [vmem:[%s1641 + $0x2c] sm:$0xf]
        %v1654 = vld [vmem:[%s1641 + $0x30] sm:$0xf]
        %v1655 = vld [vmem:[%s1641 + $0x34] sm:$0xf]
        %v1656 = vld [vmem:[%s1641 + $0x38] sm:$0xf]
        %v1657 = vld [vmem:[%s1641 + $0x3c] sm:$0xf]
        %s1658 = scalar_lea.vmem %s4, 2
        %v1659 = vld [vmem:[%s1658] sm:$0x1]
        %v1661 = vlaneseq
        %v1662 = vshrl.u32 %v1661, 7
        %v1663 = vsub.s32 0, %v1662
        %v1664 = vrot.slane %v1659, %v1663
        %v1682 = vunpack.c.l.b16 %v1642
        %v1683 = vunpack.c.l.b16 %v1643
        %v1684 = vunpack.c.l.b16 %v1644
        %v1685 = vunpack.c.l.b16 %v1645
        %v1686 = vunpack.c.l.b16 %v1646
        %v1687 = vunpack.c.l.b16 %v1647
        %v1688 = vunpack.c.l.b16 %v1648
        %v1689 = vunpack.c.l.b16 %v1649
        %v1690 = vunpack.c.l.b16 %v1650
        %v1691 = vunpack.c.l.b16 %v1651
        %v1692 = vunpack.c.l.b16 %v1652
        %v1693 = vunpack.c.l.b16 %v1653
        %v1694 = vunpack.c.l.b16 %v1654
        %v1695 = vunpack.c.l.b16 %v1655
        %v1696 = vunpack.c.l.b16 %v1656
        %v1697 = vunpack.c.l.b16 %v1657
        %v1698 = vpack.c.b16 %v1683, %v1682
        %v1699 = vpack.c.b16 %v1685, %v1684
        %v1700 = vpack.c.b16 %v1687, %v1686
        %v1701 = vpack.c.b16 %v1689, %v1688
        %v1702 = vpack.c.b16 %v1691, %v1690
        %v1703 = vpack.c.b16 %v1693, %v1692
        %v1704 = vpack.c.b16 %v1695, %v1694
        %v1705 = vpack.c.b16 %v1697, %v1696
        %1714 = vmatprep.subr.bf16.mxu0 0
        %1715 = vmatpush1.bf16.msra.mxu0 %v1705
        %1716 = vmatprep.subr.bf16.mxu0 0
        %1717 = vmatpush1.bf16.msra.mxu0 %v1704
        %1718 = vmatprep.subr.bf16.mxu0 0
        %1719 = vmatpush1.bf16.msra.mxu0 %v1703
        %1720 = vmatprep.subr.bf16.mxu0 0
        %1721 = vmatpush1.bf16.msra.mxu0 %v1702
        %1722 = vmatprep.subr.bf16.mxu0 0
        %1723 = vmatpush1.bf16.msra.mxu0 %v1701
        %1724 = vmatprep.subr.bf16.mxu0 0
        %1725 = vmatpush1.bf16.msra.mxu0 %v1700
        %1726 = vmatprep.subr.bf16.mxu0 0
        %1727 = vmatpush1.bf16.msra.mxu0 %v1699
        %1728 = vmatprep.subr.bf16.mxu0 0
        %1729 = vmatpush1.bf16.msra.mxu0 %v1698
        %1730 = vmatprep.subr.bf16.mxu0 0
        %1731 = vmatpush2.bf16.msra.mxu0 0
        %1732 = vmatprep.subr.bf16.mxu0 0
        %1733 = vmatpush2.bf16.msra.mxu0 0
        %1734 = vmatprep.subr.bf16.mxu0 0
        %1735 = vmatpush2.bf16.msra.mxu0 0
        %1736 = vmatprep.subr.bf16.mxu0 0
        %1737 = vmatpush2.bf16.msra.mxu0 0
        %1738 = vmatprep.subr.bf16.mxu0 0
        %1739 = vmatpush2.bf16.msra.mxu0 0
        %1740 = vmatprep.subr.bf16.mxu0 0
        %1741 = vmatpush2.bf16.msra.mxu0 0
        %1742 = vmatprep.subr.bf16.mxu0 0
        %1743 = vmatpush2.bf16.msra.mxu0 0
        %1744 = vmatprep.subr.bf16.mxu0 0
        %1745 = vmatpush2.bf16.msra.mxu0 0
        %1746 = vmatprep.mubr.bf16.mxu0 0
        %1747 = vmatmul.mubr.bf16.gmra.mxu0 %v1640
        %v1748 = vpop.f32.mrf.mxu0
        %v1749 = vadd.f32 %v1664, %v1748
        %v1750 = vpop.f32.mrf.mxu0
        %v1751 = vpop.f32.mrf.mxu0
        %v1752 = vadd.f32 %v1664, %v1751
        %v1753 = vpop.f32.mrf.mxu0
        %1754 = vdwg.mxu0
        %v1755 = vadd.f32 %v1749, %v1268
        %v1756 = vadd.f32 %v1752, %v1269
        %1757 = vst [vmem:[%s271] sm:$0xff] %v1755
        %1758 = vst [vmem:[%s271 + $0x8] sm:$0xff] %v1756
        %s1759 = sand.u32 %s141, 1
        %s1760 = scalar_lea.sflag [#allocation5], %s1759
        %s1761 = sand.u32 %s141, 1
        %s1762 = smul.addr %s1761, 16
        %s1763 = scalar_lea.vmem [#allocation9], %s1762
        // Predicated region
        $region53: #{tpu_custom_call.1} parent=39 // pred_check
          %p1764 = pneg %p151
        $region54: #{tpu_custom_call.1} parent=39 // pred_check_branch
          %1766 = sbr.rel (%p1764) target = $region56
        $region55: #{tpu_custom_call.1} parent=39 // pred_region
          %s1768 = ssub.s32 256, 256
          %1769 = vsyncadd %s1760, %s1768
          %s1770 = smul.addr %s23, 2
          %s1771 = smul.addr %s1770, 128
          %s1772 = scalar_lea.hbm %s5, %s1771
          %s1773 = sshll.u32 %s1763, 4
          %s1774 = int_to_ptr.vmem [resolvable:$true] %s1773
          %1779 = dma.vmem_to_hbm [thread:$0]  %s1774, 256, %s1772, %s1760, 128, 128, 8
        $region56: #{tpu_custom_call.1} parent=39 // pred_fallthru
          _
      $region40: #{tpu_custom_call.1} parent=5 // pred_fallthru
        _
      %p1780 = scmp.le.s32.totalorder 2, %s18
      // Predicated region
      $region57: #{tpu_custom_call.1} parent=5 // pred_check
        %p1781 = pneg %p1780
      $region58: #{tpu_custom_call.1} parent=5 // pred_check_branch
        %1783 = sbr.rel (%p1781) target = $region60
      $region59: #{tpu_custom_call.1} parent=5 // pred_region
        %s1784 = ssub.s32 %s18, 2
        // Predicated region
        $region61: #{tpu_custom_call.1} parent=59 // pred_check
          %p1785 = pneg %p157
        $region62: #{tpu_custom_call.1} parent=59 // pred_check_branch
          %1787 = sbr.rel (%p1785) target = $region64
        $region63: #{tpu_custom_call.1} parent=59 // pred_region
          %s1788 = sand.u32 %s142, 1
          %s1789 = scalar_lea.sflag [#allocation5], %s1788
          %s1790 = sand.u32 %s142, 1
          %s1791 = smul.addr %s1790, 16
          %s1792 = scalar_lea.vmem [#allocation9], %s1791
          %1793 = dma.done %s1789, 256
        $region64: #{tpu_custom_call.1} parent=59 // pred_fallthru
          _
      $region60: #{tpu_custom_call.1} parent=5 // pred_fallthru
        _
    $region6: #{tpu_custom_call.1} parent=1 // loop_footer
      %s22 = sadd.s32 1, %s18
    $region7: #{tpu_custom_call.1} parent=1 // loop_footer_branch
      %17 = sbr.rel target = $region3
    $region8: #{tpu_custom_call.1} parent=1 // loop_exit
      _
    %1794 = vsyncpa [#allocation4], 1
    %s1795 = scalar_lea.sflag [#allocation4], 1
    %1796 = vsyncpa %s1795, 1
    %1797 = vsyncpa [#allocation7], 1
    %1798 = vsyncpa [#allocation5], 1
    %s1799 = scalar_lea.sflag [#allocation5], 1
    %1800 = vsyncpa %s1799, 1

</llo_original>
